<compile_context>
chip_gen: v6e
topology: v6e:2x2x1
jax: 0.10.0
libtpu: 0.0.40
codegen_flags: <defaults>
</compile_context>

<pallas_src>
import math

import jax
import jax.numpy as jnp
from jax.experimental import pallas as pl
from jax.experimental.pallas import tpu as pltpu

W0 = 30.0   # Sine frequency used by Siren layers
C = 6.0     # Siren init constant


def inr_kernel(x_ref, w1_ref, b1_ref, w2_ref, b2_ref, w3_ref, b3_ref, o_ref):
    """Fused 3-layer INR on a points-on-lanes tile.

    w1/b1 and w2/b2 arrive pre-scaled by w0; b3 arrives with +0.5 folded in:
        h1 = sin(W1s @ x  + b1s)
        h2 = sin(W2s @ h1 + b2s)
        o  = W3  @ h2 + (b3 + 0.5)
    """
    x = x_ref[...]                                                     # (in_dim, tile_n)
    h = jnp.dot(w1_ref[...], x, preferred_element_type=jnp.float32) + b1_ref[...]
    h = jnp.sin(h)                                                     # (hidden, tile_n)
    h = jnp.dot(w2_ref[...], h, preferred_element_type=jnp.float32) + b2_ref[...]
    h = jnp.sin(h)                                                     # (hidden, tile_n)
    out = jnp.dot(w3_ref[...], h, preferred_element_type=jnp.float32) + b3_ref[...]
    o_ref[...] = out.astype(o_ref.dtype)                               # (out_ch, tile_n)


def inr_forward(x, kparams, *, tile_n=2048):
    """x: (N, in_dim) float32.  kparams: output of prepare_params().  Returns (N, out_ch)."""
    N, in_dim = x.shape
    hidden = kparams["w1"].shape[0]
    out_ch = kparams["w3"].shape[0]

    # Large points-per-step tile (amortizes ~0.35us/step pipeline overhead,
    # lane-dense stores), capped so tiny inputs are not over-padded. Always a
    # multiple of 128.
    tile_n = max(128, min(tile_n, pl.cdiv(N, 128) * 128))
    n_pad = pl.cdiv(N, tile_n) * tile_n
    grid = (n_pad // tile_n,)

    xt = x.T                                           # (in_dim, N), points on lanes
    if n_pad != N:
        xt = jnp.pad(xt, ((0, 0), (0, n_pad - N)))     # zero-pad the tail tile

    full = lambda i: (0, 0)   # weights / biases: same (resident) block every step

    param_elems = (in_dim * hidden + hidden * hidden + hidden * out_ch
                   + 2 * hidden + out_ch)
    cost = pl.CostEstimate(
        flops=2 * n_pad * (in_dim * hidden + hidden * hidden + hidden * out_ch),
        transcendentals=2 * n_pad * hidden,
        bytes_accessed=4 * (n_pad * (in_dim + out_ch) + param_elems),
    )

    out_t = pl.pallas_call(
        inr_kernel,
        out_shape=jax.ShapeDtypeStruct((out_ch, n_pad), jnp.float32),
        grid_spec=pltpu.PrefetchScalarGridSpec(
            num_scalar_prefetch=0,
            grid=grid,
            in_specs=[
                pl.BlockSpec((in_dim, tile_n), lambda i: (0, i)),   # x tile
                pl.BlockSpec((hidden, in_dim), full),               # W1 (w0-folded)
                pl.BlockSpec((hidden, 1), full),                    # b1 (w0-folded)
                pl.BlockSpec((hidden, hidden), full),               # W2 (w0-folded)
                pl.BlockSpec((hidden, 1), full),                    # b2 (w0-folded)
                pl.BlockSpec((out_ch, hidden), full),               # W3
                pl.BlockSpec((out_ch, 1), full),                    # b3 (+0.5 folded)
            ],
            out_specs=pl.BlockSpec((out_ch, tile_n), lambda i: (0, i)),
        ),
        compiler_params=pltpu.CompilerParams(
            dimension_semantics=("parallel",)),      # shards across TCs on v7x
        cost_estimate=cost,
    )(xt, kparams["w1"], kparams["b1"], kparams["w2"], kparams["b2"],
      kparams["w3"], kparams["b3"])

    return out_t[:, :N].T                             # back to (N, out_ch)


def init_params(key, in_dim=2, n_layers=3, up_scale=4, out_channels=1):
    """PyTorch-equivalent params: weights (dim_out, dim_in), biases (dim_out, 1).

    The PyTorch INR never sets is_first=True, so every Siren layer uses
    w_std = sqrt(c/dim_in)/w0 and zero bias; the final nn.Linear uses the
    default uniform(-1/sqrt(fan_in), 1/sqrt(fan_in)) init for weight and bias.
    """
    # TODO(synk): kernel is specialized to the default n_layers=3 (one hidden Siren block).
    assert n_layers == 3, "fused kernel implements the default 3-layer INR"
    hidden = in_dim * up_scale
    k1, k2, k3w, k3b = jax.random.split(key, 4)

    std1 = math.sqrt(C / in_dim) / W0
    std2 = math.sqrt(C / hidden) / W0
    lin_bound = 1.0 / math.sqrt(hidden)   # nn.Linear default init

    return {
        "w1": jax.random.uniform(k1, (hidden, in_dim), jnp.float32, -std1, std1),
        "b1": jnp.zeros((hidden, 1), jnp.float32),
        "w2": jax.random.uniform(k2, (hidden, hidden), jnp.float32, -std2, std2),
        "b2": jnp.zeros((hidden, 1), jnp.float32),
        "w3": jax.random.uniform(k3w, (out_channels, hidden), jnp.float32,
                                 -lin_bound, lin_bound),
        "b3": jax.random.uniform(k3b, (out_channels, 1), jnp.float32,
                                 -lin_bound, lin_bound),
    }


def prepare_params(params):
    """Fold the Siren w0 scale into the hidden layers and the +0.5 into b3
    (output layer weights must NOT be pre-scaled)."""
    return {
        "w1": params["w1"] * W0, "b1": params["b1"] * W0,
        "w2": params["w2"] * W0, "b2": params["b2"] * W0,
        "w3": params["w3"],      "b3": params["b3"] + 0.5,
    }


def inr_ref(x, p):
    """Pure-JAX reference mirroring the PyTorch forward (unfolded params)."""
    h = jnp.sin(W0 * (x @ p["w1"].T + p["b1"].T))
    h = jnp.sin(W0 * (h @ p["w2"].T + p["b2"].T))
    return h @ p["w3"].T + p["b3"].T + 0.5


if __name__ == "__main__":
    key = jax.random.PRNGKey(0)
    kx, kp = jax.random.split(key)

    in_dim, n_layers, up_scale, out_channels = 2, 3, 4, 1
    # Not a multiple of the tile: exercises pl.cdiv grid + zero-padded tail,
    # and gives a 2-step grid (keeps both v7x TensorCores busy).
    N = 3000

    x = jax.random.uniform(kx, (N, in_dim), jnp.float32, -1.0, 1.0)
    params = init_params(kp, in_dim, n_layers, up_scale, out_channels)
    kparams = prepare_params(params)

    out = inr_forward(x, kparams, tile_n=2048)
    out = jax.block_until_ready(out)

    ref = inr_ref(x, params)
    assert out.shape == (N, out_channels), out.shape
    err = jnp.max(jnp.abs(out - ref))
    assert jnp.allclose(out, ref, atol=1e-5, rtol=1e-5), f"mismatch vs reference: {err}"

    print("KERNEL_OK")
</pallas_src>

<mosaic_0001>
module attributes {stable_mosaic.version = 11 : i64} {
  func.func @inr_kernel(%arg0: i32, %arg1: memref<2x2048xf32, #tpu.memory_space<vmem>>, %arg2: memref<8x2xf32, #tpu.memory_space<vmem>>, %arg3: memref<8x1xf32, #tpu.memory_space<vmem>>, %arg4: memref<8x8xf32, #tpu.memory_space<vmem>>, %arg5: memref<8x1xf32, #tpu.memory_space<vmem>>, %arg6: memref<1x8xf32, #tpu.memory_space<vmem>>, %arg7: memref<1x1xf32, #tpu.memory_space<vmem>>, %arg8: memref<1x2048xf32, #tpu.memory_space<vmem>>) attributes {dimension_semantics = [#tpu.dimension_semantics<parallel>], iteration_bounds = array<i64: 2>, scalar_prefetch = 0 : i64, scratch_operands = 0 : i64, tpu.core_type = #tpu.core_type<tc>, window_params = [{transform_indices = @transform_0, window_bounds = array<i64: 2, 2048>}, {pipeline_mode = #tpu.pipeline_mode<synchronous>, transform_indices = @transform_1, window_bounds = array<i64: 8, 2>}, {pipeline_mode = #tpu.pipeline_mode<synchronous>, transform_indices = @transform_2, window_bounds = array<i64: 8, 1>}, {pipeline_mode = #tpu.pipeline_mode<synchronous>, transform_indices = @transform_3, window_bounds = array<i64: 8, 8>}, {pipeline_mode = #tpu.pipeline_mode<synchronous>, transform_indices = @transform_4, window_bounds = array<i64: 8, 1>}, {pipeline_mode = #tpu.pipeline_mode<synchronous>, transform_indices = @transform_5, window_bounds = array<i64: 1, 8>}, {pipeline_mode = #tpu.pipeline_mode<synchronous>, transform_indices = @transform_6, window_bounds = array<i64: 1, 1>}, {transform_indices = @transform_7, window_bounds = array<i64: 1, 2048>}]} {
    %c0 = arith.constant 0 : index
    %c0_0 = arith.constant 0 : index
    %0 = vector.load %arg1[%c0, %c0_0] : memref<2x2048xf32, #tpu.memory_space<vmem>>, vector<2x2048xf32>
    %c0_1 = arith.constant 0 : index
    %c0_2 = arith.constant 0 : index
    %1 = vector.load %arg2[%c0_1, %c0_2] : memref<8x2xf32, #tpu.memory_space<vmem>>, vector<8x2xf32>
    %cst = arith.constant dense<0.000000e+00> : vector<8x2048xf32>
    %2 = tpu.matmul %1, %0, %cst {dimension_numbers = #tpu.dot_dimension_numbers<[1], [0], [0], [1], [0, 0, 1, 1], [], []>} : vector<8x2xf32>, vector<2x2048xf32>, vector<8x2048xf32> -> vector<8x2048xf32>
    %c0_3 = arith.constant 0 : index
    %c0_4 = arith.constant 0 : index
    %3 = vector.load %arg3[%c0_3, %c0_4] : memref<8x1xf32, #tpu.memory_space<vmem>>, vector<8x1xf32>
    %4 = vector.broadcast %3 : vector<8x1xf32> to vector<8x2048xf32>
    %5 = arith.addf %2, %4 : vector<8x2048xf32>
    %6 = math.sin %5 : vector<8x2048xf32>
    %c0_5 = arith.constant 0 : index
    %c0_6 = arith.constant 0 : index
    %7 = vector.load %arg4[%c0_5, %c0_6] : memref<8x8xf32, #tpu.memory_space<vmem>>, vector<8x8xf32>
    %cst_7 = arith.constant dense<0.000000e+00> : vector<8x2048xf32>
    %8 = tpu.matmul %7, %6, %cst_7 {dimension_numbers = #tpu.dot_dimension_numbers<[1], [0], [0], [1], [0, 0, 1, 1], [], []>} : vector<8x8xf32>, vector<8x2048xf32>, vector<8x2048xf32> -> vector<8x2048xf32>
    %c0_8 = arith.constant 0 : index
    %c0_9 = arith.constant 0 : index
    %9 = vector.load %arg5[%c0_8, %c0_9] : memref<8x1xf32, #tpu.memory_space<vmem>>, vector<8x1xf32>
    %10 = vector.broadcast %9 : vector<8x1xf32> to vector<8x2048xf32>
    %11 = arith.addf %8, %10 : vector<8x2048xf32>
    %12 = math.sin %11 : vector<8x2048xf32>
    %c0_10 = arith.constant 0 : index
    %c0_11 = arith.constant 0 : index
    %13 = vector.load %arg6[%c0_10, %c0_11] : memref<1x8xf32, #tpu.memory_space<vmem>>, vector<1x8xf32>
    %cst_12 = arith.constant dense<0.000000e+00> : vector<1x2048xf32>
    %14 = tpu.matmul %13, %12, %cst_12 {dimension_numbers = #tpu.dot_dimension_numbers<[1], [0], [0], [1], [0, 0, 1, 1], [], []>} : vector<1x8xf32>, vector<8x2048xf32>, vector<1x2048xf32> -> vector<1x2048xf32>
    %c0_13 = arith.constant 0 : index
    %c0_14 = arith.constant 0 : index
    %15 = vector.load %arg7[%c0_13, %c0_14] : memref<1x1xf32, #tpu.memory_space<vmem>>, vector<1x1xf32>
    %16 = vector.broadcast %15 : vector<1x1xf32> to vector<1x2048xf32>
    %17 = arith.addf %14, %16 : vector<1x2048xf32>
    %c0_15 = arith.constant 0 : index
    %c0_16 = arith.constant 0 : index
    %18 = vector.load %arg8[%c0_15, %c0_16] : memref<1x2048xf32, #tpu.memory_space<vmem>>, vector<1x2048xf32>
    tpu.vector_store %arg8[%c0_15, %c0_16], %17 {strides = array<i32>} : memref<1x2048xf32, #tpu.memory_space<vmem>>, vector<1x2048xf32>,
    return
  }
  func.func @transform_0(%arg0: i32) -> (i32, i32) {
    %c0_i32 = arith.constant 0 : i32
    %c0_i32_0 = arith.constant 0 : i32
    return %c0_i32, %arg0 : i32, i32
  }
  func.func @transform_1(%arg0: i32) -> (i32, i32) {
    %c0_i32 = arith.constant 0 : i32
    %c0_i32_0 = arith.constant 0 : i32
    %c0_i32_1 = arith.constant 0 : i32
    return %c0_i32, %c0_i32_0 : i32, i32
  }
  func.func @transform_2(%arg0: i32) -> (i32, i32) {
    %c0_i32 = arith.constant 0 : i32
    %c0_i32_0 = arith.constant 0 : i32
    %c0_i32_1 = arith.constant 0 : i32
    return %c0_i32, %c0_i32_0 : i32, i32
  }
  func.func @transform_3(%arg0: i32) -> (i32, i32) {
    %c0_i32 = arith.constant 0 : i32
    %c0_i32_0 = arith.constant 0 : i32
    %c0_i32_1 = arith.constant 0 : i32
    return %c0_i32, %c0_i32_0 : i32, i32
  }
  func.func @transform_4(%arg0: i32) -> (i32, i32) {
    %c0_i32 = arith.constant 0 : i32
    %c0_i32_0 = arith.constant 0 : i32
    %c0_i32_1 = arith.constant 0 : i32
    return %c0_i32, %c0_i32_0 : i32, i32
  }
  func.func @transform_5(%arg0: i32) -> (i32, i32) {
    %c0_i32 = arith.constant 0 : i32
    %c0_i32_0 = arith.constant 0 : i32
    %c0_i32_1 = arith.constant 0 : i32
    return %c0_i32, %c0_i32_0 : i32, i32
  }
  func.func @transform_6(%arg0: i32) -> (i32, i32) {
    %c0_i32 = arith.constant 0 : i32
    %c0_i32_0 = arith.constant 0 : i32
    %c0_i32_1 = arith.constant 0 : i32
    return %c0_i32, %c0_i32_0 : i32, i32
  }
  func.func @transform_7(%arg0: i32) -> (i32, i32) {
    %c0_i32 = arith.constant 0 : i32
    %c0_i32_0 = arith.constant 0 : i32
    return %c0_i32, %arg0 : i32, i32
  }
}

</mosaic_0001>

<llo_original>
// kernel: tpu_custom_call.1
$region0: #{tpu_custom_call.1}
  #allocation0 [shape = 'u32[]', space=smem, size = 0x4, offset = 0x4, fixed_abs, tag = 'smem constant byte address 0x4 - core index']
  #allocation1 [shape = 'u32[144,128]{1,0:T(1,128)}', space=vmem, size = 0x12000, scoped, tag = 'internal scratch']
  #allocation2 [shape = 'f32[1,1]{1,0:T(1,128)S(1)}', space=vmem, size = 0x200, scoped, tag = 'scoped memory for tpu_custom_call.1']
  %s0 = inlined_call_operand.hbm [shape: f32[2,4096], index: 0, kind: input, shape index: {}]
  %s1 = inlined_call_operand.vmem [shape: f32[8,2], index: 1, kind: input, shape index: {}]
  %s2 = inlined_call_operand.vmem [shape: f32[8,1], index: 2, kind: input, shape index: {}]
  %s3 = inlined_call_operand.vmem [shape: f32[8,8], index: 3, kind: input, shape index: {}]
  %s4 = inlined_call_operand.vmem [shape: f32[8,1], index: 4, kind: input, shape index: {}]
  %s5 = inlined_call_operand.vmem [shape: f32[1,8], index: 5, kind: input, shape index: {}]
  %s6 = inlined_call_operand.<no memory space> [shape: f32[1,1], index: 6, kind: input, shape index: {}]
  %s7 = inlined_call_operand.hbm [shape: f32[1,4096], index: 7, kind: output, shape index: {}]
  %s8 = sld [smem:[#allocation0]]
  $region65: #{tpu_custom_call.1} parent=0
    _
  %s10 = ssub.s32 1, %s8
  %s11 = scalar_select 0, %s10, %s8
  %v12 = vstv %s6
  %13 = vst [vmem:[#allocation2] sm:$0x1] %v12
  $region1: #{tpu_custom_call.1} parent=0
    #allocation3 [shape = 'u8[32768]{0}', space=vmem, size = 0x8000, scoped, tag = 'input window, operand 0']
    #allocation4 [shape = 's32[2]{0}', space=sflag, size = 0x8, scoped, tag = 'scoped memory for tpu_custom_call.1']
    #allocation5 [shape = 's32[2]{0}', space=sflag, size = 0x8, scoped, tag = 'scoped memory for tpu_custom_call.1']
    #allocation6 [shape = 'u8[16384]{0}', space=vmem, size = 0x4000, scoped, tag = 'output window, operand 0']
    %14 = vsyncpa [#allocation4], 0
    %s15 = scalar_lea.sflag [#allocation4], 1
    %16 = vsyncpa %s15, 0
    %17 = vsyncpa [#allocation5], 0
    %s18 = scalar_lea.sflag [#allocation5], 1
    %19 = vsyncpa %s18, 0
    loop: start=0, step=1, limit=4
    $region2: #{tpu_custom_call.1} parent=1 // loop_pre_header
      _
    $region3: #{tpu_custom_call.1} parent=1 // loop_header
      %s21 = sphi 0, %s25
      %p22 = scmp.ge.s32.totalorder %s21, 4
      %s31 = sphi 0, %s33
      %s34 = sphi 0, %s31
      %s35 = sphi 0, %s34
      %s51 = sphi 0, %s35
      %s55 = sphi 0, %s55
      %s57 = sphi 0, %s55
      %s58 = sphi 0, %s57
      %s72 = sphi 0, %s58
      %s76 = sphi 0, %s76
      %s78 = sphi 0, %s76
      %s79 = sphi 0, %s78
      %s93 = sphi 0, %s79
      %s97 = sphi 0, %s97
      %s99 = sphi 0, %s97
      %s100 = sphi 0, %s99
      %s114 = sphi 0, %s100
      %s118 = sphi 0, %s118
      %s120 = sphi 0, %s118
      %s121 = sphi 0, %s120
      %s135 = sphi 0, %s121
      %s139 = sphi 0, %s139
      %s141 = sphi 0, %s139
      %s142 = sphi 0, %s141
      %s156 = sphi 0, %s142
      %s160 = sphi 0, %s160
      %s162 = sphi 0, %s160
      %s163 = sphi 0, %s162
      %s177 = sphi 0, %s163
      %s183 = sphi 0, %s185
      %s186 = sphi 0, %s183
      %s187 = sphi 0, %s186
      %s203 = sphi 0, %s187
    $region4: #{tpu_custom_call.1} parent=1 // loop_header_branch
      %24 = sbr.rel (%p22) target = $region8
    $region5: #{tpu_custom_call.1} parent=1 // loop_body
      %s26 = ssub.s32 %s21, 1
      %s27 = ssub.s32 %s21, 2
      %s28 = sadd.s32 %s21, 1
      %s29 = ssub.s32 %s21, %s28
      %p30 = scmp.eq.s32.totalorder %s29, 0
      %s32 = sadd.s32 %s31, 1
      %s33 = scalar_select %p30, %s31, %s32
      %p36 = pneg %p30
      %p37 = scmp.eq.s32.totalorder %s21, 1
      %p38 = por %p36, %p37
      %p39 = scmp.ne.s32.totalorder %s31, %s34
      %p40 = scmp.eq.s32.totalorder %s21, 0
      %p41 = por %p39, %p40
      %p42 = scmp.ne.s32.totalorder %s31, %s34
      %p43 = scmp.eq.s32.totalorder %s26, 1
      %p44 = por %p42, %p43
      %p45 = scmp.ne.s32.totalorder %s34, %s35
      %p46 = scmp.eq.s32.totalorder %s26, 0
      %p47 = por %p45, %p46
      %p48 = scmp.ne.s32.totalorder %s34, %s35
      %p49 = scmp.eq.s32.totalorder %s27, 1
      %p50 = por %p48, %p49
      %p52 = scmp.ne.s32.totalorder %s35, %s51
      %p53 = scmp.eq.s32.totalorder %s27, 0
      %p54 = por %p52, %p53
      %s56 = sadd.s32 %s55, 1
      %p59 = scmp.eq.s32.totalorder %s21, 1
      %p60 = scmp.ne.s32.totalorder %s55, %s57
      %p61 = scmp.eq.s32.totalorder %s21, 0
      %p62 = por %p60, %p61
      %p63 = scmp.ne.s32.totalorder %s55, %s57
      %p64 = scmp.eq.s32.totalorder %s26, 1
      %p65 = por %p63, %p64
      %p66 = scmp.ne.s32.totalorder %s57, %s58
      %p67 = scmp.eq.s32.totalorder %s26, 0
      %p68 = por %p66, %p67
      %p69 = scmp.ne.s32.totalorder %s57, %s58
      %p70 = scmp.eq.s32.totalorder %s27, 1
      %p71 = por %p69, %p70
      %p73 = scmp.ne.s32.totalorder %s58, %s72
      %p74 = scmp.eq.s32.totalorder %s27, 0
      %p75 = por %p73, %p74
      %s77 = sadd.s32 %s76, 1
      %p80 = scmp.eq.s32.totalorder %s21, 1
      %p81 = scmp.ne.s32.totalorder %s76, %s78
      %p82 = scmp.eq.s32.totalorder %s21, 0
      %p83 = por %p81, %p82
      %p84 = scmp.ne.s32.totalorder %s76, %s78
      %p85 = scmp.eq.s32.totalorder %s26, 1
      %p86 = por %p84, %p85
      %p87 = scmp.ne.s32.totalorder %s78, %s79
      %p88 = scmp.eq.s32.totalorder %s26, 0
      %p89 = por %p87, %p88
      %p90 = scmp.ne.s32.totalorder %s78, %s79
      %p91 = scmp.eq.s32.totalorder %s27, 1
      %p92 = por %p90, %p91
      %p94 = scmp.ne.s32.totalorder %s79, %s93
      %p95 = scmp.eq.s32.totalorder %s27, 0
      %p96 = por %p94, %p95
      %s98 = sadd.s32 %s97, 1
      %p101 = scmp.eq.s32.totalorder %s21, 1
      %p102 = scmp.ne.s32.totalorder %s97, %s99
      %p103 = scmp.eq.s32.totalorder %s21, 0
      %p104 = por %p102, %p103
      %p105 = scmp.ne.s32.totalorder %s97, %s99
      %p106 = scmp.eq.s32.totalorder %s26, 1
      %p107 = por %p105, %p106
      %p108 = scmp.ne.s32.totalorder %s99, %s100
      %p109 = scmp.eq.s32.totalorder %s26, 0
      %p110 = por %p108, %p109
      %p111 = scmp.ne.s32.totalorder %s99, %s100
      %p112 = scmp.eq.s32.totalorder %s27, 1
      %p113 = por %p111, %p112
      %p115 = scmp.ne.s32.totalorder %s100, %s114
      %p116 = scmp.eq.s32.totalorder %s27, 0
      %p117 = por %p115, %p116
      %s119 = sadd.s32 %s118, 1
      %p122 = scmp.eq.s32.totalorder %s21, 1
      %p123 = scmp.ne.s32.totalorder %s118, %s120
      %p124 = scmp.eq.s32.totalorder %s21, 0
      %p125 = por %p123, %p124
      %p126 = scmp.ne.s32.totalorder %s118, %s120
      %p127 = scmp.eq.s32.totalorder %s26, 1
      %p128 = por %p126, %p127
      %p129 = scmp.ne.s32.totalorder %s120, %s121
      %p130 = scmp.eq.s32.totalorder %s26, 0
      %p131 = por %p129, %p130
      %p132 = scmp.ne.s32.totalorder %s120, %s121
      %p133 = scmp.eq.s32.totalorder %s27, 1
      %p134 = por %p132, %p133
      %p136 = scmp.ne.s32.totalorder %s121, %s135
      %p137 = scmp.eq.s32.totalorder %s27, 0
      %p138 = por %p136, %p137
      %s140 = sadd.s32 %s139, 1
      %p143 = scmp.eq.s32.totalorder %s21, 1
      %p144 = scmp.ne.s32.totalorder %s139, %s141
      %p145 = scmp.eq.s32.totalorder %s21, 0
      %p146 = por %p144, %p145
      %p147 = scmp.ne.s32.totalorder %s139, %s141
      %p148 = scmp.eq.s32.totalorder %s26, 1
      %p149 = por %p147, %p148
      %p150 = scmp.ne.s32.totalorder %s141, %s142
      %p151 = scmp.eq.s32.totalorder %s26, 0
      %p152 = por %p150, %p151
      %p153 = scmp.ne.s32.totalorder %s141, %s142
      %p154 = scmp.eq.s32.totalorder %s27, 1
      %p155 = por %p153, %p154
      %p157 = scmp.ne.s32.totalorder %s142, %s156
      %p158 = scmp.eq.s32.totalorder %s27, 0
      %p159 = por %p157, %p158
      %s161 = sadd.s32 %s160, 1
      %p164 = scmp.eq.s32.totalorder %s21, 1
      %p165 = scmp.ne.s32.totalorder %s160, %s162
      %p166 = scmp.eq.s32.totalorder %s21, 0
      %p167 = por %p165, %p166
      %p168 = scmp.ne.s32.totalorder %s160, %s162
      %p169 = scmp.eq.s32.totalorder %s26, 1
      %p170 = por %p168, %p169
      %p171 = scmp.ne.s32.totalorder %s162, %s163
      %p172 = scmp.eq.s32.totalorder %s26, 0
      %p173 = por %p171, %p172
      %p174 = scmp.ne.s32.totalorder %s162, %s163
      %p175 = scmp.eq.s32.totalorder %s27, 1
      %p176 = por %p174, %p175
      %p178 = scmp.ne.s32.totalorder %s163, %s177
      %p179 = scmp.eq.s32.totalorder %s27, 0
      %p180 = por %p178, %p179
      %s181 = ssub.s32 %s21, %s28
      %p182 = scmp.eq.s32.totalorder %s181, 0
      %s184 = sadd.s32 %s183, 1
      %s185 = scalar_select %p182, %s183, %s184
      %p188 = pneg %p182
      %p189 = scmp.eq.s32.totalorder %s21, 1
      %p190 = por %p188, %p189
      %p191 = scmp.ne.s32.totalorder %s183, %s186
      %p192 = scmp.eq.s32.totalorder %s21, 0
      %p193 = por %p191, %p192
      %p194 = scmp.ne.s32.totalorder %s183, %s186
      %p195 = scmp.eq.s32.totalorder %s26, 1
      %p196 = por %p194, %p195
      %p197 = scmp.ne.s32.totalorder %s186, %s187
      %p198 = scmp.eq.s32.totalorder %s26, 0
      %p199 = por %p197, %p198
      %p200 = scmp.ne.s32.totalorder %s186, %s187
      %p201 = scmp.eq.s32.totalorder %s27, 1
      %p202 = por %p200, %p201
      %p204 = scmp.ne.s32.totalorder %s187, %s203
      %p205 = scmp.eq.s32.totalorder %s27, 0
      %p206 = por %p204, %p205
      %p207 = scmp.le.s32.totalorder 1, %s21
      %p208 = scmp.lt.s32.totalorder %s21, 3
      %p209 = pnand %p207, %p208
      %p210 = pneg %p209
      // Predicated region
      $region9: #{tpu_custom_call.1} parent=5 // pred_check
        _
      $region10: #{tpu_custom_call.1} parent=5 // pred_check_branch
        %212 = sbr.rel (%p209) target = $region12
      $region11: #{tpu_custom_call.1} parent=5 // pred_region
        %s213 = ssub.s32 %s21, 1
        // Predicated region
        $region13: #{tpu_custom_call.1} parent=11 // pred_check
          %p214 = pneg %p68
        $region14: #{tpu_custom_call.1} parent=11 // pred_check_branch
          %216 = sbr.rel (%p214) target = $region16
        $region15: #{tpu_custom_call.1} parent=11 // pred_region
          _
        $region16: #{tpu_custom_call.1} parent=11 // pred_fallthru
          _
        // Predicated region
        $region17: #{tpu_custom_call.1} parent=11 // pred_check
          %p217 = pneg %p89
        $region18: #{tpu_custom_call.1} parent=11 // pred_check_branch
          %219 = sbr.rel (%p217) target = $region20
        $region19: #{tpu_custom_call.1} parent=11 // pred_region
          _
        $region20: #{tpu_custom_call.1} parent=11 // pred_fallthru
          _
        // Predicated region
        $region21: #{tpu_custom_call.1} parent=11 // pred_check
          %p220 = pneg %p110
        $region22: #{tpu_custom_call.1} parent=11 // pred_check_branch
          %222 = sbr.rel (%p220) target = $region24
        $region23: #{tpu_custom_call.1} parent=11 // pred_region
          _
        $region24: #{tpu_custom_call.1} parent=11 // pred_fallthru
          _
        // Predicated region
        $region25: #{tpu_custom_call.1} parent=11 // pred_check
          %p223 = pneg %p131
        $region26: #{tpu_custom_call.1} parent=11 // pred_check_branch
          %225 = sbr.rel (%p223) target = $region28
        $region27: #{tpu_custom_call.1} parent=11 // pred_region
          _
        $region28: #{tpu_custom_call.1} parent=11 // pred_fallthru
          _
        // Predicated region
        $region29: #{tpu_custom_call.1} parent=11 // pred_check
          %p226 = pneg %p152
        $region30: #{tpu_custom_call.1} parent=11 // pred_check_branch
          %228 = sbr.rel (%p226) target = $region32
        $region31: #{tpu_custom_call.1} parent=11 // pred_region
          _
        $region32: #{tpu_custom_call.1} parent=11 // pred_fallthru
          _
        // Predicated region
        $region33: #{tpu_custom_call.1} parent=11 // pred_check
          %p229 = pneg %p173
        $region34: #{tpu_custom_call.1} parent=11 // pred_check_branch
          %231 = sbr.rel (%p229) target = $region36
        $region35: #{tpu_custom_call.1} parent=11 // pred_region
          _
        $region36: #{tpu_custom_call.1} parent=11 // pred_fallthru
          _
      $region12: #{tpu_custom_call.1} parent=5 // pred_fallthru
        _
      %p232 = scmp.lt.s32.totalorder %s21, 2
      // Predicated region
      $region37: #{tpu_custom_call.1} parent=5 // pred_check
        %p233 = pneg %p232
      $region38: #{tpu_custom_call.1} parent=5 // pred_check_branch
        %235 = sbr.rel (%p233) target = $region40
      $region39: #{tpu_custom_call.1} parent=5 // pred_region
        // Predicated region
        $region41: #{tpu_custom_call.1} parent=39 // pred_check
          %p236 = pneg %p41
        $region42: #{tpu_custom_call.1} parent=39 // pred_check_branch
          %238 = sbr.rel (%p236) target = $region44
        $region43: #{tpu_custom_call.1} parent=39 // pred_region
          %s239 = sand.u32 %s31, 1
          %s240 = scalar_lea.sflag [#allocation4], %s239
          %s241 = sand.u32 %s31, 1
          %s242 = smul.addr %s241, 32
          %s243 = scalar_lea.vmem [#allocation3], %s242
          %s244 = smul.u32 16, %s21
          %s246 = ssub.s32 512, 512
          %247 = vsyncadd %s240, %s246
          %s248 = smul.addr %s244, 32
          %s249 = scalar_lea.hbm %s0, %s248
          %s251 = sshll.u32 %s243, 4
          %s252 = int_to_ptr.vmem [resolvable:$true] %s251
          %254 = dma.hbm_to_vmem [thread:$0]  %s249, 512, %s252, %s240
        $region44: #{tpu_custom_call.1} parent=39 // pred_fallthru
          _
      $region40: #{tpu_custom_call.1} parent=5 // pred_fallthru
        _
      %p255 = scmp.le.s32.totalorder 1, %s21
      %p256 = scmp.lt.s32.totalorder %s21, 3
      %p257 = pnand %p255, %p256
      %p258 = pneg %p257
      // Predicated region
      $region45: #{tpu_custom_call.1} parent=5 // pred_check
        _
      $region46: #{tpu_custom_call.1} parent=5 // pred_check_branch
        %260 = sbr.rel (%p257) target = $region48
      $region47: #{tpu_custom_call.1} parent=5 // pred_region
        %s261 = ssub.s32 %s21, 1
        %s262 = sand.u32 %s34, 1
        %s263 = scalar_lea.sflag [#allocation4], %s262
        %s264 = sand.u32 %s34, 1
        %s265 = smul.addr %s264, 32
        %s266 = scalar_lea.vmem [#allocation3], %s265
        // Predicated region
        $region49: #{tpu_custom_call.1} parent=47 // pred_check
          %p267 = pneg %p47
        $region50: #{tpu_custom_call.1} parent=47 // pred_check_branch
          %269 = sbr.rel (%p267) target = $region52
        $region51: #{tpu_custom_call.1} parent=47 // pred_region
          %270 = dma.done %s263, 512
        $region52: #{tpu_custom_call.1} parent=47 // pred_fallthru
          _
        %s271 = sand.u32 %s34, 1
        %s272 = scalar_lea.sflag [#allocation4], %s271
        %s273 = sand.u32 %s34, 1
        %s274 = smul.addr %s273, 32
        %s275 = scalar_lea.vmem [#allocation3], %s274
        %p276 = pneg %p47
        %p277 = pneg %p44
        %p278 = pneg %p68
        %p279 = pneg %p65
        %p280 = pneg %p89
        %p281 = pneg %p86
        %p282 = pneg %p110
        %p283 = pneg %p107
        %p284 = pneg %p131
        %p285 = pneg %p128
        %p286 = pneg %p152
        %p287 = pneg %p149
        %p288 = pneg %p173
        %p289 = pneg %p170
        %p290 = pneg %p199
        %p291 = pneg %p196
        %s292 = sand.u32 %s186, 1
        %s293 = scalar_lea.sflag [#allocation5], %s292
        %s294 = sand.u32 %s186, 1
        %s295 = smul.addr %s294, 16
        %s296 = scalar_lea.vmem [#allocation6], %s295
        %s297 = smul.u32 16, %s26
        %s298 = smul.u32 16, %s26
        %v299 = vld [vmem:[%s266] sm:$0xff]
        %v300 = vld [vmem:[%s266 + $0x8] sm:$0xff]
        %v301 = vld [vmem:[%s266 + $0x10] sm:$0xff]
        %v302 = vld [vmem:[%s266 + $0x18] sm:$0xff]
        %v303 = vld [vmem:[%s1] sm:$0xff]
        %v304 = vld [vmem:[%s2] sm:$0xff]
        %306 = vset.pattern.permute.xlu0 0
        %307 = vperm.xlu0 %306, %v304
        %v308 = vpop.permute.xlu0 %307
        %v314 = vcombine.high %v299, %v299
        %v316 = vunpack.c.l.s4 1983009808
        %v317 = vunpack.c.0.s8 %v316
        %v318 = vlaneseq
        %v319 = vshrl.u32 %v318, 7
        %v320 = vsub.s32 %v317, %v319
        %v321 = vrot.slane %v299, %v320
        %v323 = vunpack.c.l.s4 1983009808
        %v324 = vunpack.c.0.s8 %v323
        %v325 = vlaneseq
        %v326 = vshrl.u32 %v325, 7
        %v327 = vsub.s32 %v324, %v326
        %v328 = vrot.slane %v314, %v327
        %v329 = vcombine.high %v321, %v321
        %v330 = vcombine.high %v328, %v328
        %v331 = vcombine.high %v300, %v300
        %v333 = vunpack.c.l.s4 1983009808
        %v334 = vunpack.c.0.s8 %v333
        %v335 = vlaneseq
        %v336 = vshrl.u32 %v335, 7
        %v337 = vsub.s32 %v334, %v336
        %v338 = vrot.slane %v300, %v337
        %v340 = vunpack.c.l.s4 1983009808
        %v341 = vunpack.c.0.s8 %v340
        %v342 = vlaneseq
        %v343 = vshrl.u32 %v342, 7
        %v344 = vsub.s32 %v341, %v343
        %v345 = vrot.slane %v331, %v344
        %v346 = vcombine.high %v338, %v338
        %v347 = vcombine.high %v345, %v345
        %v348 = vcombine.high %v301, %v301
        %v350 = vunpack.c.l.s4 1983009808
        %v351 = vunpack.c.0.s8 %v350
        %v352 = vlaneseq
        %v353 = vshrl.u32 %v352, 7
        %v354 = vsub.s32 %v351, %v353
        %v355 = vrot.slane %v301, %v354
        %v357 = vunpack.c.l.s4 1983009808
        %v358 = vunpack.c.0.s8 %v357
        %v359 = vlaneseq
        %v360 = vshrl.u32 %v359, 7
        %v361 = vsub.s32 %v358, %v360
        %v362 = vrot.slane %v348, %v361
        %v363 = vcombine.high %v355, %v355
        %v364 = vcombine.high %v362, %v362
        %v365 = vcombine.high %v302, %v302
        %v367 = vunpack.c.l.s4 1983009808
        %v368 = vunpack.c.0.s8 %v367
        %v369 = vlaneseq
        %v370 = vshrl.u32 %v369, 7
        %v371 = vsub.s32 %v368, %v370
        %v372 = vrot.slane %v302, %v371
        %v374 = vunpack.c.l.s4 1983009808
        %v375 = vunpack.c.0.s8 %v374
        %v376 = vlaneseq
        %v377 = vshrl.u32 %v376, 7
        %v378 = vsub.s32 %v375, %v377
        %v379 = vrot.slane %v365, %v378
        %v380 = vcombine.high %v372, %v372
        %v381 = vcombine.high %v379, %v379
        %vm382 = vcmask 15360
        %v384 = vsel %vm382, %v303, 0
        %vm386 = vcmask 1041408
        %v387 = vsel %vm386, %v321, 0
        %v389 = vsel %vm386, %v329, 0
        %v391 = vsel %vm386, %v328, 0
        %v393 = vsel %vm386, %v330, 0
        %v395 = vsel %vm386, %v338, 0
        %v397 = vsel %vm386, %v346, 0
        %v399 = vsel %vm386, %v345, 0
        %v401 = vsel %vm386, %v347, 0
        %v403 = vsel %vm386, %v355, 0
        %v405 = vsel %vm386, %v363, 0
        %v407 = vsel %vm386, %v362, 0
        %v409 = vsel %vm386, %v364, 0
        %v411 = vsel %vm386, %v372, 0
        %v413 = vsel %vm386, %v380, 0
        %v415 = vsel %vm386, %v379, 0
        %v417 = vsel %vm386, %v381, 0
        %419 = vmatprep.subr.mxu0 0.0
        %420 = vmatpush1.msra.mxu0 0.0
        %421 = vmatprep.subr.mxu0 0.0
        %422 = vmatpush1.msra.mxu0 0.0
        %423 = vmatprep.subr.mxu0 0.0
        %424 = vmatpush1.msra.mxu0 0.0
        %425 = vmatprep.subr.mxu0 0.0
        %426 = vmatpush1.msra.mxu0 0.0
        %427 = vmatprep.subr.mxu0 0.0
        %428 = vmatpush1.msra.mxu0 0.0
        %429 = vmatprep.subr.mxu0 0.0
        %430 = vmatpush1.msra.mxu0 0.0
        %431 = vmatprep.subr.mxu0 0.0
        %432 = vmatpush1.msra.mxu0 0.0
        %433 = vmatprep.subr.mxu0 0.0
        %434 = vmatpush1.msra.mxu0 0.0
        %435 = vmatprep.subr.mxu0 0.0
        %436 = vmatpush1.msra.mxu0 0.0
        %437 = vmatprep.subr.mxu0 0.0
        %438 = vmatpush1.msra.mxu0 0.0
        %439 = vmatprep.subr.mxu0 0.0
        %440 = vmatpush1.msra.mxu0 0.0
        %441 = vmatprep.subr.mxu0 0.0
        %442 = vmatpush1.msra.mxu0 0.0
        %443 = vmatprep.subr.mxu0 0.0
        %444 = vmatpush1.msra.mxu0 0.0
        %445 = vmatprep.subr.mxu0 0.0
        %446 = vmatpush1.msra.mxu0 0.0
        %447 = vmatprep.subr.mxu0 0.0
        %448 = vmatpush1.msra.mxu0 0.0
        %449 = vmatprep.subr.mxu0 %v389
        %450 = vmatpush1.msra.mxu0 %v387
        %451 = vmatprep.subr.mxu0 0.0
        %452 = vmatpush2.msra.mxu0 0.0
        %453 = vmatprep.subr.mxu0 0.0
        %454 = vmatpush2.msra.mxu0 0.0
        %455 = vmatprep.subr.mxu0 0.0
        %456 = vmatpush2.msra.mxu0 0.0
        %457 = vmatprep.subr.mxu0 0.0
        %458 = vmatpush2.msra.mxu0 0.0
        %459 = vmatprep.subr.mxu0 0.0
        %460 = vmatpush2.msra.mxu0 0.0
        %461 = vmatprep.subr.mxu0 0.0
        %462 = vmatpush2.msra.mxu0 0.0
        %463 = vmatprep.subr.mxu0 0.0
        %464 = vmatpush2.msra.mxu0 0.0
        %465 = vmatprep.subr.mxu0 0.0
        %466 = vmatpush2.msra.mxu0 0.0
        %467 = vmatprep.subr.mxu0 0.0
        %468 = vmatpush2.msra.mxu0 0.0
        %469 = vmatprep.subr.mxu0 0.0
        %470 = vmatpush2.msra.mxu0 0.0
        %471 = vmatprep.subr.mxu0 0.0
        %472 = vmatpush2.msra.mxu0 0.0
        %473 = vmatprep.subr.mxu0 0.0
        %474 = vmatpush2.msra.mxu0 0.0
        %475 = vmatprep.subr.mxu0 0.0
        %476 = vmatpush2.msra.mxu0 0.0
        %477 = vmatprep.subr.mxu0 0.0
        %478 = vmatpush2.msra.mxu0 0.0
        %479 = vmatprep.subr.mxu0 0.0
        %480 = vmatpush2.msra.mxu0 0.0
        %481 = vmatprep.subr.mxu0 0.0
        %482 = vmatpush2.msra.mxu0 0.0
        %483 = vmatprep.mubr.f32.mxu0 0.0
        %484 = vmatmul.mubr.f32.gmra.mxu0 %v384
        %v485 = vpop.f32.mrf.mxu0
        %v486 = vadd.f32 %v308, %v485
        %v487 = vpop.f32.mrf.mxu0
        %v488 = vadd.f32 %v308, %v487
        %489 = vdwg.mxu0
        %490 = vmatprep.subr.mxu0 0.0
        %491 = vmatpush1.msra.mxu0 0.0
        %492 = vmatprep.subr.mxu0 0.0
        %493 = vmatpush1.msra.mxu0 0.0
        %494 = vmatprep.subr.mxu0 0.0
        %495 = vmatpush1.msra.mxu0 0.0
        %496 = vmatprep.subr.mxu0 0.0
        %497 = vmatpush1.msra.mxu0 0.0
        %498 = vmatprep.subr.mxu0 0.0
        %499 = vmatpush1.msra.mxu0 0.0
        %500 = vmatprep.subr.mxu0 0.0
        %501 = vmatpush1.msra.mxu0 0.0
        %502 = vmatprep.subr.mxu0 0.0
        %503 = vmatpush1.msra.mxu0 0.0
        %504 = vmatprep.subr.mxu0 0.0
        %505 = vmatpush1.msra.mxu0 0.0
        %506 = vmatprep.subr.mxu0 0.0
        %507 = vmatpush1.msra.mxu0 0.0
        %508 = vmatprep.subr.mxu0 0.0
        %509 = vmatpush1.msra.mxu0 0.0
        %510 = vmatprep.subr.mxu0 0.0
        %511 = vmatpush1.msra.mxu0 0.0
        %512 = vmatprep.subr.mxu0 0.0
        %513 = vmatpush1.msra.mxu0 0.0
        %514 = vmatprep.subr.mxu0 0.0
        %515 = vmatpush1.msra.mxu0 0.0
        %516 = vmatprep.subr.mxu0 0.0
        %517 = vmatpush1.msra.mxu0 0.0
        %518 = vmatprep.subr.mxu0 0.0
        %519 = vmatpush1.msra.mxu0 0.0
        %520 = vmatprep.subr.mxu0 %v393
        %521 = vmatpush1.msra.mxu0 %v391
        %522 = vmatprep.subr.mxu0 0.0
        %523 = vmatpush2.msra.mxu0 0.0
        %524 = vmatprep.subr.mxu0 0.0
        %525 = vmatpush2.msra.mxu0 0.0
        %526 = vmatprep.subr.mxu0 0.0
        %527 = vmatpush2.msra.mxu0 0.0
        %528 = vmatprep.subr.mxu0 0.0
        %529 = vmatpush2.msra.mxu0 0.0
        %530 = vmatprep.subr.mxu0 0.0
        %531 = vmatpush2.msra.mxu0 0.0
        %532 = vmatprep.subr.mxu0 0.0
        %533 = vmatpush2.msra.mxu0 0.0
        %534 = vmatprep.subr.mxu0 0.0
        %535 = vmatpush2.msra.mxu0 0.0
        %536 = vmatprep.subr.mxu0 0.0
        %537 = vmatpush2.msra.mxu0 0.0
        %538 = vmatprep.subr.mxu0 0.0
        %539 = vmatpush2.msra.mxu0 0.0
        %540 = vmatprep.subr.mxu0 0.0
        %541 = vmatpush2.msra.mxu0 0.0
        %542 = vmatprep.subr.mxu0 0.0
        %543 = vmatpush2.msra.mxu0 0.0
        %544 = vmatprep.subr.mxu0 0.0
        %545 = vmatpush2.msra.mxu0 0.0
        %546 = vmatprep.subr.mxu0 0.0
        %547 = vmatpush2.msra.mxu0 0.0
        %548 = vmatprep.subr.mxu0 0.0
        %549 = vmatpush2.msra.mxu0 0.0
        %550 = vmatprep.subr.mxu0 0.0
        %551 = vmatpush2.msra.mxu0 0.0
        %552 = vmatprep.subr.mxu0 0.0
        %553 = vmatpush2.msra.mxu0 0.0
        %554 = vmatprep.mubr.f32.mxu0 0.0
        %555 = vmatmul.mubr.f32.gmra.mxu0 %v384
        %v556 = vpop.f32.mrf.mxu0
        %v557 = vadd.f32 %v308, %v556
        %v558 = vpop.f32.mrf.mxu0
        %v559 = vadd.f32 %v308, %v558
        %560 = vdwg.mxu0
        %561 = vmatprep.subr.mxu0 0.0
        %562 = vmatpush1.msra.mxu0 0.0
        %563 = vmatprep.subr.mxu0 0.0
        %564 = vmatpush1.msra.mxu0 0.0
        %565 = vmatprep.subr.mxu0 0.0
        %566 = vmatpush1.msra.mxu0 0.0
        %567 = vmatprep.subr.mxu0 0.0
        %568 = vmatpush1.msra.mxu0 0.0
        %569 = vmatprep.subr.mxu0 0.0
        %570 = vmatpush1.msra.mxu0 0.0
        %571 = vmatprep.subr.mxu0 0.0
        %572 = vmatpush1.msra.mxu0 0.0
        %573 = vmatprep.subr.mxu0 0.0
        %574 = vmatpush1.msra.mxu0 0.0
        %575 = vmatprep.subr.mxu0 0.0
        %576 = vmatpush1.msra.mxu0 0.0
        %577 = vmatprep.subr.mxu0 0.0
        %578 = vmatpush1.msra.mxu0 0.0
        %579 = vmatprep.subr.mxu0 0.0
        %580 = vmatpush1.msra.mxu0 0.0
        %581 = vmatprep.subr.mxu0 0.0
        %582 = vmatpush1.msra.mxu0 0.0
        %583 = vmatprep.subr.mxu0 0.0
        %584 = vmatpush1.msra.mxu0 0.0
        %585 = vmatprep.subr.mxu0 0.0
        %586 = vmatpush1.msra.mxu0 0.0
        %587 = vmatprep.subr.mxu0 0.0
        %588 = vmatpush1.msra.mxu0 0.0
        %589 = vmatprep.subr.mxu0 0.0
        %590 = vmatpush1.msra.mxu0 0.0
        %591 = vmatprep.subr.mxu0 %v397
        %592 = vmatpush1.msra.mxu0 %v395
        %593 = vmatprep.subr.mxu0 0.0
        %594 = vmatpush2.msra.mxu0 0.0
        %595 = vmatprep.subr.mxu0 0.0
        %596 = vmatpush2.msra.mxu0 0.0
        %597 = vmatprep.subr.mxu0 0.0
        %598 = vmatpush2.msra.mxu0 0.0
        %599 = vmatprep.subr.mxu0 0.0
        %600 = vmatpush2.msra.mxu0 0.0
        %601 = vmatprep.subr.mxu0 0.0
        %602 = vmatpush2.msra.mxu0 0.0
        %603 = vmatprep.subr.mxu0 0.0
        %604 = vmatpush2.msra.mxu0 0.0
        %605 = vmatprep.subr.mxu0 0.0
        %606 = vmatpush2.msra.mxu0 0.0
        %607 = vmatprep.subr.mxu0 0.0
        %608 = vmatpush2.msra.mxu0 0.0
        %609 = vmatprep.subr.mxu0 0.0
        %610 = vmatpush2.msra.mxu0 0.0
        %611 = vmatprep.subr.mxu0 0.0
        %612 = vmatpush2.msra.mxu0 0.0
        %613 = vmatprep.subr.mxu0 0.0
        %614 = vmatpush2.msra.mxu0 0.0
        %615 = vmatprep.subr.mxu0 0.0
        %616 = vmatpush2.msra.mxu0 0.0
        %617 = vmatprep.subr.mxu0 0.0
        %618 = vmatpush2.msra.mxu0 0.0
        %619 = vmatprep.subr.mxu0 0.0
        %620 = vmatpush2.msra.mxu0 0.0
        %621 = vmatprep.subr.mxu0 0.0
        %622 = vmatpush2.msra.mxu0 0.0
        %623 = vmatprep.subr.mxu0 0.0
        %624 = vmatpush2.msra.mxu0 0.0
        %625 = vmatprep.mubr.f32.mxu0 0.0
        %626 = vmatmul.mubr.f32.gmra.mxu0 %v384
        %v627 = vpop.f32.mrf.mxu0
        %v628 = vadd.f32 %v308, %v627
        %v629 = vpop.f32.mrf.mxu0
        %v630 = vadd.f32 %v308, %v629
        %631 = vdwg.mxu0
        %632 = vmatprep.subr.mxu0 0.0
        %633 = vmatpush1.msra.mxu0 0.0
        %634 = vmatprep.subr.mxu0 0.0
        %635 = vmatpush1.msra.mxu0 0.0
        %636 = vmatprep.subr.mxu0 0.0
        %637 = vmatpush1.msra.mxu0 0.0
        %638 = vmatprep.subr.mxu0 0.0
        %639 = vmatpush1.msra.mxu0 0.0
        %640 = vmatprep.subr.mxu0 0.0
        %641 = vmatpush1.msra.mxu0 0.0
        %642 = vmatprep.subr.mxu0 0.0
        %643 = vmatpush1.msra.mxu0 0.0
        %644 = vmatprep.subr.mxu0 0.0
        %645 = vmatpush1.msra.mxu0 0.0
        %646 = vmatprep.subr.mxu0 0.0
        %647 = vmatpush1.msra.mxu0 0.0
        %648 = vmatprep.subr.mxu0 0.0
        %649 = vmatpush1.msra.mxu0 0.0
        %650 = vmatprep.subr.mxu0 0.0
        %651 = vmatpush1.msra.mxu0 0.0
        %652 = vmatprep.subr.mxu0 0.0
        %653 = vmatpush1.msra.mxu0 0.0
        %654 = vmatprep.subr.mxu0 0.0
        %655 = vmatpush1.msra.mxu0 0.0
        %656 = vmatprep.subr.mxu0 0.0
        %657 = vmatpush1.msra.mxu0 0.0
        %658 = vmatprep.subr.mxu0 0.0
        %659 = vmatpush1.msra.mxu0 0.0
        %660 = vmatprep.subr.mxu0 0.0
        %661 = vmatpush1.msra.mxu0 0.0
        %662 = vmatprep.subr.mxu0 %v401
        %663 = vmatpush1.msra.mxu0 %v399
        %664 = vmatprep.subr.mxu0 0.0
        %665 = vmatpush2.msra.mxu0 0.0
        %666 = vmatprep.subr.mxu0 0.0
        %667 = vmatpush2.msra.mxu0 0.0
        %668 = vmatprep.subr.mxu0 0.0
        %669 = vmatpush2.msra.mxu0 0.0
        %670 = vmatprep.subr.mxu0 0.0
        %671 = vmatpush2.msra.mxu0 0.0
        %672 = vmatprep.subr.mxu0 0.0
        %673 = vmatpush2.msra.mxu0 0.0
        %674 = vmatprep.subr.mxu0 0.0
        %675 = vmatpush2.msra.mxu0 0.0
        %676 = vmatprep.subr.mxu0 0.0
        %677 = vmatpush2.msra.mxu0 0.0
        %678 = vmatprep.subr.mxu0 0.0
        %679 = vmatpush2.msra.mxu0 0.0
        %680 = vmatprep.subr.mxu0 0.0
        %681 = vmatpush2.msra.mxu0 0.0
        %682 = vmatprep.subr.mxu0 0.0
        %683 = vmatpush2.msra.mxu0 0.0
        %684 = vmatprep.subr.mxu0 0.0
        %685 = vmatpush2.msra.mxu0 0.0
        %686 = vmatprep.subr.mxu0 0.0
        %687 = vmatpush2.msra.mxu0 0.0
        %688 = vmatprep.subr.mxu0 0.0
        %689 = vmatpush2.msra.mxu0 0.0
        %690 = vmatprep.subr.mxu0 0.0
        %691 = vmatpush2.msra.mxu0 0.0
        %692 = vmatprep.subr.mxu0 0.0
        %693 = vmatpush2.msra.mxu0 0.0
        %694 = vmatprep.subr.mxu0 0.0
        %695 = vmatpush2.msra.mxu0 0.0
        %696 = vmatprep.mubr.f32.mxu0 0.0
        %697 = vmatmul.mubr.f32.gmra.mxu0 %v384
        %v698 = vpop.f32.mrf.mxu0
        %v699 = vadd.f32 %v308, %v698
        %v700 = vpop.f32.mrf.mxu0
        %v701 = vadd.f32 %v308, %v700
        %702 = vdwg.mxu0
        %703 = vmatprep.subr.mxu0 0.0
        %704 = vmatpush1.msra.mxu0 0.0
        %705 = vmatprep.subr.mxu0 0.0
        %706 = vmatpush1.msra.mxu0 0.0
        %707 = vmatprep.subr.mxu0 0.0
        %708 = vmatpush1.msra.mxu0 0.0
        %709 = vmatprep.subr.mxu0 0.0
        %710 = vmatpush1.msra.mxu0 0.0
        %711 = vmatprep.subr.mxu0 0.0
        %712 = vmatpush1.msra.mxu0 0.0
        %713 = vmatprep.subr.mxu0 0.0
        %714 = vmatpush1.msra.mxu0 0.0
        %715 = vmatprep.subr.mxu0 0.0
        %716 = vmatpush1.msra.mxu0 0.0
        %717 = vmatprep.subr.mxu0 0.0
        %718 = vmatpush1.msra.mxu0 0.0
        %719 = vmatprep.subr.mxu0 0.0
        %720 = vmatpush1.msra.mxu0 0.0
        %721 = vmatprep.subr.mxu0 0.0
        %722 = vmatpush1.msra.mxu0 0.0
        %723 = vmatprep.subr.mxu0 0.0
        %724 = vmatpush1.msra.mxu0 0.0
        %725 = vmatprep.subr.mxu0 0.0
        %726 = vmatpush1.msra.mxu0 0.0
        %727 = vmatprep.subr.mxu0 0.0
        %728 = vmatpush1.msra.mxu0 0.0
        %729 = vmatprep.subr.mxu0 0.0
        %730 = vmatpush1.msra.mxu0 0.0
        %731 = vmatprep.subr.mxu0 0.0
        %732 = vmatpush1.msra.mxu0 0.0
        %733 = vmatprep.subr.mxu0 %v405
        %734 = vmatpush1.msra.mxu0 %v403
        %735 = vmatprep.subr.mxu0 0.0
        %736 = vmatpush2.msra.mxu0 0.0
        %737 = vmatprep.subr.mxu0 0.0
        %738 = vmatpush2.msra.mxu0 0.0
        %739 = vmatprep.subr.mxu0 0.0
        %740 = vmatpush2.msra.mxu0 0.0
        %741 = vmatprep.subr.mxu0 0.0
        %742 = vmatpush2.msra.mxu0 0.0
        %743 = vmatprep.subr.mxu0 0.0
        %744 = vmatpush2.msra.mxu0 0.0
        %745 = vmatprep.subr.mxu0 0.0
        %746 = vmatpush2.msra.mxu0 0.0
        %747 = vmatprep.subr.mxu0 0.0
        %748 = vmatpush2.msra.mxu0 0.0
        %749 = vmatprep.subr.mxu0 0.0
        %750 = vmatpush2.msra.mxu0 0.0
        %751 = vmatprep.subr.mxu0 0.0
        %752 = vmatpush2.msra.mxu0 0.0
        %753 = vmatprep.subr.mxu0 0.0
        %754 = vmatpush2.msra.mxu0 0.0
        %755 = vmatprep.subr.mxu0 0.0
        %756 = vmatpush2.msra.mxu0 0.0
        %757 = vmatprep.subr.mxu0 0.0
        %758 = vmatpush2.msra.mxu0 0.0
        %759 = vmatprep.subr.mxu0 0.0
        %760 = vmatpush2.msra.mxu0 0.0
        %761 = vmatprep.subr.mxu0 0.0
        %762 = vmatpush2.msra.mxu0 0.0
        %763 = vmatprep.subr.mxu0 0.0
        %764 = vmatpush2.msra.mxu0 0.0
        %765 = vmatprep.subr.mxu0 0.0
        %766 = vmatpush2.msra.mxu0 0.0
        %767 = vmatprep.mubr.f32.mxu0 0.0
        %768 = vmatmul.mubr.f32.gmra.mxu0 %v384
        %v769 = vpop.f32.mrf.mxu0
        %v770 = vadd.f32 %v308, %v769
        %v771 = vpop.f32.mrf.mxu0
        %v772 = vadd.f32 %v308, %v771
        %773 = vdwg.mxu0
        %774 = vmatprep.subr.mxu0 0.0
        %775 = vmatpush1.msra.mxu0 0.0
        %776 = vmatprep.subr.mxu0 0.0
        %777 = vmatpush1.msra.mxu0 0.0
        %778 = vmatprep.subr.mxu0 0.0
        %779 = vmatpush1.msra.mxu0 0.0
        %780 = vmatprep.subr.mxu0 0.0
        %781 = vmatpush1.msra.mxu0 0.0
        %782 = vmatprep.subr.mxu0 0.0
        %783 = vmatpush1.msra.mxu0 0.0
        %784 = vmatprep.subr.mxu0 0.0
        %785 = vmatpush1.msra.mxu0 0.0
        %786 = vmatprep.subr.mxu0 0.0
        %787 = vmatpush1.msra.mxu0 0.0
        %788 = vmatprep.subr.mxu0 0.0
        %789 = vmatpush1.msra.mxu0 0.0
        %790 = vmatprep.subr.mxu0 0.0
        %791 = vmatpush1.msra.mxu0 0.0
        %792 = vmatprep.subr.mxu0 0.0
        %793 = vmatpush1.msra.mxu0 0.0
        %794 = vmatprep.subr.mxu0 0.0
        %795 = vmatpush1.msra.mxu0 0.0
        %796 = vmatprep.subr.mxu0 0.0
        %797 = vmatpush1.msra.mxu0 0.0
        %798 = vmatprep.subr.mxu0 0.0
        %799 = vmatpush1.msra.mxu0 0.0
        %800 = vmatprep.subr.mxu0 0.0
        %801 = vmatpush1.msra.mxu0 0.0
        %802 = vmatprep.subr.mxu0 0.0
        %803 = vmatpush1.msra.mxu0 0.0
        %804 = vmatprep.subr.mxu0 %v409
        %805 = vmatpush1.msra.mxu0 %v407
        %806 = vmatprep.subr.mxu0 0.0
        %807 = vmatpush2.msra.mxu0 0.0
        %808 = vmatprep.subr.mxu0 0.0
        %809 = vmatpush2.msra.mxu0 0.0
        %810 = vmatprep.subr.mxu0 0.0
        %811 = vmatpush2.msra.mxu0 0.0
        %812 = vmatprep.subr.mxu0 0.0
        %813 = vmatpush2.msra.mxu0 0.0
        %814 = vmatprep.subr.mxu0 0.0
        %815 = vmatpush2.msra.mxu0 0.0
        %816 = vmatprep.subr.mxu0 0.0
        %817 = vmatpush2.msra.mxu0 0.0
        %818 = vmatprep.subr.mxu0 0.0
        %819 = vmatpush2.msra.mxu0 0.0
        %820 = vmatprep.subr.mxu0 0.0
        %821 = vmatpush2.msra.mxu0 0.0
        %822 = vmatprep.subr.mxu0 0.0
        %823 = vmatpush2.msra.mxu0 0.0
        %824 = vmatprep.subr.mxu0 0.0
        %825 = vmatpush2.msra.mxu0 0.0
        %826 = vmatprep.subr.mxu0 0.0
        %827 = vmatpush2.msra.mxu0 0.0
        %828 = vmatprep.subr.mxu0 0.0
        %829 = vmatpush2.msra.mxu0 0.0
        %830 = vmatprep.subr.mxu0 0.0
        %831 = vmatpush2.msra.mxu0 0.0
        %832 = vmatprep.subr.mxu0 0.0
        %833 = vmatpush2.msra.mxu0 0.0
        %834 = vmatprep.subr.mxu0 0.0
        %835 = vmatpush2.msra.mxu0 0.0
        %836 = vmatprep.subr.mxu0 0.0
        %837 = vmatpush2.msra.mxu0 0.0
        %838 = vmatprep.mubr.f32.mxu0 0.0
        %839 = vmatmul.mubr.f32.gmra.mxu0 %v384
        %v840 = vpop.f32.mrf.mxu0
        %v841 = vadd.f32 %v308, %v840
        %v842 = vpop.f32.mrf.mxu0
        %v843 = vadd.f32 %v308, %v842
        %844 = vdwg.mxu0
        %845 = vmatprep.subr.mxu0 0.0
        %846 = vmatpush1.msra.mxu0 0.0
        %847 = vmatprep.subr.mxu0 0.0
        %848 = vmatpush1.msra.mxu0 0.0
        %849 = vmatprep.subr.mxu0 0.0
        %850 = vmatpush1.msra.mxu0 0.0
        %851 = vmatprep.subr.mxu0 0.0
        %852 = vmatpush1.msra.mxu0 0.0
        %853 = vmatprep.subr.mxu0 0.0
        %854 = vmatpush1.msra.mxu0 0.0
        %855 = vmatprep.subr.mxu0 0.0
        %856 = vmatpush1.msra.mxu0 0.0
        %857 = vmatprep.subr.mxu0 0.0
        %858 = vmatpush1.msra.mxu0 0.0
        %859 = vmatprep.subr.mxu0 0.0
        %860 = vmatpush1.msra.mxu0 0.0
        %861 = vmatprep.subr.mxu0 0.0
        %862 = vmatpush1.msra.mxu0 0.0
        %863 = vmatprep.subr.mxu0 0.0
        %864 = vmatpush1.msra.mxu0 0.0
        %865 = vmatprep.subr.mxu0 0.0
        %866 = vmatpush1.msra.mxu0 0.0
        %867 = vmatprep.subr.mxu0 0.0
        %868 = vmatpush1.msra.mxu0 0.0
        %869 = vmatprep.subr.mxu0 0.0
        %870 = vmatpush1.msra.mxu0 0.0
        %871 = vmatprep.subr.mxu0 0.0
        %872 = vmatpush1.msra.mxu0 0.0
        %873 = vmatprep.subr.mxu0 0.0
        %874 = vmatpush1.msra.mxu0 0.0
        %875 = vmatprep.subr.mxu0 %v413
        %876 = vmatpush1.msra.mxu0 %v411
        %877 = vmatprep.subr.mxu0 0.0
        %878 = vmatpush2.msra.mxu0 0.0
        %879 = vmatprep.subr.mxu0 0.0
        %880 = vmatpush2.msra.mxu0 0.0
        %881 = vmatprep.subr.mxu0 0.0
        %882 = vmatpush2.msra.mxu0 0.0
        %883 = vmatprep.subr.mxu0 0.0
        %884 = vmatpush2.msra.mxu0 0.0
        %885 = vmatprep.subr.mxu0 0.0
        %886 = vmatpush2.msra.mxu0 0.0
        %887 = vmatprep.subr.mxu0 0.0
        %888 = vmatpush2.msra.mxu0 0.0
        %889 = vmatprep.subr.mxu0 0.0
        %890 = vmatpush2.msra.mxu0 0.0
        %891 = vmatprep.subr.mxu0 0.0
        %892 = vmatpush2.msra.mxu0 0.0
        %893 = vmatprep.subr.mxu0 0.0
        %894 = vmatpush2.msra.mxu0 0.0
        %895 = vmatprep.subr.mxu0 0.0
        %896 = vmatpush2.msra.mxu0 0.0
        %897 = vmatprep.subr.mxu0 0.0
        %898 = vmatpush2.msra.mxu0 0.0
        %899 = vmatprep.subr.mxu0 0.0
        %900 = vmatpush2.msra.mxu0 0.0
        %901 = vmatprep.subr.mxu0 0.0
        %902 = vmatpush2.msra.mxu0 0.0
        %903 = vmatprep.subr.mxu0 0.0
        %904 = vmatpush2.msra.mxu0 0.0
        %905 = vmatprep.subr.mxu0 0.0
        %906 = vmatpush2.msra.mxu0 0.0
        %907 = vmatprep.subr.mxu0 0.0
        %908 = vmatpush2.msra.mxu0 0.0
        %909 = vmatprep.mubr.f32.mxu0 0.0
        %910 = vmatmul.mubr.f32.gmra.mxu0 %v384
        %v911 = vpop.f32.mrf.mxu0
        %v912 = vadd.f32 %v308, %v911
        %v913 = vpop.f32.mrf.mxu0
        %v914 = vadd.f32 %v308, %v913
        %915 = vdwg.mxu0
        %916 = vmatprep.subr.mxu0 0.0
        %917 = vmatpush1.msra.mxu0 0.0
        %918 = vmatprep.subr.mxu0 0.0
        %919 = vmatpush1.msra.mxu0 0.0
        %920 = vmatprep.subr.mxu0 0.0
        %921 = vmatpush1.msra.mxu0 0.0
        %922 = vmatprep.subr.mxu0 0.0
        %923 = vmatpush1.msra.mxu0 0.0
        %924 = vmatprep.subr.mxu0 0.0
        %925 = vmatpush1.msra.mxu0 0.0
        %926 = vmatprep.subr.mxu0 0.0
        %927 = vmatpush1.msra.mxu0 0.0
        %928 = vmatprep.subr.mxu0 0.0
        %929 = vmatpush1.msra.mxu0 0.0
        %930 = vmatprep.subr.mxu0 0.0
        %931 = vmatpush1.msra.mxu0 0.0
        %932 = vmatprep.subr.mxu0 0.0
        %933 = vmatpush1.msra.mxu0 0.0
        %934 = vmatprep.subr.mxu0 0.0
        %935 = vmatpush1.msra.mxu0 0.0
        %936 = vmatprep.subr.mxu0 0.0
        %937 = vmatpush1.msra.mxu0 0.0
        %938 = vmatprep.subr.mxu0 0.0
        %939 = vmatpush1.msra.mxu0 0.0
        %940 = vmatprep.subr.mxu0 0.0
        %941 = vmatpush1.msra.mxu0 0.0
        %942 = vmatprep.subr.mxu0 0.0
        %943 = vmatpush1.msra.mxu0 0.0
        %944 = vmatprep.subr.mxu0 0.0
        %945 = vmatpush1.msra.mxu0 0.0
        %946 = vmatprep.subr.mxu0 %v417
        %947 = vmatpush1.msra.mxu0 %v415
        %948 = vmatprep.subr.mxu0 0.0
        %949 = vmatpush2.msra.mxu0 0.0
        %950 = vmatprep.subr.mxu0 0.0
        %951 = vmatpush2.msra.mxu0 0.0
        %952 = vmatprep.subr.mxu0 0.0
        %953 = vmatpush2.msra.mxu0 0.0
        %954 = vmatprep.subr.mxu0 0.0
        %955 = vmatpush2.msra.mxu0 0.0
        %956 = vmatprep.subr.mxu0 0.0
        %957 = vmatpush2.msra.mxu0 0.0
        %958 = vmatprep.subr.mxu0 0.0
        %959 = vmatpush2.msra.mxu0 0.0
        %960 = vmatprep.subr.mxu0 0.0
        %961 = vmatpush2.msra.mxu0 0.0
        %962 = vmatprep.subr.mxu0 0.0
        %963 = vmatpush2.msra.mxu0 0.0
        %964 = vmatprep.subr.mxu0 0.0
        %965 = vmatpush2.msra.mxu0 0.0
        %966 = vmatprep.subr.mxu0 0.0
        %967 = vmatpush2.msra.mxu0 0.0
        %968 = vmatprep.subr.mxu0 0.0
        %969 = vmatpush2.msra.mxu0 0.0
        %970 = vmatprep.subr.mxu0 0.0
        %971 = vmatpush2.msra.mxu0 0.0
        %972 = vmatprep.subr.mxu0 0.0
        %973 = vmatpush2.msra.mxu0 0.0
        %974 = vmatprep.subr.mxu0 0.0
        %975 = vmatpush2.msra.mxu0 0.0
        %976 = vmatprep.subr.mxu0 0.0
        %977 = vmatpush2.msra.mxu0 0.0
        %978 = vmatprep.subr.mxu0 0.0
        %979 = vmatpush2.msra.mxu0 0.0
        %980 = vmatprep.mubr.f32.mxu0 0.0
        %981 = vmatmul.mubr.f32.gmra.mxu0 %v384
        %v982 = vpop.f32.mrf.mxu0
        %v983 = vadd.f32 %v308, %v982
        %v984 = vpop.f32.mrf.mxu0
        %v985 = vadd.f32 %v308, %v984
        %986 = vdwg.mxu0
        %v987 = vand.u32 2147483647, %v486
        %vm988 = vcmp.le.f32.partialorder %v987, 0.7853982
        %vm989 = vcmp.lt.s32.totalorder %v486, 0
        %v990 = vand.u32 %v486, 2139095040
        %v991 = vshrl.u32 %v990, 23
        %v992 = vsub.s32 %v991, 127
        %v993 = vand.u32 2147483647, %v486
        %v994 = vand.u32 %v993, 8388607
        %v995 = vor.u32 %v994, 8388608
        %v996 = vsub.s32 0, %v995
        %v997 = vadd.s32 %v992, 1
        %vm998 = vcmp.gt.s32.totalorder %v997, 0
        %v999 = vsel %vm998, %v997, 0
        %v1000 = vshrl.u32 %v999, 5
        %v1001 = vand.u32 %v999, 31
        %v1002 = vsub.s32 32, %v1001
        %v1003 = vshrl.u32 683565275, %v1002
        %v1004 = vshll.u32 683565275, %v1001
        %v1005 = vshrl.u32 2475754826, %v1002
        %v1006 = vor.u32 %v1004, %v1005
        %v1007 = vshll.u32 2475754826, %v1001
        %v1008 = vshrl.u32 2131351028, %v1002
        %v1009 = vor.u32 %v1007, %v1008
        %v1010 = vshll.u32 2131351028, %v1001
        %v1011 = vshrl.u32 2102212464, %v1002
        %v1012 = vor.u32 %v1010, %v1011
        %v1013 = vshll.u32 2102212464, %v1001
        %v1014 = vshrl.u32 920167782, %v1002
        %v1015 = vor.u32 %v1013, %v1014
        %v1016 = vshll.u32 920167782, %v1001
        %v1017 = vshrl.u32 1326507024, %v1002
        %v1018 = vor.u32 %v1016, %v1017
        %vm1019 = vcmp.lt.s32.totalorder %v1000, 1
        %vm1020 = vcmp.lt.s32.totalorder %v1000, 2
        %vm1021 = vcmp.lt.s32.totalorder %v1000, 3
        %vm1022 = vcmp.lt.s32.totalorder %v1000, 4
        %v1023 = vsel %vm1019, %v1003, %v1006
        %v1024 = vsel %vm1022, %v1012, 2102212464
        %v1025 = vsel %vm1021, %v1009, %v1024
        %v1026 = vsel %vm1020, %v1023, %v1025
        %v1027 = vsel %vm1019, %v1006, %v1009
        %v1028 = vsel %vm1022, %v1015, 920167782
        %v1029 = vsel %vm1021, %v1012, %v1028
        %v1030 = vsel %vm1020, %v1027, %v1029
        %v1031 = vsel %vm1019, %v1009, %v1012
        %v1032 = vsel %vm1022, %v1018, 1326507024
        %v1033 = vsel %vm1021, %v1015, %v1032
        %v1034 = vsel %vm1020, %v1031, %v1033
        %v1035 = vshll.u32 %v995, 8
        %v1036 = vmul.u32.u64.compose %v1035, %v1034
        %v1037 = vextract.low.u32 %v1036
        %v1038 = vextract.high.u32 %v1036
        %v1039 = vmul.u32.u64.compose %v1035, %v1030
        %v1040 = vextract.low.u32 %v1039
        %v1041 = vextract.high.u32 %v1039
        %v1042 = vmul.u32 %v1035, %v1026
        %v1043 = vadd.s32 %v1038, %v1040
        %vm1044 = vc.u32 %v1038, %v1040
        %v1045 = vadd.s32 %v1041, 1
        %v1046 = vsel %vm1044, %v1045, %v1041
        %v1047 = vadd.s32 %v1042, %v1046
        %v1048 = vadd.s32 %v1047, 536870912
        %v1049 = vshrl.u32 %v1048, 30
        %v1050 = vshll.u32 %v1049, 30
        %v1051 = vsub.s32 %v1047, %v1050
        %vm1052 = vcmp.lt.s32.totalorder %v1051, 0
        %v1053 = vsub.s32 0, %v1051
        %v1054 = vsel %vm1052, %v1053, %v1051
        %v1055 = vclz %v1054
        %v1056 = vsub.s32 %v1055, 2
        %vm1057 = vcmp.gt.s32.totalorder 0, %v1056
        %v1058 = vsel %vm1057, 0, %v1056
        %v1059 = vsub.s32 32, %v1058
        %v1060 = vshll.u32 %v1051, %v1058
        %v1061 = vshrl.u32 %v1043, %v1059
        %v1062 = vor.u32 %v1060, %v1061
        %v1063 = vsub.s32 4294967266, %v1058
        %v1064 = vadd.s32 %v1063, 127
        %v1065 = vshll.u32 %v1064, 23
        %v1066 = vor.u32 4788187, %v1065
        %v1067 = vand.u32 2147483647, %v1066
        %v1069 = vcvt.s32.f32 %v1062
        %v1070 = vmul.f32 %v1069, %v1067
        %v1071 = vxor.u32 %v1070, 2147483648
        %v1072 = vsel %vm989, %v1071, %v1070
        %v1073 = vsub.s32 4, %v1049
        %v1074 = vsel %vm989, %v1073, %v1049
        %v1075 = vsel %vm988, %v486, %v1072
        %v1076 = vsel %vm988, 0, %v1074
        %v1077 = vcosq.f32.pop %v1075
        %v1078 = vsinq.f32.pop %v1075
        %vm1079 = vweird.f32 %v486
        %v1080 = vadd.s32 %v1076, 3
        %v1081 = vand.u32 %v1080, 3
        %vm1082 = vcmp.lt.s32.totalorder %v1081, 2
        %vm1083 = vcmp.eq.s32.totalorder %v1081, 0
        %v1084 = vxor.u32 %v1078, 2147483648
        %v1085 = vsel %vm1083, %v1077, %v1084
        %vm1086 = vcmp.eq.s32.totalorder %v1081, 2
        %v1087 = vxor.u32 %v1077, 2147483648
        %v1088 = vsel %vm1086, %v1087, %v1078
        %v1089 = vsel %vm1082, %v1085, %v1088
        %v1090 = vsel %vm1079, nan, %v1089
        %v1091 = vand.u32 2147483647, %v488
        %vm1092 = vcmp.le.f32.partialorder %v1091, 0.7853982
        %vm1093 = vcmp.lt.s32.totalorder %v488, 0
        %v1094 = vand.u32 %v488, 2139095040
        %v1095 = vshrl.u32 %v1094, 23
        %v1096 = vsub.s32 %v1095, 127
        %v1097 = vand.u32 2147483647, %v488
        %v1098 = vand.u32 %v1097, 8388607
        %v1099 = vor.u32 %v1098, 8388608
        %v1100 = vsub.s32 0, %v1099
        %v1101 = vadd.s32 %v1096, 1
        %vm1102 = vcmp.gt.s32.totalorder %v1101, 0
        %v1103 = vsel %vm1102, %v1101, 0
        %v1104 = vshrl.u32 %v1103, 5
        %v1105 = vand.u32 %v1103, 31
        %v1106 = vsub.s32 32, %v1105
        %v1107 = vshrl.u32 683565275, %v1106
        %v1108 = vshll.u32 683565275, %v1105
        %v1109 = vshrl.u32 2475754826, %v1106
        %v1110 = vor.u32 %v1108, %v1109
        %v1111 = vshll.u32 2475754826, %v1105
        %v1112 = vshrl.u32 2131351028, %v1106
        %v1113 = vor.u32 %v1111, %v1112
        %v1114 = vshll.u32 2131351028, %v1105
        %v1115 = vshrl.u32 2102212464, %v1106
        %v1116 = vor.u32 %v1114, %v1115
        %v1117 = vshll.u32 2102212464, %v1105
        %v1118 = vshrl.u32 920167782, %v1106
        %v1119 = vor.u32 %v1117, %v1118
        %v1120 = vshll.u32 920167782, %v1105
        %v1121 = vshrl.u32 1326507024, %v1106
        %v1122 = vor.u32 %v1120, %v1121
        %vm1123 = vcmp.lt.s32.totalorder %v1104, 1
        %vm1124 = vcmp.lt.s32.totalorder %v1104, 2
        %vm1125 = vcmp.lt.s32.totalorder %v1104, 3
        %vm1126 = vcmp.lt.s32.totalorder %v1104, 4
        %v1127 = vsel %vm1123, %v1107, %v1110
        %v1128 = vsel %vm1126, %v1116, 2102212464
        %v1129 = vsel %vm1125, %v1113, %v1128
        %v1130 = vsel %vm1124, %v1127, %v1129
        %v1131 = vsel %vm1123, %v1110, %v1113
        %v1132 = vsel %vm1126, %v1119, 920167782
        %v1133 = vsel %vm1125, %v1116, %v1132
        %v1134 = vsel %vm1124, %v1131, %v1133
        %v1135 = vsel %vm1123, %v1113, %v1116
        %v1136 = vsel %vm1126, %v1122, 1326507024
        %v1137 = vsel %vm1125, %v1119, %v1136
        %v1138 = vsel %vm1124, %v1135, %v1137
        %v1139 = vshll.u32 %v1099, 8
        %v1140 = vmul.u32.u64.compose %v1139, %v1138
        %v1141 = vextract.low.u32 %v1140
        %v1142 = vextract.high.u32 %v1140
        %v1143 = vmul.u32.u64.compose %v1139, %v1134
        %v1144 = vextract.low.u32 %v1143
        %v1145 = vextract.high.u32 %v1143
        %v1146 = vmul.u32 %v1139, %v1130
        %v1147 = vadd.s32 %v1142, %v1144
        %vm1148 = vc.u32 %v1142, %v1144
        %v1149 = vadd.s32 %v1145, 1
        %v1150 = vsel %vm1148, %v1149, %v1145
        %v1151 = vadd.s32 %v1146, %v1150
        %v1152 = vadd.s32 %v1151, 536870912
        %v1153 = vshrl.u32 %v1152, 30
        %v1154 = vshll.u32 %v1153, 30
        %v1155 = vsub.s32 %v1151, %v1154
        %vm1156 = vcmp.lt.s32.totalorder %v1155, 0
        %v1157 = vsub.s32 0, %v1155
        %v1158 = vsel %vm1156, %v1157, %v1155
        %v1159 = vclz %v1158
        %v1160 = vsub.s32 %v1159, 2
        %vm1161 = vcmp.gt.s32.totalorder 0, %v1160
        %v1162 = vsel %vm1161, 0, %v1160
        %v1163 = vsub.s32 32, %v1162
        %v1164 = vshll.u32 %v1155, %v1162
        %v1165 = vshrl.u32 %v1147, %v1163
        %v1166 = vor.u32 %v1164, %v1165
        %v1167 = vsub.s32 4294967266, %v1162
        %v1168 = vadd.s32 %v1167, 127
        %v1169 = vshll.u32 %v1168, 23
        %v1170 = vor.u32 4788187, %v1169
        %v1171 = vand.u32 2147483647, %v1170
        %v1173 = vcvt.s32.f32 %v1166
        %v1174 = vmul.f32 %v1173, %v1171
        %v1175 = vxor.u32 %v1174, 2147483648
        %v1176 = vsel %vm1093, %v1175, %v1174
        %v1177 = vsub.s32 4, %v1153
        %v1178 = vsel %vm1093, %v1177, %v1153
        %v1179 = vsel %vm1092, %v488, %v1176
        %v1180 = vsel %vm1092, 0, %v1178
        %v1181 = vcosq.f32.pop %v1179
        %v1182 = vsinq.f32.pop %v1179
        %vm1183 = vweird.f32 %v488
        %v1184 = vadd.s32 %v1180, 3
        %v1185 = vand.u32 %v1184, 3
        %vm1186 = vcmp.lt.s32.totalorder %v1185, 2
        %vm1187 = vcmp.eq.s32.totalorder %v1185, 0
        %v1188 = vxor.u32 %v1182, 2147483648
        %v1189 = vsel %vm1187, %v1181, %v1188
        %vm1190 = vcmp.eq.s32.totalorder %v1185, 2
        %v1191 = vxor.u32 %v1181, 2147483648
        %v1192 = vsel %vm1190, %v1191, %v1182
        %v1193 = vsel %vm1186, %v1189, %v1192
        %v1194 = vsel %vm1183, nan, %v1193
        %v1195 = vand.u32 2147483647, %v557
        %vm1196 = vcmp.le.f32.partialorder %v1195, 0.7853982
        %vm1197 = vcmp.lt.s32.totalorder %v557, 0
        %v1198 = vand.u32 %v557, 2139095040
        %v1199 = vshrl.u32 %v1198, 23
        %v1200 = vsub.s32 %v1199, 127
        %v1201 = vand.u32 2147483647, %v557
        %v1202 = vand.u32 %v1201, 8388607
        %v1203 = vor.u32 %v1202, 8388608
        %v1204 = vsub.s32 0, %v1203
        %v1205 = vadd.s32 %v1200, 1
        %vm1206 = vcmp.gt.s32.totalorder %v1205, 0
        %v1207 = vsel %vm1206, %v1205, 0
        %v1208 = vshrl.u32 %v1207, 5
        %v1209 = vand.u32 %v1207, 31
        %v1210 = vsub.s32 32, %v1209
        %v1211 = vshrl.u32 683565275, %v1210
        %v1212 = vshll.u32 683565275, %v1209
        %v1213 = vshrl.u32 2475754826, %v1210
        %v1214 = vor.u32 %v1212, %v1213
        %v1215 = vshll.u32 2475754826, %v1209
        %v1216 = vshrl.u32 2131351028, %v1210
        %v1217 = vor.u32 %v1215, %v1216
        %v1218 = vshll.u32 2131351028, %v1209
        %v1219 = vshrl.u32 2102212464, %v1210
        %v1220 = vor.u32 %v1218, %v1219
        %v1221 = vshll.u32 2102212464, %v1209
        %v1222 = vshrl.u32 920167782, %v1210
        %v1223 = vor.u32 %v1221, %v1222
        %v1224 = vshll.u32 920167782, %v1209
        %v1225 = vshrl.u32 1326507024, %v1210
        %v1226 = vor.u32 %v1224, %v1225
        %vm1227 = vcmp.lt.s32.totalorder %v1208, 1
        %vm1228 = vcmp.lt.s32.totalorder %v1208, 2
        %vm1229 = vcmp.lt.s32.totalorder %v1208, 3
        %vm1230 = vcmp.lt.s32.totalorder %v1208, 4
        %v1231 = vsel %vm1227, %v1211, %v1214
        %v1232 = vsel %vm1230, %v1220, 2102212464
        %v1233 = vsel %vm1229, %v1217, %v1232
        %v1234 = vsel %vm1228, %v1231, %v1233
        %v1235 = vsel %vm1227, %v1214, %v1217
        %v1236 = vsel %vm1230, %v1223, 920167782
        %v1237 = vsel %vm1229, %v1220, %v1236
        %v1238 = vsel %vm1228, %v1235, %v1237
        %v1239 = vsel %vm1227, %v1217, %v1220
        %v1240 = vsel %vm1230, %v1226, 1326507024
        %v1241 = vsel %vm1229, %v1223, %v1240
        %v1242 = vsel %vm1228, %v1239, %v1241
        %v1243 = vshll.u32 %v1203, 8
        %v1244 = vmul.u32.u64.compose %v1243, %v1242
        %v1245 = vextract.low.u32 %v1244
        %v1246 = vextract.high.u32 %v1244
        %v1247 = vmul.u32.u64.compose %v1243, %v1238
        %v1248 = vextract.low.u32 %v1247
        %v1249 = vextract.high.u32 %v1247
        %v1250 = vmul.u32 %v1243, %v1234
        %v1251 = vadd.s32 %v1246, %v1248
        %vm1252 = vc.u32 %v1246, %v1248
        %v1253 = vadd.s32 %v1249, 1
        %v1254 = vsel %vm1252, %v1253, %v1249
        %v1255 = vadd.s32 %v1250, %v1254
        %v1256 = vadd.s32 %v1255, 536870912
        %v1257 = vshrl.u32 %v1256, 30
        %v1258 = vshll.u32 %v1257, 30
        %v1259 = vsub.s32 %v1255, %v1258
        %vm1260 = vcmp.lt.s32.totalorder %v1259, 0
        %v1261 = vsub.s32 0, %v1259
        %v1262 = vsel %vm1260, %v1261, %v1259
        %v1263 = vclz %v1262
        %v1264 = vsub.s32 %v1263, 2
        %vm1265 = vcmp.gt.s32.totalorder 0, %v1264
        %v1266 = vsel %vm1265, 0, %v1264
        %v1267 = vsub.s32 32, %v1266
        %v1268 = vshll.u32 %v1259, %v1266
        %v1269 = vshrl.u32 %v1251, %v1267
        %v1270 = vor.u32 %v1268, %v1269
        %v1271 = vsub.s32 4294967266, %v1266
        %v1272 = vadd.s32 %v1271, 127
        %v1273 = vshll.u32 %v1272, 23
        %v1274 = vor.u32 4788187, %v1273
        %v1275 = vand.u32 2147483647, %v1274
        %v1277 = vcvt.s32.f32 %v1270
        %v1278 = vmul.f32 %v1277, %v1275
        %v1279 = vxor.u32 %v1278, 2147483648
        %v1280 = vsel %vm1197, %v1279, %v1278
        %v1281 = vsub.s32 4, %v1257
        %v1282 = vsel %vm1197, %v1281, %v1257
        %v1283 = vsel %vm1196, %v557, %v1280
        %v1284 = vsel %vm1196, 0, %v1282
        %v1285 = vcosq.f32.pop %v1283
        %v1286 = vsinq.f32.pop %v1283
        %vm1287 = vweird.f32 %v557
        %v1288 = vadd.s32 %v1284, 3
        %v1289 = vand.u32 %v1288, 3
        %vm1290 = vcmp.lt.s32.totalorder %v1289, 2
        %vm1291 = vcmp.eq.s32.totalorder %v1289, 0
        %v1292 = vxor.u32 %v1286, 2147483648
        %v1293 = vsel %vm1291, %v1285, %v1292
        %vm1294 = vcmp.eq.s32.totalorder %v1289, 2
        %v1295 = vxor.u32 %v1285, 2147483648
        %v1296 = vsel %vm1294, %v1295, %v1286
        %v1297 = vsel %vm1290, %v1293, %v1296
        %v1298 = vsel %vm1287, nan, %v1297
        %v1299 = vand.u32 2147483647, %v559
        %vm1300 = vcmp.le.f32.partialorder %v1299, 0.7853982
        %vm1301 = vcmp.lt.s32.totalorder %v559, 0
        %v1302 = vand.u32 %v559, 2139095040
        %v1303 = vshrl.u32 %v1302, 23
        %v1304 = vsub.s32 %v1303, 127
        %v1305 = vand.u32 2147483647, %v559
        %v1306 = vand.u32 %v1305, 8388607
        %v1307 = vor.u32 %v1306, 8388608
        %v1308 = vsub.s32 0, %v1307
        %v1309 = vadd.s32 %v1304, 1
        %vm1310 = vcmp.gt.s32.totalorder %v1309, 0
        %v1311 = vsel %vm1310, %v1309, 0
        %v1312 = vshrl.u32 %v1311, 5
        %v1313 = vand.u32 %v1311, 31
        %v1314 = vsub.s32 32, %v1313
        %v1315 = vshrl.u32 683565275, %v1314
        %v1316 = vshll.u32 683565275, %v1313
        %v1317 = vshrl.u32 2475754826, %v1314
        %v1318 = vor.u32 %v1316, %v1317
        %v1319 = vshll.u32 2475754826, %v1313
        %v1320 = vshrl.u32 2131351028, %v1314
        %v1321 = vor.u32 %v1319, %v1320
        %v1322 = vshll.u32 2131351028, %v1313
        %v1323 = vshrl.u32 2102212464, %v1314
        %v1324 = vor.u32 %v1322, %v1323
        %v1325 = vshll.u32 2102212464, %v1313
        %v1326 = vshrl.u32 920167782, %v1314
        %v1327 = vor.u32 %v1325, %v1326
        %v1328 = vshll.u32 920167782, %v1313
        %v1329 = vshrl.u32 1326507024, %v1314
        %v1330 = vor.u32 %v1328, %v1329
        %vm1331 = vcmp.lt.s32.totalorder %v1312, 1
        %vm1332 = vcmp.lt.s32.totalorder %v1312, 2
        %vm1333 = vcmp.lt.s32.totalorder %v1312, 3
        %vm1334 = vcmp.lt.s32.totalorder %v1312, 4
        %v1335 = vsel %vm1331, %v1315, %v1318
        %v1336 = vsel %vm1334, %v1324, 2102212464
        %v1337 = vsel %vm1333, %v1321, %v1336
        %v1338 = vsel %vm1332, %v1335, %v1337
        %v1339 = vsel %vm1331, %v1318, %v1321
        %v1340 = vsel %vm1334, %v1327, 920167782
        %v1341 = vsel %vm1333, %v1324, %v1340
        %v1342 = vsel %vm1332, %v1339, %v1341
        %v1343 = vsel %vm1331, %v1321, %v1324
        %v1344 = vsel %vm1334, %v1330, 1326507024
        %v1345 = vsel %vm1333, %v1327, %v1344
        %v1346 = vsel %vm1332, %v1343, %v1345
        %v1347 = vshll.u32 %v1307, 8
        %v1348 = vmul.u32.u64.compose %v1347, %v1346
        %v1349 = vextract.low.u32 %v1348
        %v1350 = vextract.high.u32 %v1348
        %v1351 = vmul.u32.u64.compose %v1347, %v1342
        %v1352 = vextract.low.u32 %v1351
        %v1353 = vextract.high.u32 %v1351
        %v1354 = vmul.u32 %v1347, %v1338
        %v1355 = vadd.s32 %v1350, %v1352
        %vm1356 = vc.u32 %v1350, %v1352
        %v1357 = vadd.s32 %v1353, 1
        %v1358 = vsel %vm1356, %v1357, %v1353
        %v1359 = vadd.s32 %v1354, %v1358
        %v1360 = vadd.s32 %v1359, 536870912
        %v1361 = vshrl.u32 %v1360, 30
        %v1362 = vshll.u32 %v1361, 30
        %v1363 = vsub.s32 %v1359, %v1362
        %vm1364 = vcmp.lt.s32.totalorder %v1363, 0
        %v1365 = vsub.s32 0, %v1363
        %v1366 = vsel %vm1364, %v1365, %v1363
        %v1367 = vclz %v1366
        %v1368 = vsub.s32 %v1367, 2
        %vm1369 = vcmp.gt.s32.totalorder 0, %v1368
        %v1370 = vsel %vm1369, 0, %v1368
        %v1371 = vsub.s32 32, %v1370
        %v1372 = vshll.u32 %v1363, %v1370
        %v1373 = vshrl.u32 %v1355, %v1371
        %v1374 = vor.u32 %v1372, %v1373
        %v1375 = vsub.s32 4294967266, %v1370
        %v1376 = vadd.s32 %v1375, 127
        %v1377 = vshll.u32 %v1376, 23
        %v1378 = vor.u32 4788187, %v1377
        %v1379 = vand.u32 2147483647, %v1378
        %v1381 = vcvt.s32.f32 %v1374
        %v1382 = vmul.f32 %v1381, %v1379
        %v1383 = vxor.u32 %v1382, 2147483648
        %v1384 = vsel %vm1301, %v1383, %v1382
        %v1385 = vsub.s32 4, %v1361
        %v1386 = vsel %vm1301, %v1385, %v1361
        %v1387 = vsel %vm1300, %v559, %v1384
        %v1388 = vsel %vm1300, 0, %v1386
        %v1389 = vcosq.f32.pop %v1387
        %v1390 = vsinq.f32.pop %v1387
        %vm1391 = vweird.f32 %v559
        %v1392 = vadd.s32 %v1388, 3
        %v1393 = vand.u32 %v1392, 3
        %vm1394 = vcmp.lt.s32.totalorder %v1393, 2
        %vm1395 = vcmp.eq.s32.totalorder %v1393, 0
        %v1396 = vxor.u32 %v1390, 2147483648
        %v1397 = vsel %vm1395, %v1389, %v1396
        %vm1398 = vcmp.eq.s32.totalorder %v1393, 2
        %v1399 = vxor.u32 %v1389, 2147483648
        %v1400 = vsel %vm1398, %v1399, %v1390
        %v1401 = vsel %vm1394, %v1397, %v1400
        %v1402 = vsel %vm1391, nan, %v1401
        %v1403 = vand.u32 2147483647, %v628
        %vm1404 = vcmp.le.f32.partialorder %v1403, 0.7853982
        %vm1405 = vcmp.lt.s32.totalorder %v628, 0
        %v1406 = vand.u32 %v628, 2139095040
        %v1407 = vshrl.u32 %v1406, 23
        %v1408 = vsub.s32 %v1407, 127
        %v1409 = vand.u32 2147483647, %v628
        %v1410 = vand.u32 %v1409, 8388607
        %v1411 = vor.u32 %v1410, 8388608
        %v1412 = vsub.s32 0, %v1411
        %v1413 = vadd.s32 %v1408, 1
        %vm1414 = vcmp.gt.s32.totalorder %v1413, 0
        %v1415 = vsel %vm1414, %v1413, 0
        %v1416 = vshrl.u32 %v1415, 5
        %v1417 = vand.u32 %v1415, 31
        %v1418 = vsub.s32 32, %v1417
        %v1419 = vshrl.u32 683565275, %v1418
        %v1420 = vshll.u32 683565275, %v1417
        %v1421 = vshrl.u32 2475754826, %v1418
        %v1422 = vor.u32 %v1420, %v1421
        %v1423 = vshll.u32 2475754826, %v1417
        %v1424 = vshrl.u32 2131351028, %v1418
        %v1425 = vor.u32 %v1423, %v1424
        %v1426 = vshll.u32 2131351028, %v1417
        %v1427 = vshrl.u32 2102212464, %v1418
        %v1428 = vor.u32 %v1426, %v1427
        %v1429 = vshll.u32 2102212464, %v1417
        %v1430 = vshrl.u32 920167782, %v1418
        %v1431 = vor.u32 %v1429, %v1430
        %v1432 = vshll.u32 920167782, %v1417
        %v1433 = vshrl.u32 1326507024, %v1418
        %v1434 = vor.u32 %v1432, %v1433
        %vm1435 = vcmp.lt.s32.totalorder %v1416, 1
        %vm1436 = vcmp.lt.s32.totalorder %v1416, 2
        %vm1437 = vcmp.lt.s32.totalorder %v1416, 3
        %vm1438 = vcmp.lt.s32.totalorder %v1416, 4
        %v1439 = vsel %vm1435, %v1419, %v1422
        %v1440 = vsel %vm1438, %v1428, 2102212464
        %v1441 = vsel %vm1437, %v1425, %v1440
        %v1442 = vsel %vm1436, %v1439, %v1441
        %v1443 = vsel %vm1435, %v1422, %v1425
        %v1444 = vsel %vm1438, %v1431, 920167782
        %v1445 = vsel %vm1437, %v1428, %v1444
        %v1446 = vsel %vm1436, %v1443, %v1445
        %v1447 = vsel %vm1435, %v1425, %v1428
        %v1448 = vsel %vm1438, %v1434, 1326507024
        %v1449 = vsel %vm1437, %v1431, %v1448
        %v1450 = vsel %vm1436, %v1447, %v1449
        %v1451 = vshll.u32 %v1411, 8
        %v1452 = vmul.u32.u64.compose %v1451, %v1450
        %v1453 = vextract.low.u32 %v1452
        %v1454 = vextract.high.u32 %v1452
        %v1455 = vmul.u32.u64.compose %v1451, %v1446
        %v1456 = vextract.low.u32 %v1455
        %v1457 = vextract.high.u32 %v1455
        %v1458 = vmul.u32 %v1451, %v1442
        %v1459 = vadd.s32 %v1454, %v1456
        %vm1460 = vc.u32 %v1454, %v1456
        %v1461 = vadd.s32 %v1457, 1
        %v1462 = vsel %vm1460, %v1461, %v1457
        %v1463 = vadd.s32 %v1458, %v1462
        %v1464 = vadd.s32 %v1463, 536870912
        %v1465 = vshrl.u32 %v1464, 30
        %v1466 = vshll.u32 %v1465, 30
        %v1467 = vsub.s32 %v1463, %v1466
        %vm1468 = vcmp.lt.s32.totalorder %v1467, 0
        %v1469 = vsub.s32 0, %v1467
        %v1470 = vsel %vm1468, %v1469, %v1467
        %v1471 = vclz %v1470
        %v1472 = vsub.s32 %v1471, 2
        %vm1473 = vcmp.gt.s32.totalorder 0, %v1472
        %v1474 = vsel %vm1473, 0, %v1472
        %v1475 = vsub.s32 32, %v1474
        %v1476 = vshll.u32 %v1467, %v1474
        %v1477 = vshrl.u32 %v1459, %v1475
        %v1478 = vor.u32 %v1476, %v1477
        %v1479 = vsub.s32 4294967266, %v1474
        %v1480 = vadd.s32 %v1479, 127
        %v1481 = vshll.u32 %v1480, 23
        %v1482 = vor.u32 4788187, %v1481
        %v1483 = vand.u32 2147483647, %v1482
        %v1485 = vcvt.s32.f32 %v1478
        %v1486 = vmul.f32 %v1485, %v1483
        %v1487 = vxor.u32 %v1486, 2147483648
        %v1488 = vsel %vm1405, %v1487, %v1486
        %v1489 = vsub.s32 4, %v1465
        %v1490 = vsel %vm1405, %v1489, %v1465
        %v1491 = vsel %vm1404, %v628, %v1488
        %v1492 = vsel %vm1404, 0, %v1490
        %v1493 = vcosq.f32.pop %v1491
        %v1494 = vsinq.f32.pop %v1491
        %vm1495 = vweird.f32 %v628
        %v1496 = vadd.s32 %v1492, 3
        %v1497 = vand.u32 %v1496, 3
        %vm1498 = vcmp.lt.s32.totalorder %v1497, 2
        %vm1499 = vcmp.eq.s32.totalorder %v1497, 0
        %v1500 = vxor.u32 %v1494, 2147483648
        %v1501 = vsel %vm1499, %v1493, %v1500
        %vm1502 = vcmp.eq.s32.totalorder %v1497, 2
        %v1503 = vxor.u32 %v1493, 2147483648
        %v1504 = vsel %vm1502, %v1503, %v1494
        %v1505 = vsel %vm1498, %v1501, %v1504
        %v1506 = vsel %vm1495, nan, %v1505
        %v1507 = vand.u32 2147483647, %v630
        %vm1508 = vcmp.le.f32.partialorder %v1507, 0.7853982
        %vm1509 = vcmp.lt.s32.totalorder %v630, 0
        %v1510 = vand.u32 %v630, 2139095040
        %v1511 = vshrl.u32 %v1510, 23
        %v1512 = vsub.s32 %v1511, 127
        %v1513 = vand.u32 2147483647, %v630
        %v1514 = vand.u32 %v1513, 8388607
        %v1515 = vor.u32 %v1514, 8388608
        %v1516 = vsub.s32 0, %v1515
        %v1517 = vadd.s32 %v1512, 1
        %vm1518 = vcmp.gt.s32.totalorder %v1517, 0
        %v1519 = vsel %vm1518, %v1517, 0
        %v1520 = vshrl.u32 %v1519, 5
        %v1521 = vand.u32 %v1519, 31
        %v1522 = vsub.s32 32, %v1521
        %v1523 = vshrl.u32 683565275, %v1522
        %v1524 = vshll.u32 683565275, %v1521
        %v1525 = vshrl.u32 2475754826, %v1522
        %v1526 = vor.u32 %v1524, %v1525
        %v1527 = vshll.u32 2475754826, %v1521
        %v1528 = vshrl.u32 2131351028, %v1522
        %v1529 = vor.u32 %v1527, %v1528
        %v1530 = vshll.u32 2131351028, %v1521
        %v1531 = vshrl.u32 2102212464, %v1522
        %v1532 = vor.u32 %v1530, %v1531
        %v1533 = vshll.u32 2102212464, %v1521
        %v1534 = vshrl.u32 920167782, %v1522
        %v1535 = vor.u32 %v1533, %v1534
        %v1536 = vshll.u32 920167782, %v1521
        %v1537 = vshrl.u32 1326507024, %v1522
        %v1538 = vor.u32 %v1536, %v1537
        %vm1539 = vcmp.lt.s32.totalorder %v1520, 1
        %vm1540 = vcmp.lt.s32.totalorder %v1520, 2
        %vm1541 = vcmp.lt.s32.totalorder %v1520, 3
        %vm1542 = vcmp.lt.s32.totalorder %v1520, 4
        %v1543 = vsel %vm1539, %v1523, %v1526
        %v1544 = vsel %vm1542, %v1532, 2102212464
        %v1545 = vsel %vm1541, %v1529, %v1544
        %v1546 = vsel %vm1540, %v1543, %v1545
        %v1547 = vsel %vm1539, %v1526, %v1529
        %v1548 = vsel %vm1542, %v1535, 920167782
        %v1549 = vsel %vm1541, %v1532, %v1548
        %v1550 = vsel %vm1540, %v1547, %v1549
        %v1551 = vsel %vm1539, %v1529, %v1532
        %v1552 = vsel %vm1542, %v1538, 1326507024
        %v1553 = vsel %vm1541, %v1535, %v1552
        %v1554 = vsel %vm1540, %v1551, %v1553
        %v1555 = vshll.u32 %v1515, 8
        %v1556 = vmul.u32.u64.compose %v1555, %v1554
        %v1557 = vextract.low.u32 %v1556
        %v1558 = vextract.high.u32 %v1556
        %v1559 = vmul.u32.u64.compose %v1555, %v1550
        %v1560 = vextract.low.u32 %v1559
        %v1561 = vextract.high.u32 %v1559
        %v1562 = vmul.u32 %v1555, %v1546
        %v1563 = vadd.s32 %v1558, %v1560
        %vm1564 = vc.u32 %v1558, %v1560
        %v1565 = vadd.s32 %v1561, 1
        %v1566 = vsel %vm1564, %v1565, %v1561
        %v1567 = vadd.s32 %v1562, %v1566
        %v1568 = vadd.s32 %v1567, 536870912
        %v1569 = vshrl.u32 %v1568, 30
        %v1570 = vshll.u32 %v1569, 30
        %v1571 = vsub.s32 %v1567, %v1570
        %vm1572 = vcmp.lt.s32.totalorder %v1571, 0
        %v1573 = vsub.s32 0, %v1571
        %v1574 = vsel %vm1572, %v1573, %v1571
        %v1575 = vclz %v1574
        %v1576 = vsub.s32 %v1575, 2
        %vm1577 = vcmp.gt.s32.totalorder 0, %v1576
        %v1578 = vsel %vm1577, 0, %v1576
        %v1579 = vsub.s32 32, %v1578
        %v1580 = vshll.u32 %v1571, %v1578
        %v1581 = vshrl.u32 %v1563, %v1579
        %v1582 = vor.u32 %v1580, %v1581
        %v1583 = vsub.s32 4294967266, %v1578
        %v1584 = vadd.s32 %v1583, 127
        %v1585 = vshll.u32 %v1584, 23
        %v1586 = vor.u32 4788187, %v1585
        %v1587 = vand.u32 2147483647, %v1586
        %v1589 = vcvt.s32.f32 %v1582
        %v1590 = vmul.f32 %v1589, %v1587
        %v1591 = vxor.u32 %v1590, 2147483648
        %v1592 = vsel %vm1509, %v1591, %v1590
        %v1593 = vsub.s32 4, %v1569
        %v1594 = vsel %vm1509, %v1593, %v1569
        %v1595 = vsel %vm1508, %v630, %v1592
        %v1596 = vsel %vm1508, 0, %v1594
        %v1597 = vcosq.f32.pop %v1595
        %v1598 = vsinq.f32.pop %v1595
        %vm1599 = vweird.f32 %v630
        %v1600 = vadd.s32 %v1596, 3
        %v1601 = vand.u32 %v1600, 3
        %vm1602 = vcmp.lt.s32.totalorder %v1601, 2
        %vm1603 = vcmp.eq.s32.totalorder %v1601, 0
        %v1604 = vxor.u32 %v1598, 2147483648
        %v1605 = vsel %vm1603, %v1597, %v1604
        %vm1606 = vcmp.eq.s32.totalorder %v1601, 2
        %v1607 = vxor.u32 %v1597, 2147483648
        %v1608 = vsel %vm1606, %v1607, %v1598
        %v1609 = vsel %vm1602, %v1605, %v1608
        %v1610 = vsel %vm1599, nan, %v1609
        %v1611 = vand.u32 2147483647, %v699
        %vm1612 = vcmp.le.f32.partialorder %v1611, 0.7853982
        %vm1613 = vcmp.lt.s32.totalorder %v699, 0
        %v1614 = vand.u32 %v699, 2139095040
        %v1615 = vshrl.u32 %v1614, 23
        %v1616 = vsub.s32 %v1615, 127
        %v1617 = vand.u32 2147483647, %v699
        %v1618 = vand.u32 %v1617, 8388607
        %v1619 = vor.u32 %v1618, 8388608
        %v1620 = vsub.s32 0, %v1619
        %v1621 = vadd.s32 %v1616, 1
        %vm1622 = vcmp.gt.s32.totalorder %v1621, 0
        %v1623 = vsel %vm1622, %v1621, 0
        %v1624 = vshrl.u32 %v1623, 5
        %v1625 = vand.u32 %v1623, 31
        %v1626 = vsub.s32 32, %v1625
        %v1627 = vshrl.u32 683565275, %v1626
        %v1628 = vshll.u32 683565275, %v1625
        %v1629 = vshrl.u32 2475754826, %v1626
        %v1630 = vor.u32 %v1628, %v1629
        %v1631 = vshll.u32 2475754826, %v1625
        %v1632 = vshrl.u32 2131351028, %v1626
        %v1633 = vor.u32 %v1631, %v1632
        %v1634 = vshll.u32 2131351028, %v1625
        %v1635 = vshrl.u32 2102212464, %v1626
        %v1636 = vor.u32 %v1634, %v1635
        %v1637 = vshll.u32 2102212464, %v1625
        %v1638 = vshrl.u32 920167782, %v1626
        %v1639 = vor.u32 %v1637, %v1638
        %v1640 = vshll.u32 920167782, %v1625
        %v1641 = vshrl.u32 1326507024, %v1626
        %v1642 = vor.u32 %v1640, %v1641
        %vm1643 = vcmp.lt.s32.totalorder %v1624, 1
        %vm1644 = vcmp.lt.s32.totalorder %v1624, 2
        %vm1645 = vcmp.lt.s32.totalorder %v1624, 3
        %vm1646 = vcmp.lt.s32.totalorder %v1624, 4
        %v1647 = vsel %vm1643, %v1627, %v1630
        %v1648 = vsel %vm1646, %v1636, 2102212464
        %v1649 = vsel %vm1645, %v1633, %v1648
        %v1650 = vsel %vm1644, %v1647, %v1649
        %v1651 = vsel %vm1643, %v1630, %v1633
        %v1652 = vsel %vm1646, %v1639, 920167782
        %v1653 = vsel %vm1645, %v1636, %v1652
        %v1654 = vsel %vm1644, %v1651, %v1653
        %v1655 = vsel %vm1643, %v1633, %v1636
        %v1656 = vsel %vm1646, %v1642, 1326507024
        %v1657 = vsel %vm1645, %v1639, %v1656
        %v1658 = vsel %vm1644, %v1655, %v1657
        %v1659 = vshll.u32 %v1619, 8
        %v1660 = vmul.u32.u64.compose %v1659, %v1658
        %v1661 = vextract.low.u32 %v1660
        %v1662 = vextract.high.u32 %v1660
        %v1663 = vmul.u32.u64.compose %v1659, %v1654
        %v1664 = vextract.low.u32 %v1663
        %v1665 = vextract.high.u32 %v1663
        %v1666 = vmul.u32 %v1659, %v1650
        %v1667 = vadd.s32 %v1662, %v1664
        %vm1668 = vc.u32 %v1662, %v1664
        %v1669 = vadd.s32 %v1665, 1
        %v1670 = vsel %vm1668, %v1669, %v1665
        %v1671 = vadd.s32 %v1666, %v1670
        %v1672 = vadd.s32 %v1671, 536870912
        %v1673 = vshrl.u32 %v1672, 30
        %v1674 = vshll.u32 %v1673, 30
        %v1675 = vsub.s32 %v1671, %v1674
        %vm1676 = vcmp.lt.s32.totalorder %v1675, 0
        %v1677 = vsub.s32 0, %v1675
        %v1678 = vsel %vm1676, %v1677, %v1675
        %v1679 = vclz %v1678
        %v1680 = vsub.s32 %v1679, 2
        %vm1681 = vcmp.gt.s32.totalorder 0, %v1680
        %v1682 = vsel %vm1681, 0, %v1680
        %v1683 = vsub.s32 32, %v1682
        %v1684 = vshll.u32 %v1675, %v1682
        %v1685 = vshrl.u32 %v1667, %v1683
        %v1686 = vor.u32 %v1684, %v1685
        %v1687 = vsub.s32 4294967266, %v1682
        %v1688 = vadd.s32 %v1687, 127
        %v1689 = vshll.u32 %v1688, 23
        %v1690 = vor.u32 4788187, %v1689
        %v1691 = vand.u32 2147483647, %v1690
        %v1693 = vcvt.s32.f32 %v1686
        %v1694 = vmul.f32 %v1693, %v1691
        %v1695 = vxor.u32 %v1694, 2147483648
        %v1696 = vsel %vm1613, %v1695, %v1694
        %v1697 = vsub.s32 4, %v1673
        %v1698 = vsel %vm1613, %v1697, %v1673
        %v1699 = vsel %vm1612, %v699, %v1696
        %v1700 = vsel %vm1612, 0, %v1698
        %v1701 = vcosq.f32.pop %v1699
        %v1702 = vsinq.f32.pop %v1699
        %vm1703 = vweird.f32 %v699
        %v1704 = vadd.s32 %v1700, 3
        %v1705 = vand.u32 %v1704, 3
        %vm1706 = vcmp.lt.s32.totalorder %v1705, 2
        %vm1707 = vcmp.eq.s32.totalorder %v1705, 0
        %v1708 = vxor.u32 %v1702, 2147483648
        %v1709 = vsel %vm1707, %v1701, %v1708
        %vm1710 = vcmp.eq.s32.totalorder %v1705, 2
        %v1711 = vxor.u32 %v1701, 2147483648
        %v1712 = vsel %vm1710, %v1711, %v1702
        %v1713 = vsel %vm1706, %v1709, %v1712
        %v1714 = vsel %vm1703, nan, %v1713
        %v1715 = vand.u32 2147483647, %v701
        %vm1716 = vcmp.le.f32.partialorder %v1715, 0.7853982
        %vm1717 = vcmp.lt.s32.totalorder %v701, 0
        %v1718 = vand.u32 %v701, 2139095040
        %v1719 = vshrl.u32 %v1718, 23
        %v1720 = vsub.s32 %v1719, 127
        %v1721 = vand.u32 2147483647, %v701
        %v1722 = vand.u32 %v1721, 8388607
        %v1723 = vor.u32 %v1722, 8388608
        %v1724 = vsub.s32 0, %v1723
        %v1725 = vadd.s32 %v1720, 1
        %vm1726 = vcmp.gt.s32.totalorder %v1725, 0
        %v1727 = vsel %vm1726, %v1725, 0
        %v1728 = vshrl.u32 %v1727, 5
        %v1729 = vand.u32 %v1727, 31
        %v1730 = vsub.s32 32, %v1729
        %v1731 = vshrl.u32 683565275, %v1730
        %v1732 = vshll.u32 683565275, %v1729
        %v1733 = vshrl.u32 2475754826, %v1730
        %v1734 = vor.u32 %v1732, %v1733
        %v1735 = vshll.u32 2475754826, %v1729
        %v1736 = vshrl.u32 2131351028, %v1730
        %v1737 = vor.u32 %v1735, %v1736
        %v1738 = vshll.u32 2131351028, %v1729
        %v1739 = vshrl.u32 2102212464, %v1730
        %v1740 = vor.u32 %v1738, %v1739
        %v1741 = vshll.u32 2102212464, %v1729
        %v1742 = vshrl.u32 920167782, %v1730
        %v1743 = vor.u32 %v1741, %v1742
        %v1744 = vshll.u32 920167782, %v1729
        %v1745 = vshrl.u32 1326507024, %v1730
        %v1746 = vor.u32 %v1744, %v1745
        %vm1747 = vcmp.lt.s32.totalorder %v1728, 1
        %vm1748 = vcmp.lt.s32.totalorder %v1728, 2
        %vm1749 = vcmp.lt.s32.totalorder %v1728, 3
        %vm1750 = vcmp.lt.s32.totalorder %v1728, 4
        %v1751 = vsel %vm1747, %v1731, %v1734
        %v1752 = vsel %vm1750, %v1740, 2102212464
        %v1753 = vsel %vm1749, %v1737, %v1752
        %v1754 = vsel %vm1748, %v1751, %v1753
        %v1755 = vsel %vm1747, %v1734, %v1737
        %v1756 = vsel %vm1750, %v1743, 920167782
        %v1757 = vsel %vm1749, %v1740, %v1756
        %v1758 = vsel %vm1748, %v1755, %v1757
        %v1759 = vsel %vm1747, %v1737, %v1740
        %v1760 = vsel %vm1750, %v1746, 1326507024
        %v1761 = vsel %vm1749, %v1743, %v1760
        %v1762 = vsel %vm1748, %v1759, %v1761
        %v1763 = vshll.u32 %v1723, 8
        %v1764 = vmul.u32.u64.compose %v1763, %v1762
        %v1765 = vextract.low.u32 %v1764
        %v1766 = vextract.high.u32 %v1764
        %v1767 = vmul.u32.u64.compose %v1763, %v1758
        %v1768 = vextract.low.u32 %v1767
        %v1769 = vextract.high.u32 %v1767
        %v1770 = vmul.u32 %v1763, %v1754
        %v1771 = vadd.s32 %v1766, %v1768
        %vm1772 = vc.u32 %v1766, %v1768
        %v1773 = vadd.s32 %v1769, 1
        %v1774 = vsel %vm1772, %v1773, %v1769
        %v1775 = vadd.s32 %v1770, %v1774
        %v1776 = vadd.s32 %v1775, 536870912
        %v1777 = vshrl.u32 %v1776, 30
        %v1778 = vshll.u32 %v1777, 30
        %v1779 = vsub.s32 %v1775, %v1778
        %vm1780 = vcmp.lt.s32.totalorder %v1779, 0
        %v1781 = vsub.s32 0, %v1779
        %v1782 = vsel %vm1780, %v1781, %v1779
        %v1783 = vclz %v1782
        %v1784 = vsub.s32 %v1783, 2
        %vm1785 = vcmp.gt.s32.totalorder 0, %v1784
        %v1786 = vsel %vm1785, 0, %v1784
        %v1787 = vsub.s32 32, %v1786
        %v1788 = vshll.u32 %v1779, %v1786
        %v1789 = vshrl.u32 %v1771, %v1787
        %v1790 = vor.u32 %v1788, %v1789
        %v1791 = vsub.s32 4294967266, %v1786
        %v1792 = vadd.s32 %v1791, 127
        %v1793 = vshll.u32 %v1792, 23
        %v1794 = vor.u32 4788187, %v1793
        %v1795 = vand.u32 2147483647, %v1794
        %v1797 = vcvt.s32.f32 %v1790
        %v1798 = vmul.f32 %v1797, %v1795
        %v1799 = vxor.u32 %v1798, 2147483648
        %v1800 = vsel %vm1717, %v1799, %v1798
        %v1801 = vsub.s32 4, %v1777
        %v1802 = vsel %vm1717, %v1801, %v1777
        %v1803 = vsel %vm1716, %v701, %v1800
        %v1804 = vsel %vm1716, 0, %v1802
        %v1805 = vcosq.f32.pop %v1803
        %v1806 = vsinq.f32.pop %v1803
        %vm1807 = vweird.f32 %v701
        %v1808 = vadd.s32 %v1804, 3
        %v1809 = vand.u32 %v1808, 3
        %vm1810 = vcmp.lt.s32.totalorder %v1809, 2
        %vm1811 = vcmp.eq.s32.totalorder %v1809, 0
        %v1812 = vxor.u32 %v1806, 2147483648
        %v1813 = vsel %vm1811, %v1805, %v1812
        %vm1814 = vcmp.eq.s32.totalorder %v1809, 2
        %v1815 = vxor.u32 %v1805, 2147483648
        %v1816 = vsel %vm1814, %v1815, %v1806
        %v1817 = vsel %vm1810, %v1813, %v1816
        %v1818 = vsel %vm1807, nan, %v1817
        %v1819 = vand.u32 2147483647, %v770
        %vm1820 = vcmp.le.f32.partialorder %v1819, 0.7853982
        %vm1821 = vcmp.lt.s32.totalorder %v770, 0
        %v1822 = vand.u32 %v770, 2139095040
        %v1823 = vshrl.u32 %v1822, 23
        %v1824 = vsub.s32 %v1823, 127
        %v1825 = vand.u32 2147483647, %v770
        %v1826 = vand.u32 %v1825, 8388607
        %v1827 = vor.u32 %v1826, 8388608
        %v1828 = vsub.s32 0, %v1827
        %v1829 = vadd.s32 %v1824, 1
        %vm1830 = vcmp.gt.s32.totalorder %v1829, 0
        %v1831 = vsel %vm1830, %v1829, 0
        %v1832 = vshrl.u32 %v1831, 5
        %v1833 = vand.u32 %v1831, 31
        %v1834 = vsub.s32 32, %v1833
        %v1835 = vshrl.u32 683565275, %v1834
        %v1836 = vshll.u32 683565275, %v1833
        %v1837 = vshrl.u32 2475754826, %v1834
        %v1838 = vor.u32 %v1836, %v1837
        %v1839 = vshll.u32 2475754826, %v1833
        %v1840 = vshrl.u32 2131351028, %v1834
        %v1841 = vor.u32 %v1839, %v1840
        %v1842 = vshll.u32 2131351028, %v1833
        %v1843 = vshrl.u32 2102212464, %v1834
        %v1844 = vor.u32 %v1842, %v1843
        %v1845 = vshll.u32 2102212464, %v1833
        %v1846 = vshrl.u32 920167782, %v1834
        %v1847 = vor.u32 %v1845, %v1846
        %v1848 = vshll.u32 920167782, %v1833
        %v1849 = vshrl.u32 1326507024, %v1834
        %v1850 = vor.u32 %v1848, %v1849
        %vm1851 = vcmp.lt.s32.totalorder %v1832, 1
        %vm1852 = vcmp.lt.s32.totalorder %v1832, 2
        %vm1853 = vcmp.lt.s32.totalorder %v1832, 3
        %vm1854 = vcmp.lt.s32.totalorder %v1832, 4
        %v1855 = vsel %vm1851, %v1835, %v1838
        %v1856 = vsel %vm1854, %v1844, 2102212464
        %v1857 = vsel %vm1853, %v1841, %v1856
        %v1858 = vsel %vm1852, %v1855, %v1857
        %v1859 = vsel %vm1851, %v1838, %v1841
        %v1860 = vsel %vm1854, %v1847, 920167782
        %v1861 = vsel %vm1853, %v1844, %v1860
        %v1862 = vsel %vm1852, %v1859, %v1861
        %v1863 = vsel %vm1851, %v1841, %v1844
        %v1864 = vsel %vm1854, %v1850, 1326507024
        %v1865 = vsel %vm1853, %v1847, %v1864
        %v1866 = vsel %vm1852, %v1863, %v1865
        %v1867 = vshll.u32 %v1827, 8
        %v1868 = vmul.u32.u64.compose %v1867, %v1866
        %v1869 = vextract.low.u32 %v1868
        %v1870 = vextract.high.u32 %v1868
        %v1871 = vmul.u32.u64.compose %v1867, %v1862
        %v1872 = vextract.low.u32 %v1871
        %v1873 = vextract.high.u32 %v1871
        %v1874 = vmul.u32 %v1867, %v1858
        %v1875 = vadd.s32 %v1870, %v1872
        %vm1876 = vc.u32 %v1870, %v1872
        %v1877 = vadd.s32 %v1873, 1
        %v1878 = vsel %vm1876, %v1877, %v1873
        %v1879 = vadd.s32 %v1874, %v1878
        %v1880 = vadd.s32 %v1879, 536870912
        %v1881 = vshrl.u32 %v1880, 30
        %v1882 = vshll.u32 %v1881, 30
        %v1883 = vsub.s32 %v1879, %v1882
        %vm1884 = vcmp.lt.s32.totalorder %v1883, 0
        %v1885 = vsub.s32 0, %v1883
        %v1886 = vsel %vm1884, %v1885, %v1883
        %v1887 = vclz %v1886
        %v1888 = vsub.s32 %v1887, 2
        %vm1889 = vcmp.gt.s32.totalorder 0, %v1888
        %v1890 = vsel %vm1889, 0, %v1888
        %v1891 = vsub.s32 32, %v1890
        %v1892 = vshll.u32 %v1883, %v1890
        %v1893 = vshrl.u32 %v1875, %v1891
        %v1894 = vor.u32 %v1892, %v1893
        %v1895 = vsub.s32 4294967266, %v1890
        %v1896 = vadd.s32 %v1895, 127
        %v1897 = vshll.u32 %v1896, 23
        %v1898 = vor.u32 4788187, %v1897
        %v1899 = vand.u32 2147483647, %v1898
        %v1901 = vcvt.s32.f32 %v1894
        %v1902 = vmul.f32 %v1901, %v1899
        %v1903 = vxor.u32 %v1902, 2147483648
        %v1904 = vsel %vm1821, %v1903, %v1902
        %v1905 = vsub.s32 4, %v1881
        %v1906 = vsel %vm1821, %v1905, %v1881
        %v1907 = vsel %vm1820, %v770, %v1904
        %v1908 = vsel %vm1820, 0, %v1906
        %v1909 = vcosq.f32.pop %v1907
        %v1910 = vsinq.f32.pop %v1907
        %vm1911 = vweird.f32 %v770
        %v1912 = vadd.s32 %v1908, 3
        %v1913 = vand.u32 %v1912, 3
        %vm1914 = vcmp.lt.s32.totalorder %v1913, 2
        %vm1915 = vcmp.eq.s32.totalorder %v1913, 0
        %v1916 = vxor.u32 %v1910, 2147483648
        %v1917 = vsel %vm1915, %v1909, %v1916
        %vm1918 = vcmp.eq.s32.totalorder %v1913, 2
        %v1919 = vxor.u32 %v1909, 2147483648
        %v1920 = vsel %vm1918, %v1919, %v1910
        %v1921 = vsel %vm1914, %v1917, %v1920
        %v1922 = vsel %vm1911, nan, %v1921
        %v1923 = vand.u32 2147483647, %v772
        %vm1924 = vcmp.le.f32.partialorder %v1923, 0.7853982
        %vm1925 = vcmp.lt.s32.totalorder %v772, 0
        %v1926 = vand.u32 %v772, 2139095040
        %v1927 = vshrl.u32 %v1926, 23
        %v1928 = vsub.s32 %v1927, 127
        %v1929 = vand.u32 2147483647, %v772
        %v1930 = vand.u32 %v1929, 8388607
        %v1931 = vor.u32 %v1930, 8388608
        %v1932 = vsub.s32 0, %v1931
        %v1933 = vadd.s32 %v1928, 1
        %vm1934 = vcmp.gt.s32.totalorder %v1933, 0
        %v1935 = vsel %vm1934, %v1933, 0
        %v1936 = vshrl.u32 %v1935, 5
        %v1937 = vand.u32 %v1935, 31
        %v1938 = vsub.s32 32, %v1937
        %v1939 = vshrl.u32 683565275, %v1938
        %v1940 = vshll.u32 683565275, %v1937
        %v1941 = vshrl.u32 2475754826, %v1938
        %v1942 = vor.u32 %v1940, %v1941
        %v1943 = vshll.u32 2475754826, %v1937
        %v1944 = vshrl.u32 2131351028, %v1938
        %v1945 = vor.u32 %v1943, %v1944
        %v1946 = vshll.u32 2131351028, %v1937
        %v1947 = vshrl.u32 2102212464, %v1938
        %v1948 = vor.u32 %v1946, %v1947
        %v1949 = vshll.u32 2102212464, %v1937
        %v1950 = vshrl.u32 920167782, %v1938
        %v1951 = vor.u32 %v1949, %v1950
        %v1952 = vshll.u32 920167782, %v1937
        %v1953 = vshrl.u32 1326507024, %v1938
        %v1954 = vor.u32 %v1952, %v1953
        %vm1955 = vcmp.lt.s32.totalorder %v1936, 1
        %vm1956 = vcmp.lt.s32.totalorder %v1936, 2
        %vm1957 = vcmp.lt.s32.totalorder %v1936, 3
        %vm1958 = vcmp.lt.s32.totalorder %v1936, 4
        %v1959 = vsel %vm1955, %v1939, %v1942
        %v1960 = vsel %vm1958, %v1948, 2102212464
        %v1961 = vsel %vm1957, %v1945, %v1960
        %v1962 = vsel %vm1956, %v1959, %v1961
        %v1963 = vsel %vm1955, %v1942, %v1945
        %v1964 = vsel %vm1958, %v1951, 920167782
        %v1965 = vsel %vm1957, %v1948, %v1964
        %v1966 = vsel %vm1956, %v1963, %v1965
        %v1967 = vsel %vm1955, %v1945, %v1948
        %v1968 = vsel %vm1958, %v1954, 1326507024
        %v1969 = vsel %vm1957, %v1951, %v1968
        %v1970 = vsel %vm1956, %v1967, %v1969
        %v1971 = vshll.u32 %v1931, 8
        %v1972 = vmul.u32.u64.compose %v1971, %v1970
        %v1973 = vextract.low.u32 %v1972
        %v1974 = vextract.high.u32 %v1972
        %v1975 = vmul.u32.u64.compose %v1971, %v1966
        %v1976 = vextract.low.u32 %v1975
        %v1977 = vextract.high.u32 %v1975
        %v1978 = vmul.u32 %v1971, %v1962
        %v1979 = vadd.s32 %v1974, %v1976
        %vm1980 = vc.u32 %v1974, %v1976
        %v1981 = vadd.s32 %v1977, 1
        %v1982 = vsel %vm1980, %v1981, %v1977
        %v1983 = vadd.s32 %v1978, %v1982
        %v1984 = vadd.s32 %v1983, 536870912
        %v1985 = vshrl.u32 %v1984, 30
        %v1986 = vshll.u32 %v1985, 30
        %v1987 = vsub.s32 %v1983, %v1986
        %vm1988 = vcmp.lt.s32.totalorder %v1987, 0
        %v1989 = vsub.s32 0, %v1987
        %v1990 = vsel %vm1988, %v1989, %v1987
        %v1991 = vclz %v1990
        %v1992 = vsub.s32 %v1991, 2
        %vm1993 = vcmp.gt.s32.totalorder 0, %v1992
        %v1994 = vsel %vm1993, 0, %v1992
        %v1995 = vsub.s32 32, %v1994
        %v1996 = vshll.u32 %v1987, %v1994
        %v1997 = vshrl.u32 %v1979, %v1995
        %v1998 = vor.u32 %v1996, %v1997
        %v1999 = vsub.s32 4294967266, %v1994
        %v2000 = vadd.s32 %v1999, 127
        %v2001 = vshll.u32 %v2000, 23
        %v2002 = vor.u32 4788187, %v2001
        %v2003 = vand.u32 2147483647, %v2002
        %v2005 = vcvt.s32.f32 %v1998
        %v2006 = vmul.f32 %v2005, %v2003
        %v2007 = vxor.u32 %v2006, 2147483648
        %v2008 = vsel %vm1925, %v2007, %v2006
        %v2009 = vsub.s32 4, %v1985
        %v2010 = vsel %vm1925, %v2009, %v1985
        %v2011 = vsel %vm1924, %v772, %v2008
        %v2012 = vsel %vm1924, 0, %v2010
        %v2013 = vcosq.f32.pop %v2011
        %v2014 = vsinq.f32.pop %v2011
        %vm2015 = vweird.f32 %v772
        %v2016 = vadd.s32 %v2012, 3
        %v2017 = vand.u32 %v2016, 3
        %vm2018 = vcmp.lt.s32.totalorder %v2017, 2
        %vm2019 = vcmp.eq.s32.totalorder %v2017, 0
        %v2020 = vxor.u32 %v2014, 2147483648
        %v2021 = vsel %vm2019, %v2013, %v2020
        %vm2022 = vcmp.eq.s32.totalorder %v2017, 2
        %v2023 = vxor.u32 %v2013, 2147483648
        %v2024 = vsel %vm2022, %v2023, %v2014
        %v2025 = vsel %vm2018, %v2021, %v2024
        %v2026 = vsel %vm2015, nan, %v2025
        %v2027 = vand.u32 2147483647, %v841
        %vm2028 = vcmp.le.f32.partialorder %v2027, 0.7853982
        %vm2029 = vcmp.lt.s32.totalorder %v841, 0
        %v2030 = vand.u32 %v841, 2139095040
        %v2031 = vshrl.u32 %v2030, 23
        %v2032 = vsub.s32 %v2031, 127
        %v2033 = vand.u32 2147483647, %v841
        %v2034 = vand.u32 %v2033, 8388607
        %v2035 = vor.u32 %v2034, 8388608
        %v2036 = vsub.s32 0, %v2035
        %v2037 = vadd.s32 %v2032, 1
        %vm2038 = vcmp.gt.s32.totalorder %v2037, 0
        %v2039 = vsel %vm2038, %v2037, 0
        %v2040 = vshrl.u32 %v2039, 5
        %v2041 = vand.u32 %v2039, 31
        %v2042 = vsub.s32 32, %v2041
        %v2043 = vshrl.u32 683565275, %v2042
        %v2044 = vshll.u32 683565275, %v2041
        %v2045 = vshrl.u32 2475754826, %v2042
        %v2046 = vor.u32 %v2044, %v2045
        %v2047 = vshll.u32 2475754826, %v2041
        %v2048 = vshrl.u32 2131351028, %v2042
        %v2049 = vor.u32 %v2047, %v2048
        %v2050 = vshll.u32 2131351028, %v2041
        %v2051 = vshrl.u32 2102212464, %v2042
        %v2052 = vor.u32 %v2050, %v2051
        %v2053 = vshll.u32 2102212464, %v2041
        %v2054 = vshrl.u32 920167782, %v2042
        %v2055 = vor.u32 %v2053, %v2054
        %v2056 = vshll.u32 920167782, %v2041
        %v2057 = vshrl.u32 1326507024, %v2042
        %v2058 = vor.u32 %v2056, %v2057
        %vm2059 = vcmp.lt.s32.totalorder %v2040, 1
        %vm2060 = vcmp.lt.s32.totalorder %v2040, 2
        %vm2061 = vcmp.lt.s32.totalorder %v2040, 3
        %vm2062 = vcmp.lt.s32.totalorder %v2040, 4
        %v2063 = vsel %vm2059, %v2043, %v2046
        %v2064 = vsel %vm2062, %v2052, 2102212464
        %v2065 = vsel %vm2061, %v2049, %v2064
        %v2066 = vsel %vm2060, %v2063, %v2065
        %v2067 = vsel %vm2059, %v2046, %v2049
        %v2068 = vsel %vm2062, %v2055, 920167782
        %v2069 = vsel %vm2061, %v2052, %v2068
        %v2070 = vsel %vm2060, %v2067, %v2069
        %v2071 = vsel %vm2059, %v2049, %v2052
        %v2072 = vsel %vm2062, %v2058, 1326507024
        %v2073 = vsel %vm2061, %v2055, %v2072
        %v2074 = vsel %vm2060, %v2071, %v2073
        %v2075 = vshll.u32 %v2035, 8
        %v2076 = vmul.u32.u64.compose %v2075, %v2074
        %v2077 = vextract.low.u32 %v2076
        %v2078 = vextract.high.u32 %v2076
        %v2079 = vmul.u32.u64.compose %v2075, %v2070
        %v2080 = vextract.low.u32 %v2079
        %v2081 = vextract.high.u32 %v2079
        %v2082 = vmul.u32 %v2075, %v2066
        %v2083 = vadd.s32 %v2078, %v2080
        %vm2084 = vc.u32 %v2078, %v2080
        %v2085 = vadd.s32 %v2081, 1
        %v2086 = vsel %vm2084, %v2085, %v2081
        %v2087 = vadd.s32 %v2082, %v2086
        %v2088 = vadd.s32 %v2087, 536870912
        %v2089 = vshrl.u32 %v2088, 30
        %v2090 = vshll.u32 %v2089, 30
        %v2091 = vsub.s32 %v2087, %v2090
        %vm2092 = vcmp.lt.s32.totalorder %v2091, 0
        %v2093 = vsub.s32 0, %v2091
        %v2094 = vsel %vm2092, %v2093, %v2091
        %v2095 = vclz %v2094
        %v2096 = vsub.s32 %v2095, 2
        %vm2097 = vcmp.gt.s32.totalorder 0, %v2096
        %v2098 = vsel %vm2097, 0, %v2096
        %v2099 = vsub.s32 32, %v2098
        %v2100 = vshll.u32 %v2091, %v2098
        %v2101 = vshrl.u32 %v2083, %v2099
        %v2102 = vor.u32 %v2100, %v2101
        %v2103 = vsub.s32 4294967266, %v2098
        %v2104 = vadd.s32 %v2103, 127
        %v2105 = vshll.u32 %v2104, 23
        %v2106 = vor.u32 4788187, %v2105
        %v2107 = vand.u32 2147483647, %v2106
        %v2109 = vcvt.s32.f32 %v2102
        %v2110 = vmul.f32 %v2109, %v2107
        %v2111 = vxor.u32 %v2110, 2147483648
        %v2112 = vsel %vm2029, %v2111, %v2110
        %v2113 = vsub.s32 4, %v2089
        %v2114 = vsel %vm2029, %v2113, %v2089
        %v2115 = vsel %vm2028, %v841, %v2112
        %v2116 = vsel %vm2028, 0, %v2114
        %v2117 = vcosq.f32.pop %v2115
        %v2118 = vsinq.f32.pop %v2115
        %vm2119 = vweird.f32 %v841
        %v2120 = vadd.s32 %v2116, 3
        %v2121 = vand.u32 %v2120, 3
        %vm2122 = vcmp.lt.s32.totalorder %v2121, 2
        %vm2123 = vcmp.eq.s32.totalorder %v2121, 0
        %v2124 = vxor.u32 %v2118, 2147483648
        %v2125 = vsel %vm2123, %v2117, %v2124
        %vm2126 = vcmp.eq.s32.totalorder %v2121, 2
        %v2127 = vxor.u32 %v2117, 2147483648
        %v2128 = vsel %vm2126, %v2127, %v2118
        %v2129 = vsel %vm2122, %v2125, %v2128
        %v2130 = vsel %vm2119, nan, %v2129
        %v2131 = vand.u32 2147483647, %v843
        %vm2132 = vcmp.le.f32.partialorder %v2131, 0.7853982
        %vm2133 = vcmp.lt.s32.totalorder %v843, 0
        %v2134 = vand.u32 %v843, 2139095040
        %v2135 = vshrl.u32 %v2134, 23
        %v2136 = vsub.s32 %v2135, 127
        %v2137 = vand.u32 2147483647, %v843
        %v2138 = vand.u32 %v2137, 8388607
        %v2139 = vor.u32 %v2138, 8388608
        %v2140 = vsub.s32 0, %v2139
        %v2141 = vadd.s32 %v2136, 1
        %vm2142 = vcmp.gt.s32.totalorder %v2141, 0
        %v2143 = vsel %vm2142, %v2141, 0
        %v2144 = vshrl.u32 %v2143, 5
        %v2145 = vand.u32 %v2143, 31
        %v2146 = vsub.s32 32, %v2145
        %v2147 = vshrl.u32 683565275, %v2146
        %v2148 = vshll.u32 683565275, %v2145
        %v2149 = vshrl.u32 2475754826, %v2146
        %v2150 = vor.u32 %v2148, %v2149
        %v2151 = vshll.u32 2475754826, %v2145
        %v2152 = vshrl.u32 2131351028, %v2146
        %v2153 = vor.u32 %v2151, %v2152
        %v2154 = vshll.u32 2131351028, %v2145
        %v2155 = vshrl.u32 2102212464, %v2146
        %v2156 = vor.u32 %v2154, %v2155
        %v2157 = vshll.u32 2102212464, %v2145
        %v2158 = vshrl.u32 920167782, %v2146
        %v2159 = vor.u32 %v2157, %v2158
        %v2160 = vshll.u32 920167782, %v2145
        %v2161 = vshrl.u32 1326507024, %v2146
        %v2162 = vor.u32 %v2160, %v2161
        %vm2163 = vcmp.lt.s32.totalorder %v2144, 1
        %vm2164 = vcmp.lt.s32.totalorder %v2144, 2
        %vm2165 = vcmp.lt.s32.totalorder %v2144, 3
        %vm2166 = vcmp.lt.s32.totalorder %v2144, 4
        %v2167 = vsel %vm2163, %v2147, %v2150
        %v2168 = vsel %vm2166, %v2156, 2102212464
        %v2169 = vsel %vm2165, %v2153, %v2168
        %v2170 = vsel %vm2164, %v2167, %v2169
        %v2171 = vsel %vm2163, %v2150, %v2153
        %v2172 = vsel %vm2166, %v2159, 920167782
        %v2173 = vsel %vm2165, %v2156, %v2172
        %v2174 = vsel %vm2164, %v2171, %v2173
        %v2175 = vsel %vm2163, %v2153, %v2156
        %v2176 = vsel %vm2166, %v2162, 1326507024
        %v2177 = vsel %vm2165, %v2159, %v2176
        %v2178 = vsel %vm2164, %v2175, %v2177
        %v2179 = vshll.u32 %v2139, 8
        %v2180 = vmul.u32.u64.compose %v2179, %v2178
        %v2181 = vextract.low.u32 %v2180
        %v2182 = vextract.high.u32 %v2180
        %v2183 = vmul.u32.u64.compose %v2179, %v2174
        %v2184 = vextract.low.u32 %v2183
        %v2185 = vextract.high.u32 %v2183
        %v2186 = vmul.u32 %v2179, %v2170
        %v2187 = vadd.s32 %v2182, %v2184
        %vm2188 = vc.u32 %v2182, %v2184
        %v2189 = vadd.s32 %v2185, 1
        %v2190 = vsel %vm2188, %v2189, %v2185
        %v2191 = vadd.s32 %v2186, %v2190
        %v2192 = vadd.s32 %v2191, 536870912
        %v2193 = vshrl.u32 %v2192, 30
        %v2194 = vshll.u32 %v2193, 30
        %v2195 = vsub.s32 %v2191, %v2194
        %vm2196 = vcmp.lt.s32.totalorder %v2195, 0
        %v2197 = vsub.s32 0, %v2195
        %v2198 = vsel %vm2196, %v2197, %v2195
        %v2199 = vclz %v2198
        %v2200 = vsub.s32 %v2199, 2
        %vm2201 = vcmp.gt.s32.totalorder 0, %v2200
        %v2202 = vsel %vm2201, 0, %v2200
        %v2203 = vsub.s32 32, %v2202
        %v2204 = vshll.u32 %v2195, %v2202
        %v2205 = vshrl.u32 %v2187, %v2203
        %v2206 = vor.u32 %v2204, %v2205
        %v2207 = vsub.s32 4294967266, %v2202
        %v2208 = vadd.s32 %v2207, 127
        %v2209 = vshll.u32 %v2208, 23
        %v2210 = vor.u32 4788187, %v2209
        %v2211 = vand.u32 2147483647, %v2210
        %v2213 = vcvt.s32.f32 %v2206
        %v2214 = vmul.f32 %v2213, %v2211
        %v2215 = vxor.u32 %v2214, 2147483648
        %v2216 = vsel %vm2133, %v2215, %v2214
        %v2217 = vsub.s32 4, %v2193
        %v2218 = vsel %vm2133, %v2217, %v2193
        %v2219 = vsel %vm2132, %v843, %v2216
        %v2220 = vsel %vm2132, 0, %v2218
        %v2221 = vcosq.f32.pop %v2219
        %v2222 = vsinq.f32.pop %v2219
        %vm2223 = vweird.f32 %v843
        %v2224 = vadd.s32 %v2220, 3
        %v2225 = vand.u32 %v2224, 3
        %vm2226 = vcmp.lt.s32.totalorder %v2225, 2
        %vm2227 = vcmp.eq.s32.totalorder %v2225, 0
        %v2228 = vxor.u32 %v2222, 2147483648
        %v2229 = vsel %vm2227, %v2221, %v2228
        %vm2230 = vcmp.eq.s32.totalorder %v2225, 2
        %v2231 = vxor.u32 %v2221, 2147483648
        %v2232 = vsel %vm2230, %v2231, %v2222
        %v2233 = vsel %vm2226, %v2229, %v2232
        %v2234 = vsel %vm2223, nan, %v2233
        %v2235 = vand.u32 2147483647, %v912
        %vm2236 = vcmp.le.f32.partialorder %v2235, 0.7853982
        %vm2237 = vcmp.lt.s32.totalorder %v912, 0
        %v2238 = vand.u32 %v912, 2139095040
        %v2239 = vshrl.u32 %v2238, 23
        %v2240 = vsub.s32 %v2239, 127
        %v2241 = vand.u32 2147483647, %v912
        %v2242 = vand.u32 %v2241, 8388607
        %v2243 = vor.u32 %v2242, 8388608
        %v2244 = vsub.s32 0, %v2243
        %v2245 = vadd.s32 %v2240, 1
        %vm2246 = vcmp.gt.s32.totalorder %v2245, 0
        %v2247 = vsel %vm2246, %v2245, 0
        %v2248 = vshrl.u32 %v2247, 5
        %v2249 = vand.u32 %v2247, 31
        %v2250 = vsub.s32 32, %v2249
        %v2251 = vshrl.u32 683565275, %v2250
        %v2252 = vshll.u32 683565275, %v2249
        %v2253 = vshrl.u32 2475754826, %v2250
        %v2254 = vor.u32 %v2252, %v2253
        %v2255 = vshll.u32 2475754826, %v2249
        %v2256 = vshrl.u32 2131351028, %v2250
        %v2257 = vor.u32 %v2255, %v2256
        %v2258 = vshll.u32 2131351028, %v2249
        %v2259 = vshrl.u32 2102212464, %v2250
        %v2260 = vor.u32 %v2258, %v2259
        %v2261 = vshll.u32 2102212464, %v2249
        %v2262 = vshrl.u32 920167782, %v2250
        %v2263 = vor.u32 %v2261, %v2262
        %v2264 = vshll.u32 920167782, %v2249
        %v2265 = vshrl.u32 1326507024, %v2250
        %v2266 = vor.u32 %v2264, %v2265
        %vm2267 = vcmp.lt.s32.totalorder %v2248, 1
        %vm2268 = vcmp.lt.s32.totalorder %v2248, 2
        %vm2269 = vcmp.lt.s32.totalorder %v2248, 3
        %vm2270 = vcmp.lt.s32.totalorder %v2248, 4
        %v2271 = vsel %vm2267, %v2251, %v2254
        %v2272 = vsel %vm2270, %v2260, 2102212464
        %v2273 = vsel %vm2269, %v2257, %v2272
        %v2274 = vsel %vm2268, %v2271, %v2273
        %v2275 = vsel %vm2267, %v2254, %v2257
        %v2276 = vsel %vm2270, %v2263, 920167782
        %v2277 = vsel %vm2269, %v2260, %v2276
        %v2278 = vsel %vm2268, %v2275, %v2277
        %v2279 = vsel %vm2267, %v2257, %v2260
        %v2280 = vsel %vm2270, %v2266, 1326507024
        %v2281 = vsel %vm2269, %v2263, %v2280
        %v2282 = vsel %vm2268, %v2279, %v2281
        %v2283 = vshll.u32 %v2243, 8
        %v2284 = vmul.u32.u64.compose %v2283, %v2282
        %v2285 = vextract.low.u32 %v2284
        %v2286 = vextract.high.u32 %v2284
        %v2287 = vmul.u32.u64.compose %v2283, %v2278
        %v2288 = vextract.low.u32 %v2287
        %v2289 = vextract.high.u32 %v2287
        %v2290 = vmul.u32 %v2283, %v2274
        %v2291 = vadd.s32 %v2286, %v2288
        %vm2292 = vc.u32 %v2286, %v2288
        %v2293 = vadd.s32 %v2289, 1
        %v2294 = vsel %vm2292, %v2293, %v2289
        %v2295 = vadd.s32 %v2290, %v2294
        %v2296 = vadd.s32 %v2295, 536870912
        %v2297 = vshrl.u32 %v2296, 30
        %v2298 = vshll.u32 %v2297, 30
        %v2299 = vsub.s32 %v2295, %v2298
        %vm2300 = vcmp.lt.s32.totalorder %v2299, 0
        %v2301 = vsub.s32 0, %v2299
        %v2302 = vsel %vm2300, %v2301, %v2299
        %v2303 = vclz %v2302
        %v2304 = vsub.s32 %v2303, 2
        %vm2305 = vcmp.gt.s32.totalorder 0, %v2304
        %v2306 = vsel %vm2305, 0, %v2304
        %v2307 = vsub.s32 32, %v2306
        %v2308 = vshll.u32 %v2299, %v2306
        %v2309 = vshrl.u32 %v2291, %v2307
        %v2310 = vor.u32 %v2308, %v2309
        %v2311 = vsub.s32 4294967266, %v2306
        %v2312 = vadd.s32 %v2311, 127
        %v2313 = vshll.u32 %v2312, 23
        %v2314 = vor.u32 4788187, %v2313
        %v2315 = vand.u32 2147483647, %v2314
        %v2317 = vcvt.s32.f32 %v2310
        %v2318 = vmul.f32 %v2317, %v2315
        %v2319 = vxor.u32 %v2318, 2147483648
        %v2320 = vsel %vm2237, %v2319, %v2318
        %v2321 = vsub.s32 4, %v2297
        %v2322 = vsel %vm2237, %v2321, %v2297
        %v2323 = vsel %vm2236, %v912, %v2320
        %v2324 = vsel %vm2236, 0, %v2322
        %v2325 = vcosq.f32.pop %v2323
        %v2326 = vsinq.f32.pop %v2323
        %vm2327 = vweird.f32 %v912
        %v2328 = vadd.s32 %v2324, 3
        %v2329 = vand.u32 %v2328, 3
        %vm2330 = vcmp.lt.s32.totalorder %v2329, 2
        %vm2331 = vcmp.eq.s32.totalorder %v2329, 0
        %v2332 = vxor.u32 %v2326, 2147483648
        %v2333 = vsel %vm2331, %v2325, %v2332
        %vm2334 = vcmp.eq.s32.totalorder %v2329, 2
        %v2335 = vxor.u32 %v2325, 2147483648
        %v2336 = vsel %vm2334, %v2335, %v2326
        %v2337 = vsel %vm2330, %v2333, %v2336
        %v2338 = vsel %vm2327, nan, %v2337
        %v2339 = vand.u32 2147483647, %v914
        %vm2340 = vcmp.le.f32.partialorder %v2339, 0.7853982
        %vm2341 = vcmp.lt.s32.totalorder %v914, 0
        %v2342 = vand.u32 %v914, 2139095040
        %v2343 = vshrl.u32 %v2342, 23
        %v2344 = vsub.s32 %v2343, 127
        %v2345 = vand.u32 2147483647, %v914
        %v2346 = vand.u32 %v2345, 8388607
        %v2347 = vor.u32 %v2346, 8388608
        %v2348 = vsub.s32 0, %v2347
        %v2349 = vadd.s32 %v2344, 1
        %vm2350 = vcmp.gt.s32.totalorder %v2349, 0
        %v2351 = vsel %vm2350, %v2349, 0
        %v2352 = vshrl.u32 %v2351, 5
        %v2353 = vand.u32 %v2351, 31
        %v2354 = vsub.s32 32, %v2353
        %v2355 = vshrl.u32 683565275, %v2354
        %v2356 = vshll.u32 683565275, %v2353
        %v2357 = vshrl.u32 2475754826, %v2354
        %v2358 = vor.u32 %v2356, %v2357
        %v2359 = vshll.u32 2475754826, %v2353
        %v2360 = vshrl.u32 2131351028, %v2354
        %v2361 = vor.u32 %v2359, %v2360
        %v2362 = vshll.u32 2131351028, %v2353
        %v2363 = vshrl.u32 2102212464, %v2354
        %v2364 = vor.u32 %v2362, %v2363
        %v2365 = vshll.u32 2102212464, %v2353
        %v2366 = vshrl.u32 920167782, %v2354
        %v2367 = vor.u32 %v2365, %v2366
        %v2368 = vshll.u32 920167782, %v2353
        %v2369 = vshrl.u32 1326507024, %v2354
        %v2370 = vor.u32 %v2368, %v2369
        %vm2371 = vcmp.lt.s32.totalorder %v2352, 1
        %vm2372 = vcmp.lt.s32.totalorder %v2352, 2
        %vm2373 = vcmp.lt.s32.totalorder %v2352, 3
        %vm2374 = vcmp.lt.s32.totalorder %v2352, 4
        %v2375 = vsel %vm2371, %v2355, %v2358
        %v2376 = vsel %vm2374, %v2364, 2102212464
        %v2377 = vsel %vm2373, %v2361, %v2376
        %v2378 = vsel %vm2372, %v2375, %v2377
        %v2379 = vsel %vm2371, %v2358, %v2361
        %v2380 = vsel %vm2374, %v2367, 920167782
        %v2381 = vsel %vm2373, %v2364, %v2380
        %v2382 = vsel %vm2372, %v2379, %v2381
        %v2383 = vsel %vm2371, %v2361, %v2364
        %v2384 = vsel %vm2374, %v2370, 1326507024
        %v2385 = vsel %vm2373, %v2367, %v2384
        %v2386 = vsel %vm2372, %v2383, %v2385
        %v2387 = vshll.u32 %v2347, 8
        %v2388 = vmul.u32.u64.compose %v2387, %v2386
        %v2389 = vextract.low.u32 %v2388
        %v2390 = vextract.high.u32 %v2388
        %v2391 = vmul.u32.u64.compose %v2387, %v2382
        %v2392 = vextract.low.u32 %v2391
        %v2393 = vextract.high.u32 %v2391
        %v2394 = vmul.u32 %v2387, %v2378
        %v2395 = vadd.s32 %v2390, %v2392
        %vm2396 = vc.u32 %v2390, %v2392
        %v2397 = vadd.s32 %v2393, 1
        %v2398 = vsel %vm2396, %v2397, %v2393
        %v2399 = vadd.s32 %v2394, %v2398
        %v2400 = vadd.s32 %v2399, 536870912
        %v2401 = vshrl.u32 %v2400, 30
        %v2402 = vshll.u32 %v2401, 30
        %v2403 = vsub.s32 %v2399, %v2402
        %vm2404 = vcmp.lt.s32.totalorder %v2403, 0
        %v2405 = vsub.s32 0, %v2403
        %v2406 = vsel %vm2404, %v2405, %v2403
        %v2407 = vclz %v2406
        %v2408 = vsub.s32 %v2407, 2
        %vm2409 = vcmp.gt.s32.totalorder 0, %v2408
        %v2410 = vsel %vm2409, 0, %v2408
        %v2411 = vsub.s32 32, %v2410
        %v2412 = vshll.u32 %v2403, %v2410
        %v2413 = vshrl.u32 %v2395, %v2411
        %v2414 = vor.u32 %v2412, %v2413
        %v2415 = vsub.s32 4294967266, %v2410
        %v2416 = vadd.s32 %v2415, 127
        %v2417 = vshll.u32 %v2416, 23
        %v2418 = vor.u32 4788187, %v2417
        %v2419 = vand.u32 2147483647, %v2418
        %v2421 = vcvt.s32.f32 %v2414
        %v2422 = vmul.f32 %v2421, %v2419
        %v2423 = vxor.u32 %v2422, 2147483648
        %v2424 = vsel %vm2341, %v2423, %v2422
        %v2425 = vsub.s32 4, %v2401
        %v2426 = vsel %vm2341, %v2425, %v2401
        %v2427 = vsel %vm2340, %v914, %v2424
        %v2428 = vsel %vm2340, 0, %v2426
        %v2429 = vcosq.f32.pop %v2427
        %v2430 = vsinq.f32.pop %v2427
        %vm2431 = vweird.f32 %v914
        %v2432 = vadd.s32 %v2428, 3
        %v2433 = vand.u32 %v2432, 3
        %vm2434 = vcmp.lt.s32.totalorder %v2433, 2
        %vm2435 = vcmp.eq.s32.totalorder %v2433, 0
        %v2436 = vxor.u32 %v2430, 2147483648
        %v2437 = vsel %vm2435, %v2429, %v2436
        %vm2438 = vcmp.eq.s32.totalorder %v2433, 2
        %v2439 = vxor.u32 %v2429, 2147483648
        %v2440 = vsel %vm2438, %v2439, %v2430
        %v2441 = vsel %vm2434, %v2437, %v2440
        %v2442 = vsel %vm2431, nan, %v2441
        %v2443 = vand.u32 2147483647, %v983
        %vm2444 = vcmp.le.f32.partialorder %v2443, 0.7853982
        %vm2445 = vcmp.lt.s32.totalorder %v983, 0
        %v2446 = vand.u32 %v983, 2139095040
        %v2447 = vshrl.u32 %v2446, 23
        %v2448 = vsub.s32 %v2447, 127
        %v2449 = vand.u32 2147483647, %v983
        %v2450 = vand.u32 %v2449, 8388607
        %v2451 = vor.u32 %v2450, 8388608
        %v2452 = vsub.s32 0, %v2451
        %v2453 = vadd.s32 %v2448, 1
        %vm2454 = vcmp.gt.s32.totalorder %v2453, 0
        %v2455 = vsel %vm2454, %v2453, 0
        %v2456 = vshrl.u32 %v2455, 5
        %v2457 = vand.u32 %v2455, 31
        %v2458 = vsub.s32 32, %v2457
        %v2459 = vshrl.u32 683565275, %v2458
        %v2460 = vshll.u32 683565275, %v2457
        %v2461 = vshrl.u32 2475754826, %v2458
        %v2462 = vor.u32 %v2460, %v2461
        %v2463 = vshll.u32 2475754826, %v2457
        %v2464 = vshrl.u32 2131351028, %v2458
        %v2465 = vor.u32 %v2463, %v2464
        %v2466 = vshll.u32 2131351028, %v2457
        %v2467 = vshrl.u32 2102212464, %v2458
        %v2468 = vor.u32 %v2466, %v2467
        %v2469 = vshll.u32 2102212464, %v2457
        %v2470 = vshrl.u32 920167782, %v2458
        %v2471 = vor.u32 %v2469, %v2470
        %v2472 = vshll.u32 920167782, %v2457
        %v2473 = vshrl.u32 1326507024, %v2458
        %v2474 = vor.u32 %v2472, %v2473
        %vm2475 = vcmp.lt.s32.totalorder %v2456, 1
        %vm2476 = vcmp.lt.s32.totalorder %v2456, 2
        %vm2477 = vcmp.lt.s32.totalorder %v2456, 3
        %vm2478 = vcmp.lt.s32.totalorder %v2456, 4
        %v2479 = vsel %vm2475, %v2459, %v2462
        %v2480 = vsel %vm2478, %v2468, 2102212464
        %v2481 = vsel %vm2477, %v2465, %v2480
        %v2482 = vsel %vm2476, %v2479, %v2481
        %v2483 = vsel %vm2475, %v2462, %v2465
        %v2484 = vsel %vm2478, %v2471, 920167782
        %v2485 = vsel %vm2477, %v2468, %v2484
        %v2486 = vsel %vm2476, %v2483, %v2485
        %v2487 = vsel %vm2475, %v2465, %v2468
        %v2488 = vsel %vm2478, %v2474, 1326507024
        %v2489 = vsel %vm2477, %v2471, %v2488
        %v2490 = vsel %vm2476, %v2487, %v2489
        %v2491 = vshll.u32 %v2451, 8
        %v2492 = vmul.u32.u64.compose %v2491, %v2490
        %v2493 = vextract.low.u32 %v2492
        %v2494 = vextract.high.u32 %v2492
        %v2495 = vmul.u32.u64.compose %v2491, %v2486
        %v2496 = vextract.low.u32 %v2495
        %v2497 = vextract.high.u32 %v2495
        %v2498 = vmul.u32 %v2491, %v2482
        %v2499 = vadd.s32 %v2494, %v2496
        %vm2500 = vc.u32 %v2494, %v2496
        %v2501 = vadd.s32 %v2497, 1
        %v2502 = vsel %vm2500, %v2501, %v2497
        %v2503 = vadd.s32 %v2498, %v2502
        %v2504 = vadd.s32 %v2503, 536870912
        %v2505 = vshrl.u32 %v2504, 30
        %v2506 = vshll.u32 %v2505, 30
        %v2507 = vsub.s32 %v2503, %v2506
        %vm2508 = vcmp.lt.s32.totalorder %v2507, 0
        %v2509 = vsub.s32 0, %v2507
        %v2510 = vsel %vm2508, %v2509, %v2507
        %v2511 = vclz %v2510
        %v2512 = vsub.s32 %v2511, 2
        %vm2513 = vcmp.gt.s32.totalorder 0, %v2512
        %v2514 = vsel %vm2513, 0, %v2512
        %v2515 = vsub.s32 32, %v2514
        %v2516 = vshll.u32 %v2507, %v2514
        %v2517 = vshrl.u32 %v2499, %v2515
        %v2518 = vor.u32 %v2516, %v2517
        %v2519 = vsub.s32 4294967266, %v2514
        %v2520 = vadd.s32 %v2519, 127
        %v2521 = vshll.u32 %v2520, 23
        %v2522 = vor.u32 4788187, %v2521
        %v2523 = vand.u32 2147483647, %v2522
        %v2525 = vcvt.s32.f32 %v2518
        %v2526 = vmul.f32 %v2525, %v2523
        %v2527 = vxor.u32 %v2526, 2147483648
        %v2528 = vsel %vm2445, %v2527, %v2526
        %v2529 = vsub.s32 4, %v2505
        %v2530 = vsel %vm2445, %v2529, %v2505
        %v2531 = vsel %vm2444, %v983, %v2528
        %v2532 = vsel %vm2444, 0, %v2530
        %v2533 = vcosq.f32.pop %v2531
        %v2534 = vsinq.f32.pop %v2531
        %vm2535 = vweird.f32 %v983
        %v2536 = vadd.s32 %v2532, 3
        %v2537 = vand.u32 %v2536, 3
        %vm2538 = vcmp.lt.s32.totalorder %v2537, 2
        %vm2539 = vcmp.eq.s32.totalorder %v2537, 0
        %v2540 = vxor.u32 %v2534, 2147483648
        %v2541 = vsel %vm2539, %v2533, %v2540
        %vm2542 = vcmp.eq.s32.totalorder %v2537, 2
        %v2543 = vxor.u32 %v2533, 2147483648
        %v2544 = vsel %vm2542, %v2543, %v2534
        %v2545 = vsel %vm2538, %v2541, %v2544
        %v2546 = vsel %vm2535, nan, %v2545
        %v2547 = vand.u32 2147483647, %v985
        %vm2548 = vcmp.le.f32.partialorder %v2547, 0.7853982
        %vm2549 = vcmp.lt.s32.totalorder %v985, 0
        %v2550 = vand.u32 %v985, 2139095040
        %v2551 = vshrl.u32 %v2550, 23
        %v2552 = vsub.s32 %v2551, 127
        %v2553 = vand.u32 2147483647, %v985
        %v2554 = vand.u32 %v2553, 8388607
        %v2555 = vor.u32 %v2554, 8388608
        %v2556 = vsub.s32 0, %v2555
        %v2557 = vadd.s32 %v2552, 1
        %vm2558 = vcmp.gt.s32.totalorder %v2557, 0
        %v2559 = vsel %vm2558, %v2557, 0
        %v2560 = vshrl.u32 %v2559, 5
        %v2561 = vand.u32 %v2559, 31
        %v2562 = vsub.s32 32, %v2561
        %v2563 = vshrl.u32 683565275, %v2562
        %v2564 = vshll.u32 683565275, %v2561
        %v2565 = vshrl.u32 2475754826, %v2562
        %v2566 = vor.u32 %v2564, %v2565
        %v2567 = vshll.u32 2475754826, %v2561
        %v2568 = vshrl.u32 2131351028, %v2562
        %v2569 = vor.u32 %v2567, %v2568
        %v2570 = vshll.u32 2131351028, %v2561
        %v2571 = vshrl.u32 2102212464, %v2562
        %v2572 = vor.u32 %v2570, %v2571
        %v2573 = vshll.u32 2102212464, %v2561
        %v2574 = vshrl.u32 920167782, %v2562
        %v2575 = vor.u32 %v2573, %v2574
        %v2576 = vshll.u32 920167782, %v2561
        %v2577 = vshrl.u32 1326507024, %v2562
        %v2578 = vor.u32 %v2576, %v2577
        %vm2579 = vcmp.lt.s32.totalorder %v2560, 1
        %vm2580 = vcmp.lt.s32.totalorder %v2560, 2
        %vm2581 = vcmp.lt.s32.totalorder %v2560, 3
        %vm2582 = vcmp.lt.s32.totalorder %v2560, 4
        %v2583 = vsel %vm2579, %v2563, %v2566
        %v2584 = vsel %vm2582, %v2572, 2102212464
        %v2585 = vsel %vm2581, %v2569, %v2584
        %v2586 = vsel %vm2580, %v2583, %v2585
        %v2587 = vsel %vm2579, %v2566, %v2569
        %v2588 = vsel %vm2582, %v2575, 920167782
        %v2589 = vsel %vm2581, %v2572, %v2588
        %v2590 = vsel %vm2580, %v2587, %v2589
        %v2591 = vsel %vm2579, %v2569, %v2572
        %v2592 = vsel %vm2582, %v2578, 1326507024
        %v2593 = vsel %vm2581, %v2575, %v2592
        %v2594 = vsel %vm2580, %v2591, %v2593
        %v2595 = vshll.u32 %v2555, 8
        %v2596 = vmul.u32.u64.compose %v2595, %v2594
        %v2597 = vextract.low.u32 %v2596
        %v2598 = vextract.high.u32 %v2596
        %v2599 = vmul.u32.u64.compose %v2595, %v2590
        %v2600 = vextract.low.u32 %v2599
        %v2601 = vextract.high.u32 %v2599
        %v2602 = vmul.u32 %v2595, %v2586
        %v2603 = vadd.s32 %v2598, %v2600
        %vm2604 = vc.u32 %v2598, %v2600
        %v2605 = vadd.s32 %v2601, 1
        %v2606 = vsel %vm2604, %v2605, %v2601
        %v2607 = vadd.s32 %v2602, %v2606
        %v2608 = vadd.s32 %v2607, 536870912
        %v2609 = vshrl.u32 %v2608, 30
        %v2610 = vshll.u32 %v2609, 30
        %v2611 = vsub.s32 %v2607, %v2610
        %vm2612 = vcmp.lt.s32.totalorder %v2611, 0
        %v2613 = vsub.s32 0, %v2611
        %v2614 = vsel %vm2612, %v2613, %v2611
        %v2615 = vclz %v2614
        %v2616 = vsub.s32 %v2615, 2
        %vm2617 = vcmp.gt.s32.totalorder 0, %v2616
        %v2618 = vsel %vm2617, 0, %v2616
        %v2619 = vsub.s32 32, %v2618
        %v2620 = vshll.u32 %v2611, %v2618
        %v2621 = vshrl.u32 %v2603, %v2619
        %v2622 = vor.u32 %v2620, %v2621
        %v2623 = vsub.s32 4294967266, %v2618
        %v2624 = vadd.s32 %v2623, 127
        %v2625 = vshll.u32 %v2624, 23
        %v2626 = vor.u32 4788187, %v2625
        %v2627 = vand.u32 2147483647, %v2626
        %v2629 = vcvt.s32.f32 %v2622
        %v2630 = vmul.f32 %v2629, %v2627
        %v2631 = vxor.u32 %v2630, 2147483648
        %v2632 = vsel %vm2549, %v2631, %v2630
        %v2633 = vsub.s32 4, %v2609
        %v2634 = vsel %vm2549, %v2633, %v2609
        %v2635 = vsel %vm2548, %v985, %v2632
        %v2636 = vsel %vm2548, 0, %v2634
        %v2637 = vcosq.f32.pop %v2635
        %v2638 = vsinq.f32.pop %v2635
        %vm2639 = vweird.f32 %v985
        %v2640 = vadd.s32 %v2636, 3
        %v2641 = vand.u32 %v2640, 3
        %vm2642 = vcmp.lt.s32.totalorder %v2641, 2
        %vm2643 = vcmp.eq.s32.totalorder %v2641, 0
        %v2644 = vxor.u32 %v2638, 2147483648
        %v2645 = vsel %vm2643, %v2637, %v2644
        %vm2646 = vcmp.eq.s32.totalorder %v2641, 2
        %v2647 = vxor.u32 %v2637, 2147483648
        %v2648 = vsel %vm2646, %v2647, %v2638
        %v2649 = vsel %vm2642, %v2645, %v2648
        %v2650 = vsel %vm2639, nan, %v2649
        %v2651 = vld [vmem:[%s3] sm:$0xff]
        %v2652 = vld [vmem:[%s4] sm:$0xff]
        %2654 = vset.pattern.permute.xlu0 0
        %2655 = vperm.xlu0 %2654, %v2652
        %v2656 = vpop.permute.xlu0 %2655
        %vm2658 = vcmask 64512
        %v2660 = vsel %vm2658, %v2651, 0
        %2662 = vmatprep.subr.mxu0 0.0
        %2663 = vmatpush1.msra.mxu0 0.0
        %2664 = vmatprep.subr.mxu0 0.0
        %2665 = vmatpush1.msra.mxu0 0.0
        %2666 = vmatprep.subr.mxu0 0.0
        %2667 = vmatpush1.msra.mxu0 0.0
        %2668 = vmatprep.subr.mxu0 0.0
        %2669 = vmatpush1.msra.mxu0 0.0
        %2670 = vmatprep.subr.mxu0 0.0
        %2671 = vmatpush1.msra.mxu0 0.0
        %2672 = vmatprep.subr.mxu0 0.0
        %2673 = vmatpush1.msra.mxu0 0.0
        %2674 = vmatprep.subr.mxu0 0.0
        %2675 = vmatpush1.msra.mxu0 0.0
        %2676 = vmatprep.subr.mxu0 0.0
        %2677 = vmatpush1.msra.mxu0 0.0
        %2678 = vmatprep.subr.mxu0 0.0
        %2679 = vmatpush1.msra.mxu0 0.0
        %2680 = vmatprep.subr.mxu0 0.0
        %2681 = vmatpush1.msra.mxu0 0.0
        %2682 = vmatprep.subr.mxu0 0.0
        %2683 = vmatpush1.msra.mxu0 0.0
        %2684 = vmatprep.subr.mxu0 0.0
        %2685 = vmatpush1.msra.mxu0 0.0
        %2686 = vmatprep.subr.mxu0 0.0
        %2687 = vmatpush1.msra.mxu0 0.0
        %2688 = vmatprep.subr.mxu0 0.0
        %2689 = vmatpush1.msra.mxu0 0.0
        %2690 = vmatprep.subr.mxu0 0.0
        %2691 = vmatpush1.msra.mxu0 0.0
        %2692 = vmatprep.subr.mxu0 %v1194
        %2693 = vmatpush1.msra.mxu0 %v1090
        %2694 = vmatprep.subr.mxu0 0.0
        %2695 = vmatpush2.msra.mxu0 0.0
        %2696 = vmatprep.subr.mxu0 0.0
        %2697 = vmatpush2.msra.mxu0 0.0
        %2698 = vmatprep.subr.mxu0 0.0
        %2699 = vmatpush2.msra.mxu0 0.0
        %2700 = vmatprep.subr.mxu0 0.0
        %2701 = vmatpush2.msra.mxu0 0.0
        %2702 = vmatprep.subr.mxu0 0.0
        %2703 = vmatpush2.msra.mxu0 0.0
        %2704 = vmatprep.subr.mxu0 0.0
        %2705 = vmatpush2.msra.mxu0 0.0
        %2706 = vmatprep.subr.mxu0 0.0
        %2707 = vmatpush2.msra.mxu0 0.0
        %2708 = vmatprep.subr.mxu0 0.0
        %2709 = vmatpush2.msra.mxu0 0.0
        %2710 = vmatprep.subr.mxu0 0.0
        %2711 = vmatpush2.msra.mxu0 0.0
        %2712 = vmatprep.subr.mxu0 0.0
        %2713 = vmatpush2.msra.mxu0 0.0
        %2714 = vmatprep.subr.mxu0 0.0
        %2715 = vmatpush2.msra.mxu0 0.0
        %2716 = vmatprep.subr.mxu0 0.0
        %2717 = vmatpush2.msra.mxu0 0.0
        %2718 = vmatprep.subr.mxu0 0.0
        %2719 = vmatpush2.msra.mxu0 0.0
        %2720 = vmatprep.subr.mxu0 0.0
        %2721 = vmatpush2.msra.mxu0 0.0
        %2722 = vmatprep.subr.mxu0 0.0
        %2723 = vmatpush2.msra.mxu0 0.0
        %2724 = vmatprep.subr.mxu0 0.0
        %2725 = vmatpush2.msra.mxu0 0.0
        %2726 = vmatprep.mubr.f32.mxu0 0.0
        %2727 = vmatmul.mubr.f32.gmra.mxu0 %v2660
        %v2728 = vpop.f32.mrf.mxu0
        %v2729 = vadd.f32 %v2656, %v2728
        %v2730 = vpop.f32.mrf.mxu0
        %v2731 = vadd.f32 %v2656, %v2730
        %2732 = vdwg.mxu0
        %2733 = vmatprep.subr.mxu0 0.0
        %2734 = vmatpush1.msra.mxu0 0.0
        %2735 = vmatprep.subr.mxu0 0.0
        %2736 = vmatpush1.msra.mxu0 0.0
        %2737 = vmatprep.subr.mxu0 0.0
        %2738 = vmatpush1.msra.mxu0 0.0
        %2739 = vmatprep.subr.mxu0 0.0
        %2740 = vmatpush1.msra.mxu0 0.0
        %2741 = vmatprep.subr.mxu0 0.0
        %2742 = vmatpush1.msra.mxu0 0.0
        %2743 = vmatprep.subr.mxu0 0.0
        %2744 = vmatpush1.msra.mxu0 0.0
        %2745 = vmatprep.subr.mxu0 0.0
        %2746 = vmatpush1.msra.mxu0 0.0
        %2747 = vmatprep.subr.mxu0 0.0
        %2748 = vmatpush1.msra.mxu0 0.0
        %2749 = vmatprep.subr.mxu0 0.0
        %2750 = vmatpush1.msra.mxu0 0.0
        %2751 = vmatprep.subr.mxu0 0.0
        %2752 = vmatpush1.msra.mxu0 0.0
        %2753 = vmatprep.subr.mxu0 0.0
        %2754 = vmatpush1.msra.mxu0 0.0
        %2755 = vmatprep.subr.mxu0 0.0
        %2756 = vmatpush1.msra.mxu0 0.0
        %2757 = vmatprep.subr.mxu0 0.0
        %2758 = vmatpush1.msra.mxu0 0.0
        %2759 = vmatprep.subr.mxu0 0.0
        %2760 = vmatpush1.msra.mxu0 0.0
        %2761 = vmatprep.subr.mxu0 0.0
        %2762 = vmatpush1.msra.mxu0 0.0
        %2763 = vmatprep.subr.mxu0 %v1402
        %2764 = vmatpush1.msra.mxu0 %v1298
        %2765 = vmatprep.subr.mxu0 0.0
        %2766 = vmatpush2.msra.mxu0 0.0
        %2767 = vmatprep.subr.mxu0 0.0
        %2768 = vmatpush2.msra.mxu0 0.0
        %2769 = vmatprep.subr.mxu0 0.0
        %2770 = vmatpush2.msra.mxu0 0.0
        %2771 = vmatprep.subr.mxu0 0.0
        %2772 = vmatpush2.msra.mxu0 0.0
        %2773 = vmatprep.subr.mxu0 0.0
        %2774 = vmatpush2.msra.mxu0 0.0
        %2775 = vmatprep.subr.mxu0 0.0
        %2776 = vmatpush2.msra.mxu0 0.0
        %2777 = vmatprep.subr.mxu0 0.0
        %2778 = vmatpush2.msra.mxu0 0.0
        %2779 = vmatprep.subr.mxu0 0.0
        %2780 = vmatpush2.msra.mxu0 0.0
        %2781 = vmatprep.subr.mxu0 0.0
        %2782 = vmatpush2.msra.mxu0 0.0
        %2783 = vmatprep.subr.mxu0 0.0
        %2784 = vmatpush2.msra.mxu0 0.0
        %2785 = vmatprep.subr.mxu0 0.0
        %2786 = vmatpush2.msra.mxu0 0.0
        %2787 = vmatprep.subr.mxu0 0.0
        %2788 = vmatpush2.msra.mxu0 0.0
        %2789 = vmatprep.subr.mxu0 0.0
        %2790 = vmatpush2.msra.mxu0 0.0
        %2791 = vmatprep.subr.mxu0 0.0
        %2792 = vmatpush2.msra.mxu0 0.0
        %2793 = vmatprep.subr.mxu0 0.0
        %2794 = vmatpush2.msra.mxu0 0.0
        %2795 = vmatprep.subr.mxu0 0.0
        %2796 = vmatpush2.msra.mxu0 0.0
        %2797 = vmatprep.mubr.f32.mxu0 0.0
        %2798 = vmatmul.mubr.f32.gmra.mxu0 %v2660
        %v2799 = vpop.f32.mrf.mxu0
        %v2800 = vadd.f32 %v2656, %v2799
        %v2801 = vpop.f32.mrf.mxu0
        %v2802 = vadd.f32 %v2656, %v2801
        %2803 = vdwg.mxu0
        %2804 = vmatprep.subr.mxu0 0.0
        %2805 = vmatpush1.msra.mxu0 0.0
        %2806 = vmatprep.subr.mxu0 0.0
        %2807 = vmatpush1.msra.mxu0 0.0
        %2808 = vmatprep.subr.mxu0 0.0
        %2809 = vmatpush1.msra.mxu0 0.0
        %2810 = vmatprep.subr.mxu0 0.0
        %2811 = vmatpush1.msra.mxu0 0.0
        %2812 = vmatprep.subr.mxu0 0.0
        %2813 = vmatpush1.msra.mxu0 0.0
        %2814 = vmatprep.subr.mxu0 0.0
        %2815 = vmatpush1.msra.mxu0 0.0
        %2816 = vmatprep.subr.mxu0 0.0
        %2817 = vmatpush1.msra.mxu0 0.0
        %2818 = vmatprep.subr.mxu0 0.0
        %2819 = vmatpush1.msra.mxu0 0.0
        %2820 = vmatprep.subr.mxu0 0.0
        %2821 = vmatpush1.msra.mxu0 0.0
        %2822 = vmatprep.subr.mxu0 0.0
        %2823 = vmatpush1.msra.mxu0 0.0
        %2824 = vmatprep.subr.mxu0 0.0
        %2825 = vmatpush1.msra.mxu0 0.0
        %2826 = vmatprep.subr.mxu0 0.0
        %2827 = vmatpush1.msra.mxu0 0.0
        %2828 = vmatprep.subr.mxu0 0.0
        %2829 = vmatpush1.msra.mxu0 0.0
        %2830 = vmatprep.subr.mxu0 0.0
        %2831 = vmatpush1.msra.mxu0 0.0
        %2832 = vmatprep.subr.mxu0 0.0
        %2833 = vmatpush1.msra.mxu0 0.0
        %2834 = vmatprep.subr.mxu0 %v1610
        %2835 = vmatpush1.msra.mxu0 %v1506
        %2836 = vmatprep.subr.mxu0 0.0
        %2837 = vmatpush2.msra.mxu0 0.0
        %2838 = vmatprep.subr.mxu0 0.0
        %2839 = vmatpush2.msra.mxu0 0.0
        %2840 = vmatprep.subr.mxu0 0.0
        %2841 = vmatpush2.msra.mxu0 0.0
        %2842 = vmatprep.subr.mxu0 0.0
        %2843 = vmatpush2.msra.mxu0 0.0
        %2844 = vmatprep.subr.mxu0 0.0
        %2845 = vmatpush2.msra.mxu0 0.0
        %2846 = vmatprep.subr.mxu0 0.0
        %2847 = vmatpush2.msra.mxu0 0.0
        %2848 = vmatprep.subr.mxu0 0.0
        %2849 = vmatpush2.msra.mxu0 0.0
        %2850 = vmatprep.subr.mxu0 0.0
        %2851 = vmatpush2.msra.mxu0 0.0
        %2852 = vmatprep.subr.mxu0 0.0
        %2853 = vmatpush2.msra.mxu0 0.0
        %2854 = vmatprep.subr.mxu0 0.0
        %2855 = vmatpush2.msra.mxu0 0.0
        %2856 = vmatprep.subr.mxu0 0.0
        %2857 = vmatpush2.msra.mxu0 0.0
        %2858 = vmatprep.subr.mxu0 0.0
        %2859 = vmatpush2.msra.mxu0 0.0
        %2860 = vmatprep.subr.mxu0 0.0
        %2861 = vmatpush2.msra.mxu0 0.0
        %2862 = vmatprep.subr.mxu0 0.0
        %2863 = vmatpush2.msra.mxu0 0.0
        %2864 = vmatprep.subr.mxu0 0.0
        %2865 = vmatpush2.msra.mxu0 0.0
        %2866 = vmatprep.subr.mxu0 0.0
        %2867 = vmatpush2.msra.mxu0 0.0
        %2868 = vmatprep.mubr.f32.mxu0 0.0
        %2869 = vmatmul.mubr.f32.gmra.mxu0 %v2660
        %v2870 = vpop.f32.mrf.mxu0
        %v2871 = vadd.f32 %v2656, %v2870
        %v2872 = vpop.f32.mrf.mxu0
        %v2873 = vadd.f32 %v2656, %v2872
        %2874 = vdwg.mxu0
        %2875 = vmatprep.subr.mxu0 0.0
        %2876 = vmatpush1.msra.mxu0 0.0
        %2877 = vmatprep.subr.mxu0 0.0
        %2878 = vmatpush1.msra.mxu0 0.0
        %2879 = vmatprep.subr.mxu0 0.0
        %2880 = vmatpush1.msra.mxu0 0.0
        %2881 = vmatprep.subr.mxu0 0.0
        %2882 = vmatpush1.msra.mxu0 0.0
        %2883 = vmatprep.subr.mxu0 0.0
        %2884 = vmatpush1.msra.mxu0 0.0
        %2885 = vmatprep.subr.mxu0 0.0
        %2886 = vmatpush1.msra.mxu0 0.0
        %2887 = vmatprep.subr.mxu0 0.0
        %2888 = vmatpush1.msra.mxu0 0.0
        %2889 = vmatprep.subr.mxu0 0.0
        %2890 = vmatpush1.msra.mxu0 0.0
        %2891 = vmatprep.subr.mxu0 0.0
        %2892 = vmatpush1.msra.mxu0 0.0
        %2893 = vmatprep.subr.mxu0 0.0
        %2894 = vmatpush1.msra.mxu0 0.0
        %2895 = vmatprep.subr.mxu0 0.0
        %2896 = vmatpush1.msra.mxu0 0.0
        %2897 = vmatprep.subr.mxu0 0.0
        %2898 = vmatpush1.msra.mxu0 0.0
        %2899 = vmatprep.subr.mxu0 0.0
        %2900 = vmatpush1.msra.mxu0 0.0
        %2901 = vmatprep.subr.mxu0 0.0
        %2902 = vmatpush1.msra.mxu0 0.0
        %2903 = vmatprep.subr.mxu0 0.0
        %2904 = vmatpush1.msra.mxu0 0.0
        %2905 = vmatprep.subr.mxu0 %v1818
        %2906 = vmatpush1.msra.mxu0 %v1714
        %2907 = vmatprep.subr.mxu0 0.0
        %2908 = vmatpush2.msra.mxu0 0.0
        %2909 = vmatprep.subr.mxu0 0.0
        %2910 = vmatpush2.msra.mxu0 0.0
        %2911 = vmatprep.subr.mxu0 0.0
        %2912 = vmatpush2.msra.mxu0 0.0
        %2913 = vmatprep.subr.mxu0 0.0
        %2914 = vmatpush2.msra.mxu0 0.0
        %2915 = vmatprep.subr.mxu0 0.0
        %2916 = vmatpush2.msra.mxu0 0.0
        %2917 = vmatprep.subr.mxu0 0.0
        %2918 = vmatpush2.msra.mxu0 0.0
        %2919 = vmatprep.subr.mxu0 0.0
        %2920 = vmatpush2.msra.mxu0 0.0
        %2921 = vmatprep.subr.mxu0 0.0
        %2922 = vmatpush2.msra.mxu0 0.0
        %2923 = vmatprep.subr.mxu0 0.0
        %2924 = vmatpush2.msra.mxu0 0.0
        %2925 = vmatprep.subr.mxu0 0.0
        %2926 = vmatpush2.msra.mxu0 0.0
        %2927 = vmatprep.subr.mxu0 0.0
        %2928 = vmatpush2.msra.mxu0 0.0
        %2929 = vmatprep.subr.mxu0 0.0
        %2930 = vmatpush2.msra.mxu0 0.0
        %2931 = vmatprep.subr.mxu0 0.0
        %2932 = vmatpush2.msra.mxu0 0.0
        %2933 = vmatprep.subr.mxu0 0.0
        %2934 = vmatpush2.msra.mxu0 0.0
        %2935 = vmatprep.subr.mxu0 0.0
        %2936 = vmatpush2.msra.mxu0 0.0
        %2937 = vmatprep.subr.mxu0 0.0
        %2938 = vmatpush2.msra.mxu0 0.0
        %2939 = vmatprep.mubr.f32.mxu0 0.0
        %2940 = vmatmul.mubr.f32.gmra.mxu0 %v2660
        %v2941 = vpop.f32.mrf.mxu0
        %v2942 = vadd.f32 %v2656, %v2941
        %v2943 = vpop.f32.mrf.mxu0
        %v2944 = vadd.f32 %v2656, %v2943
        %2945 = vdwg.mxu0
        %2946 = vmatprep.subr.mxu0 0.0
        %2947 = vmatpush1.msra.mxu0 0.0
        %2948 = vmatprep.subr.mxu0 0.0
        %2949 = vmatpush1.msra.mxu0 0.0
        %2950 = vmatprep.subr.mxu0 0.0
        %2951 = vmatpush1.msra.mxu0 0.0
        %2952 = vmatprep.subr.mxu0 0.0
        %2953 = vmatpush1.msra.mxu0 0.0
        %2954 = vmatprep.subr.mxu0 0.0
        %2955 = vmatpush1.msra.mxu0 0.0
        %2956 = vmatprep.subr.mxu0 0.0
        %2957 = vmatpush1.msra.mxu0 0.0
        %2958 = vmatprep.subr.mxu0 0.0
        %2959 = vmatpush1.msra.mxu0 0.0
        %2960 = vmatprep.subr.mxu0 0.0
        %2961 = vmatpush1.msra.mxu0 0.0
        %2962 = vmatprep.subr.mxu0 0.0
        %2963 = vmatpush1.msra.mxu0 0.0
        %2964 = vmatprep.subr.mxu0 0.0
        %2965 = vmatpush1.msra.mxu0 0.0
        %2966 = vmatprep.subr.mxu0 0.0
        %2967 = vmatpush1.msra.mxu0 0.0
        %2968 = vmatprep.subr.mxu0 0.0
        %2969 = vmatpush1.msra.mxu0 0.0
        %2970 = vmatprep.subr.mxu0 0.0
        %2971 = vmatpush1.msra.mxu0 0.0
        %2972 = vmatprep.subr.mxu0 0.0
        %2973 = vmatpush1.msra.mxu0 0.0
        %2974 = vmatprep.subr.mxu0 0.0
        %2975 = vmatpush1.msra.mxu0 0.0
        %2976 = vmatprep.subr.mxu0 %v2026
        %2977 = vmatpush1.msra.mxu0 %v1922
        %2978 = vmatprep.subr.mxu0 0.0
        %2979 = vmatpush2.msra.mxu0 0.0
        %2980 = vmatprep.subr.mxu0 0.0
        %2981 = vmatpush2.msra.mxu0 0.0
        %2982 = vmatprep.subr.mxu0 0.0
        %2983 = vmatpush2.msra.mxu0 0.0
        %2984 = vmatprep.subr.mxu0 0.0
        %2985 = vmatpush2.msra.mxu0 0.0
        %2986 = vmatprep.subr.mxu0 0.0
        %2987 = vmatpush2.msra.mxu0 0.0
        %2988 = vmatprep.subr.mxu0 0.0
        %2989 = vmatpush2.msra.mxu0 0.0
        %2990 = vmatprep.subr.mxu0 0.0
        %2991 = vmatpush2.msra.mxu0 0.0
        %2992 = vmatprep.subr.mxu0 0.0
        %2993 = vmatpush2.msra.mxu0 0.0
        %2994 = vmatprep.subr.mxu0 0.0
        %2995 = vmatpush2.msra.mxu0 0.0
        %2996 = vmatprep.subr.mxu0 0.0
        %2997 = vmatpush2.msra.mxu0 0.0
        %2998 = vmatprep.subr.mxu0 0.0
        %2999 = vmatpush2.msra.mxu0 0.0
        %3000 = vmatprep.subr.mxu0 0.0
        %3001 = vmatpush2.msra.mxu0 0.0
        %3002 = vmatprep.subr.mxu0 0.0
        %3003 = vmatpush2.msra.mxu0 0.0
        %3004 = vmatprep.subr.mxu0 0.0
        %3005 = vmatpush2.msra.mxu0 0.0
        %3006 = vmatprep.subr.mxu0 0.0
        %3007 = vmatpush2.msra.mxu0 0.0
        %3008 = vmatprep.subr.mxu0 0.0
        %3009 = vmatpush2.msra.mxu0 0.0
        %3010 = vmatprep.mubr.f32.mxu0 0.0
        %3011 = vmatmul.mubr.f32.gmra.mxu0 %v2660
        %v3012 = vpop.f32.mrf.mxu0
        %v3013 = vadd.f32 %v2656, %v3012
        %v3014 = vpop.f32.mrf.mxu0
        %v3015 = vadd.f32 %v2656, %v3014
        %3016 = vdwg.mxu0
        %3017 = vmatprep.subr.mxu0 0.0
        %3018 = vmatpush1.msra.mxu0 0.0
        %3019 = vmatprep.subr.mxu0 0.0
        %3020 = vmatpush1.msra.mxu0 0.0
        %3021 = vmatprep.subr.mxu0 0.0
        %3022 = vmatpush1.msra.mxu0 0.0
        %3023 = vmatprep.subr.mxu0 0.0
        %3024 = vmatpush1.msra.mxu0 0.0
        %3025 = vmatprep.subr.mxu0 0.0
        %3026 = vmatpush1.msra.mxu0 0.0
        %3027 = vmatprep.subr.mxu0 0.0
        %3028 = vmatpush1.msra.mxu0 0.0
        %3029 = vmatprep.subr.mxu0 0.0
        %3030 = vmatpush1.msra.mxu0 0.0
        %3031 = vmatprep.subr.mxu0 0.0
        %3032 = vmatpush1.msra.mxu0 0.0
        %3033 = vmatprep.subr.mxu0 0.0
        %3034 = vmatpush1.msra.mxu0 0.0
        %3035 = vmatprep.subr.mxu0 0.0
        %3036 = vmatpush1.msra.mxu0 0.0
        %3037 = vmatprep.subr.mxu0 0.0
        %3038 = vmatpush1.msra.mxu0 0.0
        %3039 = vmatprep.subr.mxu0 0.0
        %3040 = vmatpush1.msra.mxu0 0.0
        %3041 = vmatprep.subr.mxu0 0.0
        %3042 = vmatpush1.msra.mxu0 0.0
        %3043 = vmatprep.subr.mxu0 0.0
        %3044 = vmatpush1.msra.mxu0 0.0
        %3045 = vmatprep.subr.mxu0 0.0
        %3046 = vmatpush1.msra.mxu0 0.0
        %3047 = vmatprep.subr.mxu0 %v2234
        %3048 = vmatpush1.msra.mxu0 %v2130
        %3049 = vmatprep.subr.mxu0 0.0
        %3050 = vmatpush2.msra.mxu0 0.0
        %3051 = vmatprep.subr.mxu0 0.0
        %3052 = vmatpush2.msra.mxu0 0.0
        %3053 = vmatprep.subr.mxu0 0.0
        %3054 = vmatpush2.msra.mxu0 0.0
        %3055 = vmatprep.subr.mxu0 0.0
        %3056 = vmatpush2.msra.mxu0 0.0
        %3057 = vmatprep.subr.mxu0 0.0
        %3058 = vmatpush2.msra.mxu0 0.0
        %3059 = vmatprep.subr.mxu0 0.0
        %3060 = vmatpush2.msra.mxu0 0.0
        %3061 = vmatprep.subr.mxu0 0.0
        %3062 = vmatpush2.msra.mxu0 0.0
        %3063 = vmatprep.subr.mxu0 0.0
        %3064 = vmatpush2.msra.mxu0 0.0
        %3065 = vmatprep.subr.mxu0 0.0
        %3066 = vmatpush2.msra.mxu0 0.0
        %3067 = vmatprep.subr.mxu0 0.0
        %3068 = vmatpush2.msra.mxu0 0.0
        %3069 = vmatprep.subr.mxu0 0.0
        %3070 = vmatpush2.msra.mxu0 0.0
        %3071 = vmatprep.subr.mxu0 0.0
        %3072 = vmatpush2.msra.mxu0 0.0
        %3073 = vmatprep.subr.mxu0 0.0
        %3074 = vmatpush2.msra.mxu0 0.0
        %3075 = vmatprep.subr.mxu0 0.0
        %3076 = vmatpush2.msra.mxu0 0.0
        %3077 = vmatprep.subr.mxu0 0.0
        %3078 = vmatpush2.msra.mxu0 0.0
        %3079 = vmatprep.subr.mxu0 0.0
        %3080 = vmatpush2.msra.mxu0 0.0
        %3081 = vmatprep.mubr.f32.mxu0 0.0
        %3082 = vmatmul.mubr.f32.gmra.mxu0 %v2660
        %v3083 = vpop.f32.mrf.mxu0
        %v3084 = vadd.f32 %v2656, %v3083
        %v3085 = vpop.f32.mrf.mxu0
        %v3086 = vadd.f32 %v2656, %v3085
        %3087 = vdwg.mxu0
        %3088 = vmatprep.subr.mxu0 0.0
        %3089 = vmatpush1.msra.mxu0 0.0
        %3090 = vmatprep.subr.mxu0 0.0
        %3091 = vmatpush1.msra.mxu0 0.0
        %3092 = vmatprep.subr.mxu0 0.0
        %3093 = vmatpush1.msra.mxu0 0.0
        %3094 = vmatprep.subr.mxu0 0.0
        %3095 = vmatpush1.msra.mxu0 0.0
        %3096 = vmatprep.subr.mxu0 0.0
        %3097 = vmatpush1.msra.mxu0 0.0
        %3098 = vmatprep.subr.mxu0 0.0
        %3099 = vmatpush1.msra.mxu0 0.0
        %3100 = vmatprep.subr.mxu0 0.0
        %3101 = vmatpush1.msra.mxu0 0.0
        %3102 = vmatprep.subr.mxu0 0.0
        %3103 = vmatpush1.msra.mxu0 0.0
        %3104 = vmatprep.subr.mxu0 0.0
        %3105 = vmatpush1.msra.mxu0 0.0
        %3106 = vmatprep.subr.mxu0 0.0
        %3107 = vmatpush1.msra.mxu0 0.0
        %3108 = vmatprep.subr.mxu0 0.0
        %3109 = vmatpush1.msra.mxu0 0.0
        %3110 = vmatprep.subr.mxu0 0.0
        %3111 = vmatpush1.msra.mxu0 0.0
        %3112 = vmatprep.subr.mxu0 0.0
        %3113 = vmatpush1.msra.mxu0 0.0
        %3114 = vmatprep.subr.mxu0 0.0
        %3115 = vmatpush1.msra.mxu0 0.0
        %3116 = vmatprep.subr.mxu0 0.0
        %3117 = vmatpush1.msra.mxu0 0.0
        %3118 = vmatprep.subr.mxu0 %v2442
        %3119 = vmatpush1.msra.mxu0 %v2338
        %3120 = vmatprep.subr.mxu0 0.0
        %3121 = vmatpush2.msra.mxu0 0.0
        %3122 = vmatprep.subr.mxu0 0.0
        %3123 = vmatpush2.msra.mxu0 0.0
        %3124 = vmatprep.subr.mxu0 0.0
        %3125 = vmatpush2.msra.mxu0 0.0
        %3126 = vmatprep.subr.mxu0 0.0
        %3127 = vmatpush2.msra.mxu0 0.0
        %3128 = vmatprep.subr.mxu0 0.0
        %3129 = vmatpush2.msra.mxu0 0.0
        %3130 = vmatprep.subr.mxu0 0.0
        %3131 = vmatpush2.msra.mxu0 0.0
        %3132 = vmatprep.subr.mxu0 0.0
        %3133 = vmatpush2.msra.mxu0 0.0
        %3134 = vmatprep.subr.mxu0 0.0
        %3135 = vmatpush2.msra.mxu0 0.0
        %3136 = vmatprep.subr.mxu0 0.0
        %3137 = vmatpush2.msra.mxu0 0.0
        %3138 = vmatprep.subr.mxu0 0.0
        %3139 = vmatpush2.msra.mxu0 0.0
        %3140 = vmatprep.subr.mxu0 0.0
        %3141 = vmatpush2.msra.mxu0 0.0
        %3142 = vmatprep.subr.mxu0 0.0
        %3143 = vmatpush2.msra.mxu0 0.0
        %3144 = vmatprep.subr.mxu0 0.0
        %3145 = vmatpush2.msra.mxu0 0.0
        %3146 = vmatprep.subr.mxu0 0.0
        %3147 = vmatpush2.msra.mxu0 0.0
        %3148 = vmatprep.subr.mxu0 0.0
        %3149 = vmatpush2.msra.mxu0 0.0
        %3150 = vmatprep.subr.mxu0 0.0
        %3151 = vmatpush2.msra.mxu0 0.0
        %3152 = vmatprep.mubr.f32.mxu0 0.0
        %3153 = vmatmul.mubr.f32.gmra.mxu0 %v2660
        %v3154 = vpop.f32.mrf.mxu0
        %v3155 = vadd.f32 %v2656, %v3154
        %v3156 = vpop.f32.mrf.mxu0
        %v3157 = vadd.f32 %v2656, %v3156
        %3158 = vdwg.mxu0
        %3159 = vmatprep.subr.mxu0 0.0
        %3160 = vmatpush1.msra.mxu0 0.0
        %3161 = vmatprep.subr.mxu0 0.0
        %3162 = vmatpush1.msra.mxu0 0.0
        %3163 = vmatprep.subr.mxu0 0.0
        %3164 = vmatpush1.msra.mxu0 0.0
        %3165 = vmatprep.subr.mxu0 0.0
        %3166 = vmatpush1.msra.mxu0 0.0
        %3167 = vmatprep.subr.mxu0 0.0
        %3168 = vmatpush1.msra.mxu0 0.0
        %3169 = vmatprep.subr.mxu0 0.0
        %3170 = vmatpush1.msra.mxu0 0.0
        %3171 = vmatprep.subr.mxu0 0.0
        %3172 = vmatpush1.msra.mxu0 0.0
        %3173 = vmatprep.subr.mxu0 0.0
        %3174 = vmatpush1.msra.mxu0 0.0
        %3175 = vmatprep.subr.mxu0 0.0
        %3176 = vmatpush1.msra.mxu0 0.0
        %3177 = vmatprep.subr.mxu0 0.0
        %3178 = vmatpush1.msra.mxu0 0.0
        %3179 = vmatprep.subr.mxu0 0.0
        %3180 = vmatpush1.msra.mxu0 0.0
        %3181 = vmatprep.subr.mxu0 0.0
        %3182 = vmatpush1.msra.mxu0 0.0
        %3183 = vmatprep.subr.mxu0 0.0
        %3184 = vmatpush1.msra.mxu0 0.0
        %3185 = vmatprep.subr.mxu0 0.0
        %3186 = vmatpush1.msra.mxu0 0.0
        %3187 = vmatprep.subr.mxu0 0.0
        %3188 = vmatpush1.msra.mxu0 0.0
        %3189 = vmatprep.subr.mxu0 %v2650
        %3190 = vmatpush1.msra.mxu0 %v2546
        %3191 = vmatprep.subr.mxu0 0.0
        %3192 = vmatpush2.msra.mxu0 0.0
        %3193 = vmatprep.subr.mxu0 0.0
        %3194 = vmatpush2.msra.mxu0 0.0
        %3195 = vmatprep.subr.mxu0 0.0
        %3196 = vmatpush2.msra.mxu0 0.0
        %3197 = vmatprep.subr.mxu0 0.0
        %3198 = vmatpush2.msra.mxu0 0.0
        %3199 = vmatprep.subr.mxu0 0.0
        %3200 = vmatpush2.msra.mxu0 0.0
        %3201 = vmatprep.subr.mxu0 0.0
        %3202 = vmatpush2.msra.mxu0 0.0
        %3203 = vmatprep.subr.mxu0 0.0
        %3204 = vmatpush2.msra.mxu0 0.0
        %3205 = vmatprep.subr.mxu0 0.0
        %3206 = vmatpush2.msra.mxu0 0.0
        %3207 = vmatprep.subr.mxu0 0.0
        %3208 = vmatpush2.msra.mxu0 0.0
        %3209 = vmatprep.subr.mxu0 0.0
        %3210 = vmatpush2.msra.mxu0 0.0
        %3211 = vmatprep.subr.mxu0 0.0
        %3212 = vmatpush2.msra.mxu0 0.0
        %3213 = vmatprep.subr.mxu0 0.0
        %3214 = vmatpush2.msra.mxu0 0.0
        %3215 = vmatprep.subr.mxu0 0.0
        %3216 = vmatpush2.msra.mxu0 0.0
        %3217 = vmatprep.subr.mxu0 0.0
        %3218 = vmatpush2.msra.mxu0 0.0
        %3219 = vmatprep.subr.mxu0 0.0
        %3220 = vmatpush2.msra.mxu0 0.0
        %3221 = vmatprep.subr.mxu0 0.0
        %3222 = vmatpush2.msra.mxu0 0.0
        %3223 = vmatprep.mubr.f32.mxu0 0.0
        %3224 = vmatmul.mubr.f32.gmra.mxu0 %v2660
        %v3225 = vpop.f32.mrf.mxu0
        %v3226 = vadd.f32 %v2656, %v3225
        %v3227 = vpop.f32.mrf.mxu0
        %v3228 = vadd.f32 %v2656, %v3227
        %3229 = vdwg.mxu0
        %v3230 = vand.u32 2147483647, %v2729
        %vm3231 = vcmp.le.f32.partialorder %v3230, 0.7853982
        %vm3232 = vcmp.lt.s32.totalorder %v2729, 0
        %v3233 = vand.u32 %v2729, 2139095040
        %v3234 = vshrl.u32 %v3233, 23
        %v3235 = vsub.s32 %v3234, 127
        %v3236 = vand.u32 2147483647, %v2729
        %v3237 = vand.u32 %v3236, 8388607
        %v3238 = vor.u32 %v3237, 8388608
        %v3239 = vsub.s32 0, %v3238
        %v3240 = vadd.s32 %v3235, 1
        %vm3241 = vcmp.gt.s32.totalorder %v3240, 0
        %v3242 = vsel %vm3241, %v3240, 0
        %v3243 = vshrl.u32 %v3242, 5
        %v3244 = vand.u32 %v3242, 31
        %v3245 = vsub.s32 32, %v3244
        %v3246 = vshrl.u32 683565275, %v3245
        %v3247 = vshll.u32 683565275, %v3244
        %v3248 = vshrl.u32 2475754826, %v3245
        %v3249 = vor.u32 %v3247, %v3248
        %v3250 = vshll.u32 2475754826, %v3244
        %v3251 = vshrl.u32 2131351028, %v3245
        %v3252 = vor.u32 %v3250, %v3251
        %v3253 = vshll.u32 2131351028, %v3244
        %v3254 = vshrl.u32 2102212464, %v3245
        %v3255 = vor.u32 %v3253, %v3254
        %v3256 = vshll.u32 2102212464, %v3244
        %v3257 = vshrl.u32 920167782, %v3245
        %v3258 = vor.u32 %v3256, %v3257
        %v3259 = vshll.u32 920167782, %v3244
        %v3260 = vshrl.u32 1326507024, %v3245
        %v3261 = vor.u32 %v3259, %v3260
        %vm3262 = vcmp.lt.s32.totalorder %v3243, 1
        %vm3263 = vcmp.lt.s32.totalorder %v3243, 2
        %vm3264 = vcmp.lt.s32.totalorder %v3243, 3
        %vm3265 = vcmp.lt.s32.totalorder %v3243, 4
        %v3266 = vsel %vm3262, %v3246, %v3249
        %v3267 = vsel %vm3265, %v3255, 2102212464
        %v3268 = vsel %vm3264, %v3252, %v3267
        %v3269 = vsel %vm3263, %v3266, %v3268
        %v3270 = vsel %vm3262, %v3249, %v3252
        %v3271 = vsel %vm3265, %v3258, 920167782
        %v3272 = vsel %vm3264, %v3255, %v3271
        %v3273 = vsel %vm3263, %v3270, %v3272
        %v3274 = vsel %vm3262, %v3252, %v3255
        %v3275 = vsel %vm3265, %v3261, 1326507024
        %v3276 = vsel %vm3264, %v3258, %v3275
        %v3277 = vsel %vm3263, %v3274, %v3276
        %v3278 = vshll.u32 %v3238, 8
        %v3279 = vmul.u32.u64.compose %v3278, %v3277
        %v3280 = vextract.low.u32 %v3279
        %v3281 = vextract.high.u32 %v3279
        %v3282 = vmul.u32.u64.compose %v3278, %v3273
        %v3283 = vextract.low.u32 %v3282
        %v3284 = vextract.high.u32 %v3282
        %v3285 = vmul.u32 %v3278, %v3269
        %v3286 = vadd.s32 %v3281, %v3283
        %vm3287 = vc.u32 %v3281, %v3283
        %v3288 = vadd.s32 %v3284, 1
        %v3289 = vsel %vm3287, %v3288, %v3284
        %v3290 = vadd.s32 %v3285, %v3289
        %v3291 = vadd.s32 %v3290, 536870912
        %v3292 = vshrl.u32 %v3291, 30
        %v3293 = vshll.u32 %v3292, 30
        %v3294 = vsub.s32 %v3290, %v3293
        %vm3295 = vcmp.lt.s32.totalorder %v3294, 0
        %v3296 = vsub.s32 0, %v3294
        %v3297 = vsel %vm3295, %v3296, %v3294
        %v3298 = vclz %v3297
        %v3299 = vsub.s32 %v3298, 2
        %vm3300 = vcmp.gt.s32.totalorder 0, %v3299
        %v3301 = vsel %vm3300, 0, %v3299
        %v3302 = vsub.s32 32, %v3301
        %v3303 = vshll.u32 %v3294, %v3301
        %v3304 = vshrl.u32 %v3286, %v3302
        %v3305 = vor.u32 %v3303, %v3304
        %v3306 = vsub.s32 4294967266, %v3301
        %v3307 = vadd.s32 %v3306, 127
        %v3308 = vshll.u32 %v3307, 23
        %v3309 = vor.u32 4788187, %v3308
        %v3310 = vand.u32 2147483647, %v3309
        %v3312 = vcvt.s32.f32 %v3305
        %v3313 = vmul.f32 %v3312, %v3310
        %v3314 = vxor.u32 %v3313, 2147483648
        %v3315 = vsel %vm3232, %v3314, %v3313
        %v3316 = vsub.s32 4, %v3292
        %v3317 = vsel %vm3232, %v3316, %v3292
        %v3318 = vsel %vm3231, %v2729, %v3315
        %v3319 = vsel %vm3231, 0, %v3317
        %v3320 = vcosq.f32.pop %v3318
        %v3321 = vsinq.f32.pop %v3318
        %vm3322 = vweird.f32 %v2729
        %v3323 = vadd.s32 %v3319, 3
        %v3324 = vand.u32 %v3323, 3
        %vm3325 = vcmp.lt.s32.totalorder %v3324, 2
        %vm3326 = vcmp.eq.s32.totalorder %v3324, 0
        %v3327 = vxor.u32 %v3321, 2147483648
        %v3328 = vsel %vm3326, %v3320, %v3327
        %vm3329 = vcmp.eq.s32.totalorder %v3324, 2
        %v3330 = vxor.u32 %v3320, 2147483648
        %v3331 = vsel %vm3329, %v3330, %v3321
        %v3332 = vsel %vm3325, %v3328, %v3331
        %v3333 = vsel %vm3322, nan, %v3332
        %v3334 = vand.u32 2147483647, %v2731
        %vm3335 = vcmp.le.f32.partialorder %v3334, 0.7853982
        %vm3336 = vcmp.lt.s32.totalorder %v2731, 0
        %v3337 = vand.u32 %v2731, 2139095040
        %v3338 = vshrl.u32 %v3337, 23
        %v3339 = vsub.s32 %v3338, 127
        %v3340 = vand.u32 2147483647, %v2731
        %v3341 = vand.u32 %v3340, 8388607
        %v3342 = vor.u32 %v3341, 8388608
        %v3343 = vsub.s32 0, %v3342
        %v3344 = vadd.s32 %v3339, 1
        %vm3345 = vcmp.gt.s32.totalorder %v3344, 0
        %v3346 = vsel %vm3345, %v3344, 0
        %v3347 = vshrl.u32 %v3346, 5
        %v3348 = vand.u32 %v3346, 31
        %v3349 = vsub.s32 32, %v3348
        %v3350 = vshrl.u32 683565275, %v3349
        %v3351 = vshll.u32 683565275, %v3348
        %v3352 = vshrl.u32 2475754826, %v3349
        %v3353 = vor.u32 %v3351, %v3352
        %v3354 = vshll.u32 2475754826, %v3348
        %v3355 = vshrl.u32 2131351028, %v3349
        %v3356 = vor.u32 %v3354, %v3355
        %v3357 = vshll.u32 2131351028, %v3348
        %v3358 = vshrl.u32 2102212464, %v3349
        %v3359 = vor.u32 %v3357, %v3358
        %v3360 = vshll.u32 2102212464, %v3348
        %v3361 = vshrl.u32 920167782, %v3349
        %v3362 = vor.u32 %v3360, %v3361
        %v3363 = vshll.u32 920167782, %v3348
        %v3364 = vshrl.u32 1326507024, %v3349
        %v3365 = vor.u32 %v3363, %v3364
        %vm3366 = vcmp.lt.s32.totalorder %v3347, 1
        %vm3367 = vcmp.lt.s32.totalorder %v3347, 2
        %vm3368 = vcmp.lt.s32.totalorder %v3347, 3
        %vm3369 = vcmp.lt.s32.totalorder %v3347, 4
        %v3370 = vsel %vm3366, %v3350, %v3353
        %v3371 = vsel %vm3369, %v3359, 2102212464
        %v3372 = vsel %vm3368, %v3356, %v3371
        %v3373 = vsel %vm3367, %v3370, %v3372
        %v3374 = vsel %vm3366, %v3353, %v3356
        %v3375 = vsel %vm3369, %v3362, 920167782
        %v3376 = vsel %vm3368, %v3359, %v3375
        %v3377 = vsel %vm3367, %v3374, %v3376
        %v3378 = vsel %vm3366, %v3356, %v3359
        %v3379 = vsel %vm3369, %v3365, 1326507024
        %v3380 = vsel %vm3368, %v3362, %v3379
        %v3381 = vsel %vm3367, %v3378, %v3380
        %v3382 = vshll.u32 %v3342, 8
        %v3383 = vmul.u32.u64.compose %v3382, %v3381
        %v3384 = vextract.low.u32 %v3383
        %v3385 = vextract.high.u32 %v3383
        %v3386 = vmul.u32.u64.compose %v3382, %v3377
        %v3387 = vextract.low.u32 %v3386
        %v3388 = vextract.high.u32 %v3386
        %v3389 = vmul.u32 %v3382, %v3373
        %v3390 = vadd.s32 %v3385, %v3387
        %vm3391 = vc.u32 %v3385, %v3387
        %v3392 = vadd.s32 %v3388, 1
        %v3393 = vsel %vm3391, %v3392, %v3388
        %v3394 = vadd.s32 %v3389, %v3393
        %v3395 = vadd.s32 %v3394, 536870912
        %v3396 = vshrl.u32 %v3395, 30
        %v3397 = vshll.u32 %v3396, 30
        %v3398 = vsub.s32 %v3394, %v3397
        %vm3399 = vcmp.lt.s32.totalorder %v3398, 0
        %v3400 = vsub.s32 0, %v3398
        %v3401 = vsel %vm3399, %v3400, %v3398
        %v3402 = vclz %v3401
        %v3403 = vsub.s32 %v3402, 2
        %vm3404 = vcmp.gt.s32.totalorder 0, %v3403
        %v3405 = vsel %vm3404, 0, %v3403
        %v3406 = vsub.s32 32, %v3405
        %v3407 = vshll.u32 %v3398, %v3405
        %v3408 = vshrl.u32 %v3390, %v3406
        %v3409 = vor.u32 %v3407, %v3408
        %v3410 = vsub.s32 4294967266, %v3405
        %v3411 = vadd.s32 %v3410, 127
        %v3412 = vshll.u32 %v3411, 23
        %v3413 = vor.u32 4788187, %v3412
        %v3414 = vand.u32 2147483647, %v3413
        %v3416 = vcvt.s32.f32 %v3409
        %v3417 = vmul.f32 %v3416, %v3414
        %v3418 = vxor.u32 %v3417, 2147483648
        %v3419 = vsel %vm3336, %v3418, %v3417
        %v3420 = vsub.s32 4, %v3396
        %v3421 = vsel %vm3336, %v3420, %v3396
        %v3422 = vsel %vm3335, %v2731, %v3419
        %v3423 = vsel %vm3335, 0, %v3421
        %v3424 = vcosq.f32.pop %v3422
        %v3425 = vsinq.f32.pop %v3422
        %vm3426 = vweird.f32 %v2731
        %v3427 = vadd.s32 %v3423, 3
        %v3428 = vand.u32 %v3427, 3
        %vm3429 = vcmp.lt.s32.totalorder %v3428, 2
        %vm3430 = vcmp.eq.s32.totalorder %v3428, 0
        %v3431 = vxor.u32 %v3425, 2147483648
        %v3432 = vsel %vm3430, %v3424, %v3431
        %vm3433 = vcmp.eq.s32.totalorder %v3428, 2
        %v3434 = vxor.u32 %v3424, 2147483648
        %v3435 = vsel %vm3433, %v3434, %v3425
        %v3436 = vsel %vm3429, %v3432, %v3435
        %v3437 = vsel %vm3426, nan, %v3436
        %v3438 = vand.u32 2147483647, %v2800
        %vm3439 = vcmp.le.f32.partialorder %v3438, 0.7853982
        %vm3440 = vcmp.lt.s32.totalorder %v2800, 0
        %v3441 = vand.u32 %v2800, 2139095040
        %v3442 = vshrl.u32 %v3441, 23
        %v3443 = vsub.s32 %v3442, 127
        %v3444 = vand.u32 2147483647, %v2800
        %v3445 = vand.u32 %v3444, 8388607
        %v3446 = vor.u32 %v3445, 8388608
        %v3447 = vsub.s32 0, %v3446
        %v3448 = vadd.s32 %v3443, 1
        %vm3449 = vcmp.gt.s32.totalorder %v3448, 0
        %v3450 = vsel %vm3449, %v3448, 0
        %v3451 = vshrl.u32 %v3450, 5
        %v3452 = vand.u32 %v3450, 31
        %v3453 = vsub.s32 32, %v3452
        %v3454 = vshrl.u32 683565275, %v3453
        %v3455 = vshll.u32 683565275, %v3452
        %v3456 = vshrl.u32 2475754826, %v3453
        %v3457 = vor.u32 %v3455, %v3456
        %v3458 = vshll.u32 2475754826, %v3452
        %v3459 = vshrl.u32 2131351028, %v3453
        %v3460 = vor.u32 %v3458, %v3459
        %v3461 = vshll.u32 2131351028, %v3452
        %v3462 = vshrl.u32 2102212464, %v3453
        %v3463 = vor.u32 %v3461, %v3462
        %v3464 = vshll.u32 2102212464, %v3452
        %v3465 = vshrl.u32 920167782, %v3453
        %v3466 = vor.u32 %v3464, %v3465
        %v3467 = vshll.u32 920167782, %v3452
        %v3468 = vshrl.u32 1326507024, %v3453
        %v3469 = vor.u32 %v3467, %v3468
        %vm3470 = vcmp.lt.s32.totalorder %v3451, 1
        %vm3471 = vcmp.lt.s32.totalorder %v3451, 2
        %vm3472 = vcmp.lt.s32.totalorder %v3451, 3
        %vm3473 = vcmp.lt.s32.totalorder %v3451, 4
        %v3474 = vsel %vm3470, %v3454, %v3457
        %v3475 = vsel %vm3473, %v3463, 2102212464
        %v3476 = vsel %vm3472, %v3460, %v3475
        %v3477 = vsel %vm3471, %v3474, %v3476
        %v3478 = vsel %vm3470, %v3457, %v3460
        %v3479 = vsel %vm3473, %v3466, 920167782
        %v3480 = vsel %vm3472, %v3463, %v3479
        %v3481 = vsel %vm3471, %v3478, %v3480
        %v3482 = vsel %vm3470, %v3460, %v3463
        %v3483 = vsel %vm3473, %v3469, 1326507024
        %v3484 = vsel %vm3472, %v3466, %v3483
        %v3485 = vsel %vm3471, %v3482, %v3484
        %v3486 = vshll.u32 %v3446, 8
        %v3487 = vmul.u32.u64.compose %v3486, %v3485
        %v3488 = vextract.low.u32 %v3487
        %v3489 = vextract.high.u32 %v3487
        %v3490 = vmul.u32.u64.compose %v3486, %v3481
        %v3491 = vextract.low.u32 %v3490
        %v3492 = vextract.high.u32 %v3490
        %v3493 = vmul.u32 %v3486, %v3477
        %v3494 = vadd.s32 %v3489, %v3491
        %vm3495 = vc.u32 %v3489, %v3491
        %v3496 = vadd.s32 %v3492, 1
        %v3497 = vsel %vm3495, %v3496, %v3492
        %v3498 = vadd.s32 %v3493, %v3497
        %v3499 = vadd.s32 %v3498, 536870912
        %v3500 = vshrl.u32 %v3499, 30
        %v3501 = vshll.u32 %v3500, 30
        %v3502 = vsub.s32 %v3498, %v3501
        %vm3503 = vcmp.lt.s32.totalorder %v3502, 0
        %v3504 = vsub.s32 0, %v3502
        %v3505 = vsel %vm3503, %v3504, %v3502
        %v3506 = vclz %v3505
        %v3507 = vsub.s32 %v3506, 2
        %vm3508 = vcmp.gt.s32.totalorder 0, %v3507
        %v3509 = vsel %vm3508, 0, %v3507
        %v3510 = vsub.s32 32, %v3509
        %v3511 = vshll.u32 %v3502, %v3509
        %v3512 = vshrl.u32 %v3494, %v3510
        %v3513 = vor.u32 %v3511, %v3512
        %v3514 = vsub.s32 4294967266, %v3509
        %v3515 = vadd.s32 %v3514, 127
        %v3516 = vshll.u32 %v3515, 23
        %v3517 = vor.u32 4788187, %v3516
        %v3518 = vand.u32 2147483647, %v3517
        %v3520 = vcvt.s32.f32 %v3513
        %v3521 = vmul.f32 %v3520, %v3518
        %v3522 = vxor.u32 %v3521, 2147483648
        %v3523 = vsel %vm3440, %v3522, %v3521
        %v3524 = vsub.s32 4, %v3500
        %v3525 = vsel %vm3440, %v3524, %v3500
        %v3526 = vsel %vm3439, %v2800, %v3523
        %v3527 = vsel %vm3439, 0, %v3525
        %v3528 = vcosq.f32.pop %v3526
        %v3529 = vsinq.f32.pop %v3526
        %vm3530 = vweird.f32 %v2800
        %v3531 = vadd.s32 %v3527, 3
        %v3532 = vand.u32 %v3531, 3
        %vm3533 = vcmp.lt.s32.totalorder %v3532, 2
        %vm3534 = vcmp.eq.s32.totalorder %v3532, 0
        %v3535 = vxor.u32 %v3529, 2147483648
        %v3536 = vsel %vm3534, %v3528, %v3535
        %vm3537 = vcmp.eq.s32.totalorder %v3532, 2
        %v3538 = vxor.u32 %v3528, 2147483648
        %v3539 = vsel %vm3537, %v3538, %v3529
        %v3540 = vsel %vm3533, %v3536, %v3539
        %v3541 = vsel %vm3530, nan, %v3540
        %v3542 = vand.u32 2147483647, %v2802
        %vm3543 = vcmp.le.f32.partialorder %v3542, 0.7853982
        %vm3544 = vcmp.lt.s32.totalorder %v2802, 0
        %v3545 = vand.u32 %v2802, 2139095040
        %v3546 = vshrl.u32 %v3545, 23
        %v3547 = vsub.s32 %v3546, 127
        %v3548 = vand.u32 2147483647, %v2802
        %v3549 = vand.u32 %v3548, 8388607
        %v3550 = vor.u32 %v3549, 8388608
        %v3551 = vsub.s32 0, %v3550
        %v3552 = vadd.s32 %v3547, 1
        %vm3553 = vcmp.gt.s32.totalorder %v3552, 0
        %v3554 = vsel %vm3553, %v3552, 0
        %v3555 = vshrl.u32 %v3554, 5
        %v3556 = vand.u32 %v3554, 31
        %v3557 = vsub.s32 32, %v3556
        %v3558 = vshrl.u32 683565275, %v3557
        %v3559 = vshll.u32 683565275, %v3556
        %v3560 = vshrl.u32 2475754826, %v3557
        %v3561 = vor.u32 %v3559, %v3560
        %v3562 = vshll.u32 2475754826, %v3556
        %v3563 = vshrl.u32 2131351028, %v3557
        %v3564 = vor.u32 %v3562, %v3563
        %v3565 = vshll.u32 2131351028, %v3556
        %v3566 = vshrl.u32 2102212464, %v3557
        %v3567 = vor.u32 %v3565, %v3566
        %v3568 = vshll.u32 2102212464, %v3556
        %v3569 = vshrl.u32 920167782, %v3557
        %v3570 = vor.u32 %v3568, %v3569
        %v3571 = vshll.u32 920167782, %v3556
        %v3572 = vshrl.u32 1326507024, %v3557
        %v3573 = vor.u32 %v3571, %v3572
        %vm3574 = vcmp.lt.s32.totalorder %v3555, 1
        %vm3575 = vcmp.lt.s32.totalorder %v3555, 2
        %vm3576 = vcmp.lt.s32.totalorder %v3555, 3
        %vm3577 = vcmp.lt.s32.totalorder %v3555, 4
        %v3578 = vsel %vm3574, %v3558, %v3561
        %v3579 = vsel %vm3577, %v3567, 2102212464
        %v3580 = vsel %vm3576, %v3564, %v3579
        %v3581 = vsel %vm3575, %v3578, %v3580
        %v3582 = vsel %vm3574, %v3561, %v3564
        %v3583 = vsel %vm3577, %v3570, 920167782
        %v3584 = vsel %vm3576, %v3567, %v3583
        %v3585 = vsel %vm3575, %v3582, %v3584
        %v3586 = vsel %vm3574, %v3564, %v3567
        %v3587 = vsel %vm3577, %v3573, 1326507024
        %v3588 = vsel %vm3576, %v3570, %v3587
        %v3589 = vsel %vm3575, %v3586, %v3588
        %v3590 = vshll.u32 %v3550, 8
        %v3591 = vmul.u32.u64.compose %v3590, %v3589
        %v3592 = vextract.low.u32 %v3591
        %v3593 = vextract.high.u32 %v3591
        %v3594 = vmul.u32.u64.compose %v3590, %v3585
        %v3595 = vextract.low.u32 %v3594
        %v3596 = vextract.high.u32 %v3594
        %v3597 = vmul.u32 %v3590, %v3581
        %v3598 = vadd.s32 %v3593, %v3595
        %vm3599 = vc.u32 %v3593, %v3595
        %v3600 = vadd.s32 %v3596, 1
        %v3601 = vsel %vm3599, %v3600, %v3596
        %v3602 = vadd.s32 %v3597, %v3601
        %v3603 = vadd.s32 %v3602, 536870912
        %v3604 = vshrl.u32 %v3603, 30
        %v3605 = vshll.u32 %v3604, 30
        %v3606 = vsub.s32 %v3602, %v3605
        %vm3607 = vcmp.lt.s32.totalorder %v3606, 0
        %v3608 = vsub.s32 0, %v3606
        %v3609 = vsel %vm3607, %v3608, %v3606
        %v3610 = vclz %v3609
        %v3611 = vsub.s32 %v3610, 2
        %vm3612 = vcmp.gt.s32.totalorder 0, %v3611
        %v3613 = vsel %vm3612, 0, %v3611
        %v3614 = vsub.s32 32, %v3613
        %v3615 = vshll.u32 %v3606, %v3613
        %v3616 = vshrl.u32 %v3598, %v3614
        %v3617 = vor.u32 %v3615, %v3616
        %v3618 = vsub.s32 4294967266, %v3613
        %v3619 = vadd.s32 %v3618, 127
        %v3620 = vshll.u32 %v3619, 23
        %v3621 = vor.u32 4788187, %v3620
        %v3622 = vand.u32 2147483647, %v3621
        %v3624 = vcvt.s32.f32 %v3617
        %v3625 = vmul.f32 %v3624, %v3622
        %v3626 = vxor.u32 %v3625, 2147483648
        %v3627 = vsel %vm3544, %v3626, %v3625
        %v3628 = vsub.s32 4, %v3604
        %v3629 = vsel %vm3544, %v3628, %v3604
        %v3630 = vsel %vm3543, %v2802, %v3627
        %v3631 = vsel %vm3543, 0, %v3629
        %v3632 = vcosq.f32.pop %v3630
        %v3633 = vsinq.f32.pop %v3630
        %vm3634 = vweird.f32 %v2802
        %v3635 = vadd.s32 %v3631, 3
        %v3636 = vand.u32 %v3635, 3
        %vm3637 = vcmp.lt.s32.totalorder %v3636, 2
        %vm3638 = vcmp.eq.s32.totalorder %v3636, 0
        %v3639 = vxor.u32 %v3633, 2147483648
        %v3640 = vsel %vm3638, %v3632, %v3639
        %vm3641 = vcmp.eq.s32.totalorder %v3636, 2
        %v3642 = vxor.u32 %v3632, 2147483648
        %v3643 = vsel %vm3641, %v3642, %v3633
        %v3644 = vsel %vm3637, %v3640, %v3643
        %v3645 = vsel %vm3634, nan, %v3644
        %v3646 = vand.u32 2147483647, %v2871
        %vm3647 = vcmp.le.f32.partialorder %v3646, 0.7853982
        %vm3648 = vcmp.lt.s32.totalorder %v2871, 0
        %v3649 = vand.u32 %v2871, 2139095040
        %v3650 = vshrl.u32 %v3649, 23
        %v3651 = vsub.s32 %v3650, 127
        %v3652 = vand.u32 2147483647, %v2871
        %v3653 = vand.u32 %v3652, 8388607
        %v3654 = vor.u32 %v3653, 8388608
        %v3655 = vsub.s32 0, %v3654
        %v3656 = vadd.s32 %v3651, 1
        %vm3657 = vcmp.gt.s32.totalorder %v3656, 0
        %v3658 = vsel %vm3657, %v3656, 0
        %v3659 = vshrl.u32 %v3658, 5
        %v3660 = vand.u32 %v3658, 31
        %v3661 = vsub.s32 32, %v3660
        %v3662 = vshrl.u32 683565275, %v3661
        %v3663 = vshll.u32 683565275, %v3660
        %v3664 = vshrl.u32 2475754826, %v3661
        %v3665 = vor.u32 %v3663, %v3664
        %v3666 = vshll.u32 2475754826, %v3660
        %v3667 = vshrl.u32 2131351028, %v3661
        %v3668 = vor.u32 %v3666, %v3667
        %v3669 = vshll.u32 2131351028, %v3660
        %v3670 = vshrl.u32 2102212464, %v3661
        %v3671 = vor.u32 %v3669, %v3670
        %v3672 = vshll.u32 2102212464, %v3660
        %v3673 = vshrl.u32 920167782, %v3661
        %v3674 = vor.u32 %v3672, %v3673
        %v3675 = vshll.u32 920167782, %v3660
        %v3676 = vshrl.u32 1326507024, %v3661
        %v3677 = vor.u32 %v3675, %v3676
        %vm3678 = vcmp.lt.s32.totalorder %v3659, 1
        %vm3679 = vcmp.lt.s32.totalorder %v3659, 2
        %vm3680 = vcmp.lt.s32.totalorder %v3659, 3
        %vm3681 = vcmp.lt.s32.totalorder %v3659, 4
        %v3682 = vsel %vm3678, %v3662, %v3665
        %v3683 = vsel %vm3681, %v3671, 2102212464
        %v3684 = vsel %vm3680, %v3668, %v3683
        %v3685 = vsel %vm3679, %v3682, %v3684
        %v3686 = vsel %vm3678, %v3665, %v3668
        %v3687 = vsel %vm3681, %v3674, 920167782
        %v3688 = vsel %vm3680, %v3671, %v3687
        %v3689 = vsel %vm3679, %v3686, %v3688
        %v3690 = vsel %vm3678, %v3668, %v3671
        %v3691 = vsel %vm3681, %v3677, 1326507024
        %v3692 = vsel %vm3680, %v3674, %v3691
        %v3693 = vsel %vm3679, %v3690, %v3692
        %v3694 = vshll.u32 %v3654, 8
        %v3695 = vmul.u32.u64.compose %v3694, %v3693
        %v3696 = vextract.low.u32 %v3695
        %v3697 = vextract.high.u32 %v3695
        %v3698 = vmul.u32.u64.compose %v3694, %v3689
        %v3699 = vextract.low.u32 %v3698
        %v3700 = vextract.high.u32 %v3698
        %v3701 = vmul.u32 %v3694, %v3685
        %v3702 = vadd.s32 %v3697, %v3699
        %vm3703 = vc.u32 %v3697, %v3699
        %v3704 = vadd.s32 %v3700, 1
        %v3705 = vsel %vm3703, %v3704, %v3700
        %v3706 = vadd.s32 %v3701, %v3705
        %v3707 = vadd.s32 %v3706, 536870912
        %v3708 = vshrl.u32 %v3707, 30
        %v3709 = vshll.u32 %v3708, 30
        %v3710 = vsub.s32 %v3706, %v3709
        %vm3711 = vcmp.lt.s32.totalorder %v3710, 0
        %v3712 = vsub.s32 0, %v3710
        %v3713 = vsel %vm3711, %v3712, %v3710
        %v3714 = vclz %v3713
        %v3715 = vsub.s32 %v3714, 2
        %vm3716 = vcmp.gt.s32.totalorder 0, %v3715
        %v3717 = vsel %vm3716, 0, %v3715
        %v3718 = vsub.s32 32, %v3717
        %v3719 = vshll.u32 %v3710, %v3717
        %v3720 = vshrl.u32 %v3702, %v3718
        %v3721 = vor.u32 %v3719, %v3720
        %v3722 = vsub.s32 4294967266, %v3717
        %v3723 = vadd.s32 %v3722, 127
        %v3724 = vshll.u32 %v3723, 23
        %v3725 = vor.u32 4788187, %v3724
        %v3726 = vand.u32 2147483647, %v3725
        %v3728 = vcvt.s32.f32 %v3721
        %v3729 = vmul.f32 %v3728, %v3726
        %v3730 = vxor.u32 %v3729, 2147483648
        %v3731 = vsel %vm3648, %v3730, %v3729
        %v3732 = vsub.s32 4, %v3708
        %v3733 = vsel %vm3648, %v3732, %v3708
        %v3734 = vsel %vm3647, %v2871, %v3731
        %v3735 = vsel %vm3647, 0, %v3733
        %v3736 = vcosq.f32.pop %v3734
        %v3737 = vsinq.f32.pop %v3734
        %vm3738 = vweird.f32 %v2871
        %v3739 = vadd.s32 %v3735, 3
        %v3740 = vand.u32 %v3739, 3
        %vm3741 = vcmp.lt.s32.totalorder %v3740, 2
        %vm3742 = vcmp.eq.s32.totalorder %v3740, 0
        %v3743 = vxor.u32 %v3737, 2147483648
        %v3744 = vsel %vm3742, %v3736, %v3743
        %vm3745 = vcmp.eq.s32.totalorder %v3740, 2
        %v3746 = vxor.u32 %v3736, 2147483648
        %v3747 = vsel %vm3745, %v3746, %v3737
        %v3748 = vsel %vm3741, %v3744, %v3747
        %v3749 = vsel %vm3738, nan, %v3748
        %v3750 = vand.u32 2147483647, %v2873
        %vm3751 = vcmp.le.f32.partialorder %v3750, 0.7853982
        %vm3752 = vcmp.lt.s32.totalorder %v2873, 0
        %v3753 = vand.u32 %v2873, 2139095040
        %v3754 = vshrl.u32 %v3753, 23
        %v3755 = vsub.s32 %v3754, 127
        %v3756 = vand.u32 2147483647, %v2873
        %v3757 = vand.u32 %v3756, 8388607
        %v3758 = vor.u32 %v3757, 8388608
        %v3759 = vsub.s32 0, %v3758
        %v3760 = vadd.s32 %v3755, 1
        %vm3761 = vcmp.gt.s32.totalorder %v3760, 0
        %v3762 = vsel %vm3761, %v3760, 0
        %v3763 = vshrl.u32 %v3762, 5
        %v3764 = vand.u32 %v3762, 31
        %v3765 = vsub.s32 32, %v3764
        %v3766 = vshrl.u32 683565275, %v3765
        %v3767 = vshll.u32 683565275, %v3764
        %v3768 = vshrl.u32 2475754826, %v3765
        %v3769 = vor.u32 %v3767, %v3768
        %v3770 = vshll.u32 2475754826, %v3764
        %v3771 = vshrl.u32 2131351028, %v3765
        %v3772 = vor.u32 %v3770, %v3771
        %v3773 = vshll.u32 2131351028, %v3764
        %v3774 = vshrl.u32 2102212464, %v3765
        %v3775 = vor.u32 %v3773, %v3774
        %v3776 = vshll.u32 2102212464, %v3764
        %v3777 = vshrl.u32 920167782, %v3765
        %v3778 = vor.u32 %v3776, %v3777
        %v3779 = vshll.u32 920167782, %v3764
        %v3780 = vshrl.u32 1326507024, %v3765
        %v3781 = vor.u32 %v3779, %v3780
        %vm3782 = vcmp.lt.s32.totalorder %v3763, 1
        %vm3783 = vcmp.lt.s32.totalorder %v3763, 2
        %vm3784 = vcmp.lt.s32.totalorder %v3763, 3
        %vm3785 = vcmp.lt.s32.totalorder %v3763, 4
        %v3786 = vsel %vm3782, %v3766, %v3769
        %v3787 = vsel %vm3785, %v3775, 2102212464
        %v3788 = vsel %vm3784, %v3772, %v3787
        %v3789 = vsel %vm3783, %v3786, %v3788
        %v3790 = vsel %vm3782, %v3769, %v3772
        %v3791 = vsel %vm3785, %v3778, 920167782
        %v3792 = vsel %vm3784, %v3775, %v3791
        %v3793 = vsel %vm3783, %v3790, %v3792
        %v3794 = vsel %vm3782, %v3772, %v3775
        %v3795 = vsel %vm3785, %v3781, 1326507024
        %v3796 = vsel %vm3784, %v3778, %v3795
        %v3797 = vsel %vm3783, %v3794, %v3796
        %v3798 = vshll.u32 %v3758, 8
        %v3799 = vmul.u32.u64.compose %v3798, %v3797
        %v3800 = vextract.low.u32 %v3799
        %v3801 = vextract.high.u32 %v3799
        %v3802 = vmul.u32.u64.compose %v3798, %v3793
        %v3803 = vextract.low.u32 %v3802
        %v3804 = vextract.high.u32 %v3802
        %v3805 = vmul.u32 %v3798, %v3789
        %v3806 = vadd.s32 %v3801, %v3803
        %vm3807 = vc.u32 %v3801, %v3803
        %v3808 = vadd.s32 %v3804, 1
        %v3809 = vsel %vm3807, %v3808, %v3804
        %v3810 = vadd.s32 %v3805, %v3809
        %v3811 = vadd.s32 %v3810, 536870912
        %v3812 = vshrl.u32 %v3811, 30
        %v3813 = vshll.u32 %v3812, 30
        %v3814 = vsub.s32 %v3810, %v3813
        %vm3815 = vcmp.lt.s32.totalorder %v3814, 0
        %v3816 = vsub.s32 0, %v3814
        %v3817 = vsel %vm3815, %v3816, %v3814
        %v3818 = vclz %v3817
        %v3819 = vsub.s32 %v3818, 2
        %vm3820 = vcmp.gt.s32.totalorder 0, %v3819
        %v3821 = vsel %vm3820, 0, %v3819
        %v3822 = vsub.s32 32, %v3821
        %v3823 = vshll.u32 %v3814, %v3821
        %v3824 = vshrl.u32 %v3806, %v3822
        %v3825 = vor.u32 %v3823, %v3824
        %v3826 = vsub.s32 4294967266, %v3821
        %v3827 = vadd.s32 %v3826, 127
        %v3828 = vshll.u32 %v3827, 23
        %v3829 = vor.u32 4788187, %v3828
        %v3830 = vand.u32 2147483647, %v3829
        %v3832 = vcvt.s32.f32 %v3825
        %v3833 = vmul.f32 %v3832, %v3830
        %v3834 = vxor.u32 %v3833, 2147483648
        %v3835 = vsel %vm3752, %v3834, %v3833
        %v3836 = vsub.s32 4, %v3812
        %v3837 = vsel %vm3752, %v3836, %v3812
        %v3838 = vsel %vm3751, %v2873, %v3835
        %v3839 = vsel %vm3751, 0, %v3837
        %v3840 = vcosq.f32.pop %v3838
        %v3841 = vsinq.f32.pop %v3838
        %vm3842 = vweird.f32 %v2873
        %v3843 = vadd.s32 %v3839, 3
        %v3844 = vand.u32 %v3843, 3
        %vm3845 = vcmp.lt.s32.totalorder %v3844, 2
        %vm3846 = vcmp.eq.s32.totalorder %v3844, 0
        %v3847 = vxor.u32 %v3841, 2147483648
        %v3848 = vsel %vm3846, %v3840, %v3847
        %vm3849 = vcmp.eq.s32.totalorder %v3844, 2
        %v3850 = vxor.u32 %v3840, 2147483648
        %v3851 = vsel %vm3849, %v3850, %v3841
        %v3852 = vsel %vm3845, %v3848, %v3851
        %v3853 = vsel %vm3842, nan, %v3852
        %v3854 = vand.u32 2147483647, %v2942
        %vm3855 = vcmp.le.f32.partialorder %v3854, 0.7853982
        %vm3856 = vcmp.lt.s32.totalorder %v2942, 0
        %v3857 = vand.u32 %v2942, 2139095040
        %v3858 = vshrl.u32 %v3857, 23
        %v3859 = vsub.s32 %v3858, 127
        %v3860 = vand.u32 2147483647, %v2942
        %v3861 = vand.u32 %v3860, 8388607
        %v3862 = vor.u32 %v3861, 8388608
        %v3863 = vsub.s32 0, %v3862
        %v3864 = vadd.s32 %v3859, 1
        %vm3865 = vcmp.gt.s32.totalorder %v3864, 0
        %v3866 = vsel %vm3865, %v3864, 0
        %v3867 = vshrl.u32 %v3866, 5
        %v3868 = vand.u32 %v3866, 31
        %v3869 = vsub.s32 32, %v3868
        %v3870 = vshrl.u32 683565275, %v3869
        %v3871 = vshll.u32 683565275, %v3868
        %v3872 = vshrl.u32 2475754826, %v3869
        %v3873 = vor.u32 %v3871, %v3872
        %v3874 = vshll.u32 2475754826, %v3868
        %v3875 = vshrl.u32 2131351028, %v3869
        %v3876 = vor.u32 %v3874, %v3875
        %v3877 = vshll.u32 2131351028, %v3868
        %v3878 = vshrl.u32 2102212464, %v3869
        %v3879 = vor.u32 %v3877, %v3878
        %v3880 = vshll.u32 2102212464, %v3868
        %v3881 = vshrl.u32 920167782, %v3869
        %v3882 = vor.u32 %v3880, %v3881
        %v3883 = vshll.u32 920167782, %v3868
        %v3884 = vshrl.u32 1326507024, %v3869
        %v3885 = vor.u32 %v3883, %v3884
        %vm3886 = vcmp.lt.s32.totalorder %v3867, 1
        %vm3887 = vcmp.lt.s32.totalorder %v3867, 2
        %vm3888 = vcmp.lt.s32.totalorder %v3867, 3
        %vm3889 = vcmp.lt.s32.totalorder %v3867, 4
        %v3890 = vsel %vm3886, %v3870, %v3873
        %v3891 = vsel %vm3889, %v3879, 2102212464
        %v3892 = vsel %vm3888, %v3876, %v3891
        %v3893 = vsel %vm3887, %v3890, %v3892
        %v3894 = vsel %vm3886, %v3873, %v3876
        %v3895 = vsel %vm3889, %v3882, 920167782
        %v3896 = vsel %vm3888, %v3879, %v3895
        %v3897 = vsel %vm3887, %v3894, %v3896
        %v3898 = vsel %vm3886, %v3876, %v3879
        %v3899 = vsel %vm3889, %v3885, 1326507024
        %v3900 = vsel %vm3888, %v3882, %v3899
        %v3901 = vsel %vm3887, %v3898, %v3900
        %v3902 = vshll.u32 %v3862, 8
        %v3903 = vmul.u32.u64.compose %v3902, %v3901
        %v3904 = vextract.low.u32 %v3903
        %v3905 = vextract.high.u32 %v3903
        %v3906 = vmul.u32.u64.compose %v3902, %v3897
        %v3907 = vextract.low.u32 %v3906
        %v3908 = vextract.high.u32 %v3906
        %v3909 = vmul.u32 %v3902, %v3893
        %v3910 = vadd.s32 %v3905, %v3907
        %vm3911 = vc.u32 %v3905, %v3907
        %v3912 = vadd.s32 %v3908, 1
        %v3913 = vsel %vm3911, %v3912, %v3908
        %v3914 = vadd.s32 %v3909, %v3913
        %v3915 = vadd.s32 %v3914, 536870912
        %v3916 = vshrl.u32 %v3915, 30
        %v3917 = vshll.u32 %v3916, 30
        %v3918 = vsub.s32 %v3914, %v3917
        %vm3919 = vcmp.lt.s32.totalorder %v3918, 0
        %v3920 = vsub.s32 0, %v3918
        %v3921 = vsel %vm3919, %v3920, %v3918
        %v3922 = vclz %v3921
        %v3923 = vsub.s32 %v3922, 2
        %vm3924 = vcmp.gt.s32.totalorder 0, %v3923
        %v3925 = vsel %vm3924, 0, %v3923
        %v3926 = vsub.s32 32, %v3925
        %v3927 = vshll.u32 %v3918, %v3925
        %v3928 = vshrl.u32 %v3910, %v3926
        %v3929 = vor.u32 %v3927, %v3928
        %v3930 = vsub.s32 4294967266, %v3925
        %v3931 = vadd.s32 %v3930, 127
        %v3932 = vshll.u32 %v3931, 23
        %v3933 = vor.u32 4788187, %v3932
        %v3934 = vand.u32 2147483647, %v3933
        %v3936 = vcvt.s32.f32 %v3929
        %v3937 = vmul.f32 %v3936, %v3934
        %v3938 = vxor.u32 %v3937, 2147483648
        %v3939 = vsel %vm3856, %v3938, %v3937
        %v3940 = vsub.s32 4, %v3916
        %v3941 = vsel %vm3856, %v3940, %v3916
        %v3942 = vsel %vm3855, %v2942, %v3939
        %v3943 = vsel %vm3855, 0, %v3941
        %v3944 = vcosq.f32.pop %v3942
        %v3945 = vsinq.f32.pop %v3942
        %vm3946 = vweird.f32 %v2942
        %v3947 = vadd.s32 %v3943, 3
        %v3948 = vand.u32 %v3947, 3
        %vm3949 = vcmp.lt.s32.totalorder %v3948, 2
        %vm3950 = vcmp.eq.s32.totalorder %v3948, 0
        %v3951 = vxor.u32 %v3945, 2147483648
        %v3952 = vsel %vm3950, %v3944, %v3951
        %vm3953 = vcmp.eq.s32.totalorder %v3948, 2
        %v3954 = vxor.u32 %v3944, 2147483648
        %v3955 = vsel %vm3953, %v3954, %v3945
        %v3956 = vsel %vm3949, %v3952, %v3955
        %v3957 = vsel %vm3946, nan, %v3956
        %v3958 = vand.u32 2147483647, %v2944
        %vm3959 = vcmp.le.f32.partialorder %v3958, 0.7853982
        %vm3960 = vcmp.lt.s32.totalorder %v2944, 0
        %v3961 = vand.u32 %v2944, 2139095040
        %v3962 = vshrl.u32 %v3961, 23
        %v3963 = vsub.s32 %v3962, 127
        %v3964 = vand.u32 2147483647, %v2944
        %v3965 = vand.u32 %v3964, 8388607
        %v3966 = vor.u32 %v3965, 8388608
        %v3967 = vsub.s32 0, %v3966
        %v3968 = vadd.s32 %v3963, 1
        %vm3969 = vcmp.gt.s32.totalorder %v3968, 0
        %v3970 = vsel %vm3969, %v3968, 0
        %v3971 = vshrl.u32 %v3970, 5
        %v3972 = vand.u32 %v3970, 31
        %v3973 = vsub.s32 32, %v3972
        %v3974 = vshrl.u32 683565275, %v3973
        %v3975 = vshll.u32 683565275, %v3972
        %v3976 = vshrl.u32 2475754826, %v3973
        %v3977 = vor.u32 %v3975, %v3976
        %v3978 = vshll.u32 2475754826, %v3972
        %v3979 = vshrl.u32 2131351028, %v3973
        %v3980 = vor.u32 %v3978, %v3979
        %v3981 = vshll.u32 2131351028, %v3972
        %v3982 = vshrl.u32 2102212464, %v3973
        %v3983 = vor.u32 %v3981, %v3982
        %v3984 = vshll.u32 2102212464, %v3972
        %v3985 = vshrl.u32 920167782, %v3973
        %v3986 = vor.u32 %v3984, %v3985
        %v3987 = vshll.u32 920167782, %v3972
        %v3988 = vshrl.u32 1326507024, %v3973
        %v3989 = vor.u32 %v3987, %v3988
        %vm3990 = vcmp.lt.s32.totalorder %v3971, 1
        %vm3991 = vcmp.lt.s32.totalorder %v3971, 2
        %vm3992 = vcmp.lt.s32.totalorder %v3971, 3
        %vm3993 = vcmp.lt.s32.totalorder %v3971, 4
        %v3994 = vsel %vm3990, %v3974, %v3977
        %v3995 = vsel %vm3993, %v3983, 2102212464
        %v3996 = vsel %vm3992, %v3980, %v3995
        %v3997 = vsel %vm3991, %v3994, %v3996
        %v3998 = vsel %vm3990, %v3977, %v3980
        %v3999 = vsel %vm3993, %v3986, 920167782
        %v4000 = vsel %vm3992, %v3983, %v3999
        %v4001 = vsel %vm3991, %v3998, %v4000
        %v4002 = vsel %vm3990, %v3980, %v3983
        %v4003 = vsel %vm3993, %v3989, 1326507024
        %v4004 = vsel %vm3992, %v3986, %v4003
        %v4005 = vsel %vm3991, %v4002, %v4004
        %v4006 = vshll.u32 %v3966, 8
        %v4007 = vmul.u32.u64.compose %v4006, %v4005
        %v4008 = vextract.low.u32 %v4007
        %v4009 = vextract.high.u32 %v4007
        %v4010 = vmul.u32.u64.compose %v4006, %v4001
        %v4011 = vextract.low.u32 %v4010
        %v4012 = vextract.high.u32 %v4010
        %v4013 = vmul.u32 %v4006, %v3997
        %v4014 = vadd.s32 %v4009, %v4011
        %vm4015 = vc.u32 %v4009, %v4011
        %v4016 = vadd.s32 %v4012, 1
        %v4017 = vsel %vm4015, %v4016, %v4012
        %v4018 = vadd.s32 %v4013, %v4017
        %v4019 = vadd.s32 %v4018, 536870912
        %v4020 = vshrl.u32 %v4019, 30
        %v4021 = vshll.u32 %v4020, 30
        %v4022 = vsub.s32 %v4018, %v4021
        %vm4023 = vcmp.lt.s32.totalorder %v4022, 0
        %v4024 = vsub.s32 0, %v4022
        %v4025 = vsel %vm4023, %v4024, %v4022
        %v4026 = vclz %v4025
        %v4027 = vsub.s32 %v4026, 2
        %vm4028 = vcmp.gt.s32.totalorder 0, %v4027
        %v4029 = vsel %vm4028, 0, %v4027
        %v4030 = vsub.s32 32, %v4029
        %v4031 = vshll.u32 %v4022, %v4029
        %v4032 = vshrl.u32 %v4014, %v4030
        %v4033 = vor.u32 %v4031, %v4032
        %v4034 = vsub.s32 4294967266, %v4029
        %v4035 = vadd.s32 %v4034, 127
        %v4036 = vshll.u32 %v4035, 23
        %v4037 = vor.u32 4788187, %v4036
        %v4038 = vand.u32 2147483647, %v4037
        %v4040 = vcvt.s32.f32 %v4033
        %v4041 = vmul.f32 %v4040, %v4038
        %v4042 = vxor.u32 %v4041, 2147483648
        %v4043 = vsel %vm3960, %v4042, %v4041
        %v4044 = vsub.s32 4, %v4020
        %v4045 = vsel %vm3960, %v4044, %v4020
        %v4046 = vsel %vm3959, %v2944, %v4043
        %v4047 = vsel %vm3959, 0, %v4045
        %v4048 = vcosq.f32.pop %v4046
        %v4049 = vsinq.f32.pop %v4046
        %vm4050 = vweird.f32 %v2944
        %v4051 = vadd.s32 %v4047, 3
        %v4052 = vand.u32 %v4051, 3
        %vm4053 = vcmp.lt.s32.totalorder %v4052, 2
        %vm4054 = vcmp.eq.s32.totalorder %v4052, 0
        %v4055 = vxor.u32 %v4049, 2147483648
        %v4056 = vsel %vm4054, %v4048, %v4055
        %vm4057 = vcmp.eq.s32.totalorder %v4052, 2
        %v4058 = vxor.u32 %v4048, 2147483648
        %v4059 = vsel %vm4057, %v4058, %v4049
        %v4060 = vsel %vm4053, %v4056, %v4059
        %v4061 = vsel %vm4050, nan, %v4060
        %v4062 = vand.u32 2147483647, %v3013
        %vm4063 = vcmp.le.f32.partialorder %v4062, 0.7853982
        %vm4064 = vcmp.lt.s32.totalorder %v3013, 0
        %v4065 = vand.u32 %v3013, 2139095040
        %v4066 = vshrl.u32 %v4065, 23
        %v4067 = vsub.s32 %v4066, 127
        %v4068 = vand.u32 2147483647, %v3013
        %v4069 = vand.u32 %v4068, 8388607
        %v4070 = vor.u32 %v4069, 8388608
        %v4071 = vsub.s32 0, %v4070
        %v4072 = vadd.s32 %v4067, 1
        %vm4073 = vcmp.gt.s32.totalorder %v4072, 0
        %v4074 = vsel %vm4073, %v4072, 0
        %v4075 = vshrl.u32 %v4074, 5
        %v4076 = vand.u32 %v4074, 31
        %v4077 = vsub.s32 32, %v4076
        %v4078 = vshrl.u32 683565275, %v4077
        %v4079 = vshll.u32 683565275, %v4076
        %v4080 = vshrl.u32 2475754826, %v4077
        %v4081 = vor.u32 %v4079, %v4080
        %v4082 = vshll.u32 2475754826, %v4076
        %v4083 = vshrl.u32 2131351028, %v4077
        %v4084 = vor.u32 %v4082, %v4083
        %v4085 = vshll.u32 2131351028, %v4076
        %v4086 = vshrl.u32 2102212464, %v4077
        %v4087 = vor.u32 %v4085, %v4086
        %v4088 = vshll.u32 2102212464, %v4076
        %v4089 = vshrl.u32 920167782, %v4077
        %v4090 = vor.u32 %v4088, %v4089
        %v4091 = vshll.u32 920167782, %v4076
        %v4092 = vshrl.u32 1326507024, %v4077
        %v4093 = vor.u32 %v4091, %v4092
        %vm4094 = vcmp.lt.s32.totalorder %v4075, 1
        %vm4095 = vcmp.lt.s32.totalorder %v4075, 2
        %vm4096 = vcmp.lt.s32.totalorder %v4075, 3
        %vm4097 = vcmp.lt.s32.totalorder %v4075, 4
        %v4098 = vsel %vm4094, %v4078, %v4081
        %v4099 = vsel %vm4097, %v4087, 2102212464
        %v4100 = vsel %vm4096, %v4084, %v4099
        %v4101 = vsel %vm4095, %v4098, %v4100
        %v4102 = vsel %vm4094, %v4081, %v4084
        %v4103 = vsel %vm4097, %v4090, 920167782
        %v4104 = vsel %vm4096, %v4087, %v4103
        %v4105 = vsel %vm4095, %v4102, %v4104
        %v4106 = vsel %vm4094, %v4084, %v4087
        %v4107 = vsel %vm4097, %v4093, 1326507024
        %v4108 = vsel %vm4096, %v4090, %v4107
        %v4109 = vsel %vm4095, %v4106, %v4108
        %v4110 = vshll.u32 %v4070, 8
        %v4111 = vmul.u32.u64.compose %v4110, %v4109
        %v4112 = vextract.low.u32 %v4111
        %v4113 = vextract.high.u32 %v4111
        %v4114 = vmul.u32.u64.compose %v4110, %v4105
        %v4115 = vextract.low.u32 %v4114
        %v4116 = vextract.high.u32 %v4114
        %v4117 = vmul.u32 %v4110, %v4101
        %v4118 = vadd.s32 %v4113, %v4115
        %vm4119 = vc.u32 %v4113, %v4115
        %v4120 = vadd.s32 %v4116, 1
        %v4121 = vsel %vm4119, %v4120, %v4116
        %v4122 = vadd.s32 %v4117, %v4121
        %v4123 = vadd.s32 %v4122, 536870912
        %v4124 = vshrl.u32 %v4123, 30
        %v4125 = vshll.u32 %v4124, 30
        %v4126 = vsub.s32 %v4122, %v4125
        %vm4127 = vcmp.lt.s32.totalorder %v4126, 0
        %v4128 = vsub.s32 0, %v4126
        %v4129 = vsel %vm4127, %v4128, %v4126
        %v4130 = vclz %v4129
        %v4131 = vsub.s32 %v4130, 2
        %vm4132 = vcmp.gt.s32.totalorder 0, %v4131
        %v4133 = vsel %vm4132, 0, %v4131
        %v4134 = vsub.s32 32, %v4133
        %v4135 = vshll.u32 %v4126, %v4133
        %v4136 = vshrl.u32 %v4118, %v4134
        %v4137 = vor.u32 %v4135, %v4136
        %v4138 = vsub.s32 4294967266, %v4133
        %v4139 = vadd.s32 %v4138, 127
        %v4140 = vshll.u32 %v4139, 23
        %v4141 = vor.u32 4788187, %v4140
        %v4142 = vand.u32 2147483647, %v4141
        %v4144 = vcvt.s32.f32 %v4137
        %v4145 = vmul.f32 %v4144, %v4142
        %v4146 = vxor.u32 %v4145, 2147483648
        %v4147 = vsel %vm4064, %v4146, %v4145
        %v4148 = vsub.s32 4, %v4124
        %v4149 = vsel %vm4064, %v4148, %v4124
        %v4150 = vsel %vm4063, %v3013, %v4147
        %v4151 = vsel %vm4063, 0, %v4149
        %v4152 = vcosq.f32.pop %v4150
        %v4153 = vsinq.f32.pop %v4150
        %vm4154 = vweird.f32 %v3013
        %v4155 = vadd.s32 %v4151, 3
        %v4156 = vand.u32 %v4155, 3
        %vm4157 = vcmp.lt.s32.totalorder %v4156, 2
        %vm4158 = vcmp.eq.s32.totalorder %v4156, 0
        %v4159 = vxor.u32 %v4153, 2147483648
        %v4160 = vsel %vm4158, %v4152, %v4159
        %vm4161 = vcmp.eq.s32.totalorder %v4156, 2
        %v4162 = vxor.u32 %v4152, 2147483648
        %v4163 = vsel %vm4161, %v4162, %v4153
        %v4164 = vsel %vm4157, %v4160, %v4163
        %v4165 = vsel %vm4154, nan, %v4164
        %v4166 = vand.u32 2147483647, %v3015
        %vm4167 = vcmp.le.f32.partialorder %v4166, 0.7853982
        %vm4168 = vcmp.lt.s32.totalorder %v3015, 0
        %v4169 = vand.u32 %v3015, 2139095040
        %v4170 = vshrl.u32 %v4169, 23
        %v4171 = vsub.s32 %v4170, 127
        %v4172 = vand.u32 2147483647, %v3015
        %v4173 = vand.u32 %v4172, 8388607
        %v4174 = vor.u32 %v4173, 8388608
        %v4175 = vsub.s32 0, %v4174
        %v4176 = vadd.s32 %v4171, 1
        %vm4177 = vcmp.gt.s32.totalorder %v4176, 0
        %v4178 = vsel %vm4177, %v4176, 0
        %v4179 = vshrl.u32 %v4178, 5
        %v4180 = vand.u32 %v4178, 31
        %v4181 = vsub.s32 32, %v4180
        %v4182 = vshrl.u32 683565275, %v4181
        %v4183 = vshll.u32 683565275, %v4180
        %v4184 = vshrl.u32 2475754826, %v4181
        %v4185 = vor.u32 %v4183, %v4184
        %v4186 = vshll.u32 2475754826, %v4180
        %v4187 = vshrl.u32 2131351028, %v4181
        %v4188 = vor.u32 %v4186, %v4187
        %v4189 = vshll.u32 2131351028, %v4180
        %v4190 = vshrl.u32 2102212464, %v4181
        %v4191 = vor.u32 %v4189, %v4190
        %v4192 = vshll.u32 2102212464, %v4180
        %v4193 = vshrl.u32 920167782, %v4181
        %v4194 = vor.u32 %v4192, %v4193
        %v4195 = vshll.u32 920167782, %v4180
        %v4196 = vshrl.u32 1326507024, %v4181
        %v4197 = vor.u32 %v4195, %v4196
        %vm4198 = vcmp.lt.s32.totalorder %v4179, 1
        %vm4199 = vcmp.lt.s32.totalorder %v4179, 2
        %vm4200 = vcmp.lt.s32.totalorder %v4179, 3
        %vm4201 = vcmp.lt.s32.totalorder %v4179, 4
        %v4202 = vsel %vm4198, %v4182, %v4185
        %v4203 = vsel %vm4201, %v4191, 2102212464
        %v4204 = vsel %vm4200, %v4188, %v4203
        %v4205 = vsel %vm4199, %v4202, %v4204
        %v4206 = vsel %vm4198, %v4185, %v4188
        %v4207 = vsel %vm4201, %v4194, 920167782
        %v4208 = vsel %vm4200, %v4191, %v4207
        %v4209 = vsel %vm4199, %v4206, %v4208
        %v4210 = vsel %vm4198, %v4188, %v4191
        %v4211 = vsel %vm4201, %v4197, 1326507024
        %v4212 = vsel %vm4200, %v4194, %v4211
        %v4213 = vsel %vm4199, %v4210, %v4212
        %v4214 = vshll.u32 %v4174, 8
        %v4215 = vmul.u32.u64.compose %v4214, %v4213
        %v4216 = vextract.low.u32 %v4215
        %v4217 = vextract.high.u32 %v4215
        %v4218 = vmul.u32.u64.compose %v4214, %v4209
        %v4219 = vextract.low.u32 %v4218
        %v4220 = vextract.high.u32 %v4218
        %v4221 = vmul.u32 %v4214, %v4205
        %v4222 = vadd.s32 %v4217, %v4219
        %vm4223 = vc.u32 %v4217, %v4219
        %v4224 = vadd.s32 %v4220, 1
        %v4225 = vsel %vm4223, %v4224, %v4220
        %v4226 = vadd.s32 %v4221, %v4225
        %v4227 = vadd.s32 %v4226, 536870912
        %v4228 = vshrl.u32 %v4227, 30
        %v4229 = vshll.u32 %v4228, 30
        %v4230 = vsub.s32 %v4226, %v4229
        %vm4231 = vcmp.lt.s32.totalorder %v4230, 0
        %v4232 = vsub.s32 0, %v4230
        %v4233 = vsel %vm4231, %v4232, %v4230
        %v4234 = vclz %v4233
        %v4235 = vsub.s32 %v4234, 2
        %vm4236 = vcmp.gt.s32.totalorder 0, %v4235
        %v4237 = vsel %vm4236, 0, %v4235
        %v4238 = vsub.s32 32, %v4237
        %v4239 = vshll.u32 %v4230, %v4237
        %v4240 = vshrl.u32 %v4222, %v4238
        %v4241 = vor.u32 %v4239, %v4240
        %v4242 = vsub.s32 4294967266, %v4237
        %v4243 = vadd.s32 %v4242, 127
        %v4244 = vshll.u32 %v4243, 23
        %v4245 = vor.u32 4788187, %v4244
        %v4246 = vand.u32 2147483647, %v4245
        %v4248 = vcvt.s32.f32 %v4241
        %v4249 = vmul.f32 %v4248, %v4246
        %v4250 = vxor.u32 %v4249, 2147483648
        %v4251 = vsel %vm4168, %v4250, %v4249
        %v4252 = vsub.s32 4, %v4228
        %v4253 = vsel %vm4168, %v4252, %v4228
        %v4254 = vsel %vm4167, %v3015, %v4251
        %v4255 = vsel %vm4167, 0, %v4253
        %v4256 = vcosq.f32.pop %v4254
        %v4257 = vsinq.f32.pop %v4254
        %vm4258 = vweird.f32 %v3015
        %v4259 = vadd.s32 %v4255, 3
        %v4260 = vand.u32 %v4259, 3
        %vm4261 = vcmp.lt.s32.totalorder %v4260, 2
        %vm4262 = vcmp.eq.s32.totalorder %v4260, 0
        %v4263 = vxor.u32 %v4257, 2147483648
        %v4264 = vsel %vm4262, %v4256, %v4263
        %vm4265 = vcmp.eq.s32.totalorder %v4260, 2
        %v4266 = vxor.u32 %v4256, 2147483648
        %v4267 = vsel %vm4265, %v4266, %v4257
        %v4268 = vsel %vm4261, %v4264, %v4267
        %v4269 = vsel %vm4258, nan, %v4268
        %v4270 = vand.u32 2147483647, %v3084
        %vm4271 = vcmp.le.f32.partialorder %v4270, 0.7853982
        %vm4272 = vcmp.lt.s32.totalorder %v3084, 0
        %v4273 = vand.u32 %v3084, 2139095040
        %v4274 = vshrl.u32 %v4273, 23
        %v4275 = vsub.s32 %v4274, 127
        %v4276 = vand.u32 2147483647, %v3084
        %v4277 = vand.u32 %v4276, 8388607
        %v4278 = vor.u32 %v4277, 8388608
        %v4279 = vsub.s32 0, %v4278
        %v4280 = vadd.s32 %v4275, 1
        %vm4281 = vcmp.gt.s32.totalorder %v4280, 0
        %v4282 = vsel %vm4281, %v4280, 0
        %v4283 = vshrl.u32 %v4282, 5
        %v4284 = vand.u32 %v4282, 31
        %v4285 = vsub.s32 32, %v4284
        %v4286 = vshrl.u32 683565275, %v4285
        %v4287 = vshll.u32 683565275, %v4284
        %v4288 = vshrl.u32 2475754826, %v4285
        %v4289 = vor.u32 %v4287, %v4288
        %v4290 = vshll.u32 2475754826, %v4284
        %v4291 = vshrl.u32 2131351028, %v4285
        %v4292 = vor.u32 %v4290, %v4291
        %v4293 = vshll.u32 2131351028, %v4284
        %v4294 = vshrl.u32 2102212464, %v4285
        %v4295 = vor.u32 %v4293, %v4294
        %v4296 = vshll.u32 2102212464, %v4284
        %v4297 = vshrl.u32 920167782, %v4285
        %v4298 = vor.u32 %v4296, %v4297
        %v4299 = vshll.u32 920167782, %v4284
        %v4300 = vshrl.u32 1326507024, %v4285
        %v4301 = vor.u32 %v4299, %v4300
        %vm4302 = vcmp.lt.s32.totalorder %v4283, 1
        %vm4303 = vcmp.lt.s32.totalorder %v4283, 2
        %vm4304 = vcmp.lt.s32.totalorder %v4283, 3
        %vm4305 = vcmp.lt.s32.totalorder %v4283, 4
        %v4306 = vsel %vm4302, %v4286, %v4289
        %v4307 = vsel %vm4305, %v4295, 2102212464
        %v4308 = vsel %vm4304, %v4292, %v4307
        %v4309 = vsel %vm4303, %v4306, %v4308
        %v4310 = vsel %vm4302, %v4289, %v4292
        %v4311 = vsel %vm4305, %v4298, 920167782
        %v4312 = vsel %vm4304, %v4295, %v4311
        %v4313 = vsel %vm4303, %v4310, %v4312
        %v4314 = vsel %vm4302, %v4292, %v4295
        %v4315 = vsel %vm4305, %v4301, 1326507024
        %v4316 = vsel %vm4304, %v4298, %v4315
        %v4317 = vsel %vm4303, %v4314, %v4316
        %v4318 = vshll.u32 %v4278, 8
        %v4319 = vmul.u32.u64.compose %v4318, %v4317
        %v4320 = vextract.low.u32 %v4319
        %v4321 = vextract.high.u32 %v4319
        %v4322 = vmul.u32.u64.compose %v4318, %v4313
        %v4323 = vextract.low.u32 %v4322
        %v4324 = vextract.high.u32 %v4322
        %v4325 = vmul.u32 %v4318, %v4309
        %v4326 = vadd.s32 %v4321, %v4323
        %vm4327 = vc.u32 %v4321, %v4323
        %v4328 = vadd.s32 %v4324, 1
        %v4329 = vsel %vm4327, %v4328, %v4324
        %v4330 = vadd.s32 %v4325, %v4329
        %v4331 = vadd.s32 %v4330, 536870912
        %v4332 = vshrl.u32 %v4331, 30
        %v4333 = vshll.u32 %v4332, 30
        %v4334 = vsub.s32 %v4330, %v4333
        %vm4335 = vcmp.lt.s32.totalorder %v4334, 0
        %v4336 = vsub.s32 0, %v4334
        %v4337 = vsel %vm4335, %v4336, %v4334
        %v4338 = vclz %v4337
        %v4339 = vsub.s32 %v4338, 2
        %vm4340 = vcmp.gt.s32.totalorder 0, %v4339
        %v4341 = vsel %vm4340, 0, %v4339
        %v4342 = vsub.s32 32, %v4341
        %v4343 = vshll.u32 %v4334, %v4341
        %v4344 = vshrl.u32 %v4326, %v4342
        %v4345 = vor.u32 %v4343, %v4344
        %v4346 = vsub.s32 4294967266, %v4341
        %v4347 = vadd.s32 %v4346, 127
        %v4348 = vshll.u32 %v4347, 23
        %v4349 = vor.u32 4788187, %v4348
        %v4350 = vand.u32 2147483647, %v4349
        %v4352 = vcvt.s32.f32 %v4345
        %v4353 = vmul.f32 %v4352, %v4350
        %v4354 = vxor.u32 %v4353, 2147483648
        %v4355 = vsel %vm4272, %v4354, %v4353
        %v4356 = vsub.s32 4, %v4332
        %v4357 = vsel %vm4272, %v4356, %v4332
        %v4358 = vsel %vm4271, %v3084, %v4355
        %v4359 = vsel %vm4271, 0, %v4357
        %v4360 = vcosq.f32.pop %v4358
        %v4361 = vsinq.f32.pop %v4358
        %vm4362 = vweird.f32 %v3084
        %v4363 = vadd.s32 %v4359, 3
        %v4364 = vand.u32 %v4363, 3
        %vm4365 = vcmp.lt.s32.totalorder %v4364, 2
        %vm4366 = vcmp.eq.s32.totalorder %v4364, 0
        %v4367 = vxor.u32 %v4361, 2147483648
        %v4368 = vsel %vm4366, %v4360, %v4367
        %vm4369 = vcmp.eq.s32.totalorder %v4364, 2
        %v4370 = vxor.u32 %v4360, 2147483648
        %v4371 = vsel %vm4369, %v4370, %v4361
        %v4372 = vsel %vm4365, %v4368, %v4371
        %v4373 = vsel %vm4362, nan, %v4372
        %v4374 = vand.u32 2147483647, %v3086
        %vm4375 = vcmp.le.f32.partialorder %v4374, 0.7853982
        %vm4376 = vcmp.lt.s32.totalorder %v3086, 0
        %v4377 = vand.u32 %v3086, 2139095040
        %v4378 = vshrl.u32 %v4377, 23
        %v4379 = vsub.s32 %v4378, 127
        %v4380 = vand.u32 2147483647, %v3086
        %v4381 = vand.u32 %v4380, 8388607
        %v4382 = vor.u32 %v4381, 8388608
        %v4383 = vsub.s32 0, %v4382
        %v4384 = vadd.s32 %v4379, 1
        %vm4385 = vcmp.gt.s32.totalorder %v4384, 0
        %v4386 = vsel %vm4385, %v4384, 0
        %v4387 = vshrl.u32 %v4386, 5
        %v4388 = vand.u32 %v4386, 31
        %v4389 = vsub.s32 32, %v4388
        %v4390 = vshrl.u32 683565275, %v4389
        %v4391 = vshll.u32 683565275, %v4388
        %v4392 = vshrl.u32 2475754826, %v4389
        %v4393 = vor.u32 %v4391, %v4392
        %v4394 = vshll.u32 2475754826, %v4388
        %v4395 = vshrl.u32 2131351028, %v4389
        %v4396 = vor.u32 %v4394, %v4395
        %v4397 = vshll.u32 2131351028, %v4388
        %v4398 = vshrl.u32 2102212464, %v4389
        %v4399 = vor.u32 %v4397, %v4398
        %v4400 = vshll.u32 2102212464, %v4388
        %v4401 = vshrl.u32 920167782, %v4389
        %v4402 = vor.u32 %v4400, %v4401
        %v4403 = vshll.u32 920167782, %v4388
        %v4404 = vshrl.u32 1326507024, %v4389
        %v4405 = vor.u32 %v4403, %v4404
        %vm4406 = vcmp.lt.s32.totalorder %v4387, 1
        %vm4407 = vcmp.lt.s32.totalorder %v4387, 2
        %vm4408 = vcmp.lt.s32.totalorder %v4387, 3
        %vm4409 = vcmp.lt.s32.totalorder %v4387, 4
        %v4410 = vsel %vm4406, %v4390, %v4393
        %v4411 = vsel %vm4409, %v4399, 2102212464
        %v4412 = vsel %vm4408, %v4396, %v4411
        %v4413 = vsel %vm4407, %v4410, %v4412
        %v4414 = vsel %vm4406, %v4393, %v4396
        %v4415 = vsel %vm4409, %v4402, 920167782
        %v4416 = vsel %vm4408, %v4399, %v4415
        %v4417 = vsel %vm4407, %v4414, %v4416
        %v4418 = vsel %vm4406, %v4396, %v4399
        %v4419 = vsel %vm4409, %v4405, 1326507024
        %v4420 = vsel %vm4408, %v4402, %v4419
        %v4421 = vsel %vm4407, %v4418, %v4420
        %v4422 = vshll.u32 %v4382, 8
        %v4423 = vmul.u32.u64.compose %v4422, %v4421
        %v4424 = vextract.low.u32 %v4423
        %v4425 = vextract.high.u32 %v4423
        %v4426 = vmul.u32.u64.compose %v4422, %v4417
        %v4427 = vextract.low.u32 %v4426
        %v4428 = vextract.high.u32 %v4426
        %v4429 = vmul.u32 %v4422, %v4413
        %v4430 = vadd.s32 %v4425, %v4427
        %vm4431 = vc.u32 %v4425, %v4427
        %v4432 = vadd.s32 %v4428, 1
        %v4433 = vsel %vm4431, %v4432, %v4428
        %v4434 = vadd.s32 %v4429, %v4433
        %v4435 = vadd.s32 %v4434, 536870912
        %v4436 = vshrl.u32 %v4435, 30
        %v4437 = vshll.u32 %v4436, 30
        %v4438 = vsub.s32 %v4434, %v4437
        %vm4439 = vcmp.lt.s32.totalorder %v4438, 0
        %v4440 = vsub.s32 0, %v4438
        %v4441 = vsel %vm4439, %v4440, %v4438
        %v4442 = vclz %v4441
        %v4443 = vsub.s32 %v4442, 2
        %vm4444 = vcmp.gt.s32.totalorder 0, %v4443
        %v4445 = vsel %vm4444, 0, %v4443
        %v4446 = vsub.s32 32, %v4445
        %v4447 = vshll.u32 %v4438, %v4445
        %v4448 = vshrl.u32 %v4430, %v4446
        %v4449 = vor.u32 %v4447, %v4448
        %v4450 = vsub.s32 4294967266, %v4445
        %v4451 = vadd.s32 %v4450, 127
        %v4452 = vshll.u32 %v4451, 23
        %v4453 = vor.u32 4788187, %v4452
        %v4454 = vand.u32 2147483647, %v4453
        %v4456 = vcvt.s32.f32 %v4449
        %v4457 = vmul.f32 %v4456, %v4454
        %v4458 = vxor.u32 %v4457, 2147483648
        %v4459 = vsel %vm4376, %v4458, %v4457
        %v4460 = vsub.s32 4, %v4436
        %v4461 = vsel %vm4376, %v4460, %v4436
        %v4462 = vsel %vm4375, %v3086, %v4459
        %v4463 = vsel %vm4375, 0, %v4461
        %v4464 = vcosq.f32.pop %v4462
        %v4465 = vsinq.f32.pop %v4462
        %vm4466 = vweird.f32 %v3086
        %v4467 = vadd.s32 %v4463, 3
        %v4468 = vand.u32 %v4467, 3
        %vm4469 = vcmp.lt.s32.totalorder %v4468, 2
        %vm4470 = vcmp.eq.s32.totalorder %v4468, 0
        %v4471 = vxor.u32 %v4465, 2147483648
        %v4472 = vsel %vm4470, %v4464, %v4471
        %vm4473 = vcmp.eq.s32.totalorder %v4468, 2
        %v4474 = vxor.u32 %v4464, 2147483648
        %v4475 = vsel %vm4473, %v4474, %v4465
        %v4476 = vsel %vm4469, %v4472, %v4475
        %v4477 = vsel %vm4466, nan, %v4476
        %v4478 = vand.u32 2147483647, %v3155
        %vm4479 = vcmp.le.f32.partialorder %v4478, 0.7853982
        %vm4480 = vcmp.lt.s32.totalorder %v3155, 0
        %v4481 = vand.u32 %v3155, 2139095040
        %v4482 = vshrl.u32 %v4481, 23
        %v4483 = vsub.s32 %v4482, 127
        %v4484 = vand.u32 2147483647, %v3155
        %v4485 = vand.u32 %v4484, 8388607
        %v4486 = vor.u32 %v4485, 8388608
        %v4487 = vsub.s32 0, %v4486
        %v4488 = vadd.s32 %v4483, 1
        %vm4489 = vcmp.gt.s32.totalorder %v4488, 0
        %v4490 = vsel %vm4489, %v4488, 0
        %v4491 = vshrl.u32 %v4490, 5
        %v4492 = vand.u32 %v4490, 31
        %v4493 = vsub.s32 32, %v4492
        %v4494 = vshrl.u32 683565275, %v4493
        %v4495 = vshll.u32 683565275, %v4492
        %v4496 = vshrl.u32 2475754826, %v4493
        %v4497 = vor.u32 %v4495, %v4496
        %v4498 = vshll.u32 2475754826, %v4492
        %v4499 = vshrl.u32 2131351028, %v4493
        %v4500 = vor.u32 %v4498, %v4499
        %v4501 = vshll.u32 2131351028, %v4492
        %v4502 = vshrl.u32 2102212464, %v4493
        %v4503 = vor.u32 %v4501, %v4502
        %v4504 = vshll.u32 2102212464, %v4492
        %v4505 = vshrl.u32 920167782, %v4493
        %v4506 = vor.u32 %v4504, %v4505
        %v4507 = vshll.u32 920167782, %v4492
        %v4508 = vshrl.u32 1326507024, %v4493
        %v4509 = vor.u32 %v4507, %v4508
        %vm4510 = vcmp.lt.s32.totalorder %v4491, 1
        %vm4511 = vcmp.lt.s32.totalorder %v4491, 2
        %vm4512 = vcmp.lt.s32.totalorder %v4491, 3
        %vm4513 = vcmp.lt.s32.totalorder %v4491, 4
        %v4514 = vsel %vm4510, %v4494, %v4497
        %v4515 = vsel %vm4513, %v4503, 2102212464
        %v4516 = vsel %vm4512, %v4500, %v4515
        %v4517 = vsel %vm4511, %v4514, %v4516
        %v4518 = vsel %vm4510, %v4497, %v4500
        %v4519 = vsel %vm4513, %v4506, 920167782
        %v4520 = vsel %vm4512, %v4503, %v4519
        %v4521 = vsel %vm4511, %v4518, %v4520
        %v4522 = vsel %vm4510, %v4500, %v4503
        %v4523 = vsel %vm4513, %v4509, 1326507024
        %v4524 = vsel %vm4512, %v4506, %v4523
        %v4525 = vsel %vm4511, %v4522, %v4524
        %v4526 = vshll.u32 %v4486, 8
        %v4527 = vmul.u32.u64.compose %v4526, %v4525
        %v4528 = vextract.low.u32 %v4527
        %v4529 = vextract.high.u32 %v4527
        %v4530 = vmul.u32.u64.compose %v4526, %v4521
        %v4531 = vextract.low.u32 %v4530
        %v4532 = vextract.high.u32 %v4530
        %v4533 = vmul.u32 %v4526, %v4517
        %v4534 = vadd.s32 %v4529, %v4531
        %vm4535 = vc.u32 %v4529, %v4531
        %v4536 = vadd.s32 %v4532, 1
        %v4537 = vsel %vm4535, %v4536, %v4532
        %v4538 = vadd.s32 %v4533, %v4537
        %v4539 = vadd.s32 %v4538, 536870912
        %v4540 = vshrl.u32 %v4539, 30
        %v4541 = vshll.u32 %v4540, 30
        %v4542 = vsub.s32 %v4538, %v4541
        %vm4543 = vcmp.lt.s32.totalorder %v4542, 0
        %v4544 = vsub.s32 0, %v4542
        %v4545 = vsel %vm4543, %v4544, %v4542
        %v4546 = vclz %v4545
        %v4547 = vsub.s32 %v4546, 2
        %vm4548 = vcmp.gt.s32.totalorder 0, %v4547
        %v4549 = vsel %vm4548, 0, %v4547
        %v4550 = vsub.s32 32, %v4549
        %v4551 = vshll.u32 %v4542, %v4549
        %v4552 = vshrl.u32 %v4534, %v4550
        %v4553 = vor.u32 %v4551, %v4552
        %v4554 = vsub.s32 4294967266, %v4549
        %v4555 = vadd.s32 %v4554, 127
        %v4556 = vshll.u32 %v4555, 23
        %v4557 = vor.u32 4788187, %v4556
        %v4558 = vand.u32 2147483647, %v4557
        %v4560 = vcvt.s32.f32 %v4553
        %v4561 = vmul.f32 %v4560, %v4558
        %v4562 = vxor.u32 %v4561, 2147483648
        %v4563 = vsel %vm4480, %v4562, %v4561
        %v4564 = vsub.s32 4, %v4540
        %v4565 = vsel %vm4480, %v4564, %v4540
        %v4566 = vsel %vm4479, %v3155, %v4563
        %v4567 = vsel %vm4479, 0, %v4565
        %v4568 = vcosq.f32.pop %v4566
        %v4569 = vsinq.f32.pop %v4566
        %vm4570 = vweird.f32 %v3155
        %v4571 = vadd.s32 %v4567, 3
        %v4572 = vand.u32 %v4571, 3
        %vm4573 = vcmp.lt.s32.totalorder %v4572, 2
        %vm4574 = vcmp.eq.s32.totalorder %v4572, 0
        %v4575 = vxor.u32 %v4569, 2147483648
        %v4576 = vsel %vm4574, %v4568, %v4575
        %vm4577 = vcmp.eq.s32.totalorder %v4572, 2
        %v4578 = vxor.u32 %v4568, 2147483648
        %v4579 = vsel %vm4577, %v4578, %v4569
        %v4580 = vsel %vm4573, %v4576, %v4579
        %v4581 = vsel %vm4570, nan, %v4580
        %v4582 = vand.u32 2147483647, %v3157
        %vm4583 = vcmp.le.f32.partialorder %v4582, 0.7853982
        %vm4584 = vcmp.lt.s32.totalorder %v3157, 0
        %v4585 = vand.u32 %v3157, 2139095040
        %v4586 = vshrl.u32 %v4585, 23
        %v4587 = vsub.s32 %v4586, 127
        %v4588 = vand.u32 2147483647, %v3157
        %v4589 = vand.u32 %v4588, 8388607
        %v4590 = vor.u32 %v4589, 8388608
        %v4591 = vsub.s32 0, %v4590
        %v4592 = vadd.s32 %v4587, 1
        %vm4593 = vcmp.gt.s32.totalorder %v4592, 0
        %v4594 = vsel %vm4593, %v4592, 0
        %v4595 = vshrl.u32 %v4594, 5
        %v4596 = vand.u32 %v4594, 31
        %v4597 = vsub.s32 32, %v4596
        %v4598 = vshrl.u32 683565275, %v4597
        %v4599 = vshll.u32 683565275, %v4596
        %v4600 = vshrl.u32 2475754826, %v4597
        %v4601 = vor.u32 %v4599, %v4600
        %v4602 = vshll.u32 2475754826, %v4596
        %v4603 = vshrl.u32 2131351028, %v4597
        %v4604 = vor.u32 %v4602, %v4603
        %v4605 = vshll.u32 2131351028, %v4596
        %v4606 = vshrl.u32 2102212464, %v4597
        %v4607 = vor.u32 %v4605, %v4606
        %v4608 = vshll.u32 2102212464, %v4596
        %v4609 = vshrl.u32 920167782, %v4597
        %v4610 = vor.u32 %v4608, %v4609
        %v4611 = vshll.u32 920167782, %v4596
        %v4612 = vshrl.u32 1326507024, %v4597
        %v4613 = vor.u32 %v4611, %v4612
        %vm4614 = vcmp.lt.s32.totalorder %v4595, 1
        %vm4615 = vcmp.lt.s32.totalorder %v4595, 2
        %vm4616 = vcmp.lt.s32.totalorder %v4595, 3
        %vm4617 = vcmp.lt.s32.totalorder %v4595, 4
        %v4618 = vsel %vm4614, %v4598, %v4601
        %v4619 = vsel %vm4617, %v4607, 2102212464
        %v4620 = vsel %vm4616, %v4604, %v4619
        %v4621 = vsel %vm4615, %v4618, %v4620
        %v4622 = vsel %vm4614, %v4601, %v4604
        %v4623 = vsel %vm4617, %v4610, 920167782
        %v4624 = vsel %vm4616, %v4607, %v4623
        %v4625 = vsel %vm4615, %v4622, %v4624
        %v4626 = vsel %vm4614, %v4604, %v4607
        %v4627 = vsel %vm4617, %v4613, 1326507024
        %v4628 = vsel %vm4616, %v4610, %v4627
        %v4629 = vsel %vm4615, %v4626, %v4628
        %v4630 = vshll.u32 %v4590, 8
        %v4631 = vmul.u32.u64.compose %v4630, %v4629
        %v4632 = vextract.low.u32 %v4631
        %v4633 = vextract.high.u32 %v4631
        %v4634 = vmul.u32.u64.compose %v4630, %v4625
        %v4635 = vextract.low.u32 %v4634
        %v4636 = vextract.high.u32 %v4634
        %v4637 = vmul.u32 %v4630, %v4621
        %v4638 = vadd.s32 %v4633, %v4635
        %vm4639 = vc.u32 %v4633, %v4635
        %v4640 = vadd.s32 %v4636, 1
        %v4641 = vsel %vm4639, %v4640, %v4636
        %v4642 = vadd.s32 %v4637, %v4641
        %v4643 = vadd.s32 %v4642, 536870912
        %v4644 = vshrl.u32 %v4643, 30
        %v4645 = vshll.u32 %v4644, 30
        %v4646 = vsub.s32 %v4642, %v4645
        %vm4647 = vcmp.lt.s32.totalorder %v4646, 0
        %v4648 = vsub.s32 0, %v4646
        %v4649 = vsel %vm4647, %v4648, %v4646
        %v4650 = vclz %v4649
        %v4651 = vsub.s32 %v4650, 2
        %vm4652 = vcmp.gt.s32.totalorder 0, %v4651
        %v4653 = vsel %vm4652, 0, %v4651
        %v4654 = vsub.s32 32, %v4653
        %v4655 = vshll.u32 %v4646, %v4653
        %v4656 = vshrl.u32 %v4638, %v4654
        %v4657 = vor.u32 %v4655, %v4656
        %v4658 = vsub.s32 4294967266, %v4653
        %v4659 = vadd.s32 %v4658, 127
        %v4660 = vshll.u32 %v4659, 23
        %v4661 = vor.u32 4788187, %v4660
        %v4662 = vand.u32 2147483647, %v4661
        %v4664 = vcvt.s32.f32 %v4657
        %v4665 = vmul.f32 %v4664, %v4662
        %v4666 = vxor.u32 %v4665, 2147483648
        %v4667 = vsel %vm4584, %v4666, %v4665
        %v4668 = vsub.s32 4, %v4644
        %v4669 = vsel %vm4584, %v4668, %v4644
        %v4670 = vsel %vm4583, %v3157, %v4667
        %v4671 = vsel %vm4583, 0, %v4669
        %v4672 = vcosq.f32.pop %v4670
        %v4673 = vsinq.f32.pop %v4670
        %vm4674 = vweird.f32 %v3157
        %v4675 = vadd.s32 %v4671, 3
        %v4676 = vand.u32 %v4675, 3
        %vm4677 = vcmp.lt.s32.totalorder %v4676, 2
        %vm4678 = vcmp.eq.s32.totalorder %v4676, 0
        %v4679 = vxor.u32 %v4673, 2147483648
        %v4680 = vsel %vm4678, %v4672, %v4679
        %vm4681 = vcmp.eq.s32.totalorder %v4676, 2
        %v4682 = vxor.u32 %v4672, 2147483648
        %v4683 = vsel %vm4681, %v4682, %v4673
        %v4684 = vsel %vm4677, %v4680, %v4683
        %v4685 = vsel %vm4674, nan, %v4684
        %v4686 = vand.u32 2147483647, %v3226
        %vm4687 = vcmp.le.f32.partialorder %v4686, 0.7853982
        %vm4688 = vcmp.lt.s32.totalorder %v3226, 0
        %v4689 = vand.u32 %v3226, 2139095040
        %v4690 = vshrl.u32 %v4689, 23
        %v4691 = vsub.s32 %v4690, 127
        %v4692 = vand.u32 2147483647, %v3226
        %v4693 = vand.u32 %v4692, 8388607
        %v4694 = vor.u32 %v4693, 8388608
        %v4695 = vsub.s32 0, %v4694
        %v4696 = vadd.s32 %v4691, 1
        %vm4697 = vcmp.gt.s32.totalorder %v4696, 0
        %v4698 = vsel %vm4697, %v4696, 0
        %v4699 = vshrl.u32 %v4698, 5
        %v4700 = vand.u32 %v4698, 31
        %v4701 = vsub.s32 32, %v4700
        %v4702 = vshrl.u32 683565275, %v4701
        %v4703 = vshll.u32 683565275, %v4700
        %v4704 = vshrl.u32 2475754826, %v4701
        %v4705 = vor.u32 %v4703, %v4704
        %v4706 = vshll.u32 2475754826, %v4700
        %v4707 = vshrl.u32 2131351028, %v4701
        %v4708 = vor.u32 %v4706, %v4707
        %v4709 = vshll.u32 2131351028, %v4700
        %v4710 = vshrl.u32 2102212464, %v4701
        %v4711 = vor.u32 %v4709, %v4710
        %v4712 = vshll.u32 2102212464, %v4700
        %v4713 = vshrl.u32 920167782, %v4701
        %v4714 = vor.u32 %v4712, %v4713
        %v4715 = vshll.u32 920167782, %v4700
        %v4716 = vshrl.u32 1326507024, %v4701
        %v4717 = vor.u32 %v4715, %v4716
        %vm4718 = vcmp.lt.s32.totalorder %v4699, 1
        %vm4719 = vcmp.lt.s32.totalorder %v4699, 2
        %vm4720 = vcmp.lt.s32.totalorder %v4699, 3
        %vm4721 = vcmp.lt.s32.totalorder %v4699, 4
        %v4722 = vsel %vm4718, %v4702, %v4705
        %v4723 = vsel %vm4721, %v4711, 2102212464
        %v4724 = vsel %vm4720, %v4708, %v4723
        %v4725 = vsel %vm4719, %v4722, %v4724
        %v4726 = vsel %vm4718, %v4705, %v4708
        %v4727 = vsel %vm4721, %v4714, 920167782
        %v4728 = vsel %vm4720, %v4711, %v4727
        %v4729 = vsel %vm4719, %v4726, %v4728
        %v4730 = vsel %vm4718, %v4708, %v4711
        %v4731 = vsel %vm4721, %v4717, 1326507024
        %v4732 = vsel %vm4720, %v4714, %v4731
        %v4733 = vsel %vm4719, %v4730, %v4732
        %v4734 = vshll.u32 %v4694, 8
        %v4735 = vmul.u32.u64.compose %v4734, %v4733
        %v4736 = vextract.low.u32 %v4735
        %v4737 = vextract.high.u32 %v4735
        %v4738 = vmul.u32.u64.compose %v4734, %v4729
        %v4739 = vextract.low.u32 %v4738
        %v4740 = vextract.high.u32 %v4738
        %v4741 = vmul.u32 %v4734, %v4725
        %v4742 = vadd.s32 %v4737, %v4739
        %vm4743 = vc.u32 %v4737, %v4739
        %v4744 = vadd.s32 %v4740, 1
        %v4745 = vsel %vm4743, %v4744, %v4740
        %v4746 = vadd.s32 %v4741, %v4745
        %v4747 = vadd.s32 %v4746, 536870912
        %v4748 = vshrl.u32 %v4747, 30
        %v4749 = vshll.u32 %v4748, 30
        %v4750 = vsub.s32 %v4746, %v4749
        %vm4751 = vcmp.lt.s32.totalorder %v4750, 0
        %v4752 = vsub.s32 0, %v4750
        %v4753 = vsel %vm4751, %v4752, %v4750
        %v4754 = vclz %v4753
        %v4755 = vsub.s32 %v4754, 2
        %vm4756 = vcmp.gt.s32.totalorder 0, %v4755
        %v4757 = vsel %vm4756, 0, %v4755
        %v4758 = vsub.s32 32, %v4757
        %v4759 = vshll.u32 %v4750, %v4757
        %v4760 = vshrl.u32 %v4742, %v4758
        %v4761 = vor.u32 %v4759, %v4760
        %v4762 = vsub.s32 4294967266, %v4757
        %v4763 = vadd.s32 %v4762, 127
        %v4764 = vshll.u32 %v4763, 23
        %v4765 = vor.u32 4788187, %v4764
        %v4766 = vand.u32 2147483647, %v4765
        %v4768 = vcvt.s32.f32 %v4761
        %v4769 = vmul.f32 %v4768, %v4766
        %v4770 = vxor.u32 %v4769, 2147483648
        %v4771 = vsel %vm4688, %v4770, %v4769
        %v4772 = vsub.s32 4, %v4748
        %v4773 = vsel %vm4688, %v4772, %v4748
        %v4774 = vsel %vm4687, %v3226, %v4771
        %v4775 = vsel %vm4687, 0, %v4773
        %v4776 = vcosq.f32.pop %v4774
        %v4777 = vsinq.f32.pop %v4774
        %vm4778 = vweird.f32 %v3226
        %v4779 = vadd.s32 %v4775, 3
        %v4780 = vand.u32 %v4779, 3
        %vm4781 = vcmp.lt.s32.totalorder %v4780, 2
        %vm4782 = vcmp.eq.s32.totalorder %v4780, 0
        %v4783 = vxor.u32 %v4777, 2147483648
        %v4784 = vsel %vm4782, %v4776, %v4783
        %vm4785 = vcmp.eq.s32.totalorder %v4780, 2
        %v4786 = vxor.u32 %v4776, 2147483648
        %v4787 = vsel %vm4785, %v4786, %v4777
        %v4788 = vsel %vm4781, %v4784, %v4787
        %v4789 = vsel %vm4778, nan, %v4788
        %v4790 = vand.u32 2147483647, %v3228
        %vm4791 = vcmp.le.f32.partialorder %v4790, 0.7853982
        %vm4792 = vcmp.lt.s32.totalorder %v3228, 0
        %v4793 = vand.u32 %v3228, 2139095040
        %v4794 = vshrl.u32 %v4793, 23
        %v4795 = vsub.s32 %v4794, 127
        %v4796 = vand.u32 2147483647, %v3228
        %v4797 = vand.u32 %v4796, 8388607
        %v4798 = vor.u32 %v4797, 8388608
        %v4799 = vsub.s32 0, %v4798
        %v4800 = vadd.s32 %v4795, 1
        %vm4801 = vcmp.gt.s32.totalorder %v4800, 0
        %v4802 = vsel %vm4801, %v4800, 0
        %v4803 = vshrl.u32 %v4802, 5
        %v4804 = vand.u32 %v4802, 31
        %v4805 = vsub.s32 32, %v4804
        %v4806 = vshrl.u32 683565275, %v4805
        %v4807 = vshll.u32 683565275, %v4804
        %v4808 = vshrl.u32 2475754826, %v4805
        %v4809 = vor.u32 %v4807, %v4808
        %v4810 = vshll.u32 2475754826, %v4804
        %v4811 = vshrl.u32 2131351028, %v4805
        %v4812 = vor.u32 %v4810, %v4811
        %v4813 = vshll.u32 2131351028, %v4804
        %v4814 = vshrl.u32 2102212464, %v4805
        %v4815 = vor.u32 %v4813, %v4814
        %v4816 = vshll.u32 2102212464, %v4804
        %v4817 = vshrl.u32 920167782, %v4805
        %v4818 = vor.u32 %v4816, %v4817
        %v4819 = vshll.u32 920167782, %v4804
        %v4820 = vshrl.u32 1326507024, %v4805
        %v4821 = vor.u32 %v4819, %v4820
        %vm4822 = vcmp.lt.s32.totalorder %v4803, 1
        %vm4823 = vcmp.lt.s32.totalorder %v4803, 2
        %vm4824 = vcmp.lt.s32.totalorder %v4803, 3
        %vm4825 = vcmp.lt.s32.totalorder %v4803, 4
        %v4826 = vsel %vm4822, %v4806, %v4809
        %v4827 = vsel %vm4825, %v4815, 2102212464
        %v4828 = vsel %vm4824, %v4812, %v4827
        %v4829 = vsel %vm4823, %v4826, %v4828
        %v4830 = vsel %vm4822, %v4809, %v4812
        %v4831 = vsel %vm4825, %v4818, 920167782
        %v4832 = vsel %vm4824, %v4815, %v4831
        %v4833 = vsel %vm4823, %v4830, %v4832
        %v4834 = vsel %vm4822, %v4812, %v4815
        %v4835 = vsel %vm4825, %v4821, 1326507024
        %v4836 = vsel %vm4824, %v4818, %v4835
        %v4837 = vsel %vm4823, %v4834, %v4836
        %v4838 = vshll.u32 %v4798, 8
        %v4839 = vmul.u32.u64.compose %v4838, %v4837
        %v4840 = vextract.low.u32 %v4839
        %v4841 = vextract.high.u32 %v4839
        %v4842 = vmul.u32.u64.compose %v4838, %v4833
        %v4843 = vextract.low.u32 %v4842
        %v4844 = vextract.high.u32 %v4842
        %v4845 = vmul.u32 %v4838, %v4829
        %v4846 = vadd.s32 %v4841, %v4843
        %vm4847 = vc.u32 %v4841, %v4843
        %v4848 = vadd.s32 %v4844, 1
        %v4849 = vsel %vm4847, %v4848, %v4844
        %v4850 = vadd.s32 %v4845, %v4849
        %v4851 = vadd.s32 %v4850, 536870912
        %v4852 = vshrl.u32 %v4851, 30
        %v4853 = vshll.u32 %v4852, 30
        %v4854 = vsub.s32 %v4850, %v4853
        %vm4855 = vcmp.lt.s32.totalorder %v4854, 0
        %v4856 = vsub.s32 0, %v4854
        %v4857 = vsel %vm4855, %v4856, %v4854
        %v4858 = vclz %v4857
        %v4859 = vsub.s32 %v4858, 2
        %vm4860 = vcmp.gt.s32.totalorder 0, %v4859
        %v4861 = vsel %vm4860, 0, %v4859
        %v4862 = vsub.s32 32, %v4861
        %v4863 = vshll.u32 %v4854, %v4861
        %v4864 = vshrl.u32 %v4846, %v4862
        %v4865 = vor.u32 %v4863, %v4864
        %v4866 = vsub.s32 4294967266, %v4861
        %v4867 = vadd.s32 %v4866, 127
        %v4868 = vshll.u32 %v4867, 23
        %v4869 = vor.u32 4788187, %v4868
        %v4870 = vand.u32 2147483647, %v4869
        %v4872 = vcvt.s32.f32 %v4865
        %v4873 = vmul.f32 %v4872, %v4870
        %v4874 = vxor.u32 %v4873, 2147483648
        %v4875 = vsel %vm4792, %v4874, %v4873
        %v4876 = vsub.s32 4, %v4852
        %v4877 = vsel %vm4792, %v4876, %v4852
        %v4878 = vsel %vm4791, %v3228, %v4875
        %v4879 = vsel %vm4791, 0, %v4877
        %v4880 = vcosq.f32.pop %v4878
        %v4881 = vsinq.f32.pop %v4878
        %vm4882 = vweird.f32 %v3228
        %v4883 = vadd.s32 %v4879, 3
        %v4884 = vand.u32 %v4883, 3
        %vm4885 = vcmp.lt.s32.totalorder %v4884, 2
        %vm4886 = vcmp.eq.s32.totalorder %v4884, 0
        %v4887 = vxor.u32 %v4881, 2147483648
        %v4888 = vsel %vm4886, %v4880, %v4887
        %vm4889 = vcmp.eq.s32.totalorder %v4884, 2
        %v4890 = vxor.u32 %v4880, 2147483648
        %v4891 = vsel %vm4889, %v4890, %v4881
        %v4892 = vsel %vm4885, %v4888, %v4891
        %v4893 = vsel %vm4882, nan, %v4892
        %v4894 = vld [vmem:[%s5] sm:$0x1]
        %v4895 = vld [vmem:[#allocation2] sm:$0x1]
        %4897 = vset.pattern.permute.xlu0 0
        %4898 = vperm.xlu0 %4897, %v4895
        %v4899 = vpop.permute.xlu0 %4898
        %v4901 = vlaneseq
        %v4902 = vshrl.u32 %v4901, 7
        %v4903 = vsub.s32 0, %v4902
        %v4904 = vrot.slane %v4899, %v4903
        %v4906 = vsel %vm2658, %v4894, 0
        %4908 = vmatprep.subr.mxu0 0.0
        %4909 = vmatpush1.msra.mxu0 0.0
        %4910 = vmatprep.subr.mxu0 0.0
        %4911 = vmatpush1.msra.mxu0 0.0
        %4912 = vmatprep.subr.mxu0 0.0
        %4913 = vmatpush1.msra.mxu0 0.0
        %4914 = vmatprep.subr.mxu0 0.0
        %4915 = vmatpush1.msra.mxu0 0.0
        %4916 = vmatprep.subr.mxu0 0.0
        %4917 = vmatpush1.msra.mxu0 0.0
        %4918 = vmatprep.subr.mxu0 0.0
        %4919 = vmatpush1.msra.mxu0 0.0
        %4920 = vmatprep.subr.mxu0 0.0
        %4921 = vmatpush1.msra.mxu0 0.0
        %4922 = vmatprep.subr.mxu0 0.0
        %4923 = vmatpush1.msra.mxu0 0.0
        %4924 = vmatprep.subr.mxu0 0.0
        %4925 = vmatpush1.msra.mxu0 0.0
        %4926 = vmatprep.subr.mxu0 0.0
        %4927 = vmatpush1.msra.mxu0 0.0
        %4928 = vmatprep.subr.mxu0 0.0
        %4929 = vmatpush1.msra.mxu0 0.0
        %4930 = vmatprep.subr.mxu0 0.0
        %4931 = vmatpush1.msra.mxu0 0.0
        %4932 = vmatprep.subr.mxu0 0.0
        %4933 = vmatpush1.msra.mxu0 0.0
        %4934 = vmatprep.subr.mxu0 0.0
        %4935 = vmatpush1.msra.mxu0 0.0
        %4936 = vmatprep.subr.mxu0 0.0
        %4937 = vmatpush1.msra.mxu0 0.0
        %4938 = vmatprep.subr.mxu0 %v3437
        %4939 = vmatpush1.msra.mxu0 %v3333
        %4940 = vmatprep.subr.mxu0 0.0
        %4941 = vmatpush2.msra.mxu0 0.0
        %4942 = vmatprep.subr.mxu0 0.0
        %4943 = vmatpush2.msra.mxu0 0.0
        %4944 = vmatprep.subr.mxu0 0.0
        %4945 = vmatpush2.msra.mxu0 0.0
        %4946 = vmatprep.subr.mxu0 0.0
        %4947 = vmatpush2.msra.mxu0 0.0
        %4948 = vmatprep.subr.mxu0 0.0
        %4949 = vmatpush2.msra.mxu0 0.0
        %4950 = vmatprep.subr.mxu0 0.0
        %4951 = vmatpush2.msra.mxu0 0.0
        %4952 = vmatprep.subr.mxu0 0.0
        %4953 = vmatpush2.msra.mxu0 0.0
        %4954 = vmatprep.subr.mxu0 0.0
        %4955 = vmatpush2.msra.mxu0 0.0
        %4956 = vmatprep.subr.mxu0 0.0
        %4957 = vmatpush2.msra.mxu0 0.0
        %4958 = vmatprep.subr.mxu0 0.0
        %4959 = vmatpush2.msra.mxu0 0.0
        %4960 = vmatprep.subr.mxu0 0.0
        %4961 = vmatpush2.msra.mxu0 0.0
        %4962 = vmatprep.subr.mxu0 0.0
        %4963 = vmatpush2.msra.mxu0 0.0
        %4964 = vmatprep.subr.mxu0 0.0
        %4965 = vmatpush2.msra.mxu0 0.0
        %4966 = vmatprep.subr.mxu0 0.0
        %4967 = vmatpush2.msra.mxu0 0.0
        %4968 = vmatprep.subr.mxu0 0.0
        %4969 = vmatpush2.msra.mxu0 0.0
        %4970 = vmatprep.subr.mxu0 0.0
        %4971 = vmatpush2.msra.mxu0 0.0
        %4972 = vmatprep.mubr.f32.mxu0 0.0
        %4973 = vmatmul.mubr.f32.gmra.mxu0 %v4906
        %v4974 = vpop.f32.mrf.mxu0
        %v4975 = vadd.f32 %v4904, %v4974
        %v4976 = vpop.f32.mrf.mxu0
        %v4977 = vadd.f32 %v4904, %v4976
        %4978 = vdwg.mxu0
        %4979 = vmatprep.subr.mxu0 0.0
        %4980 = vmatpush1.msra.mxu0 0.0
        %4981 = vmatprep.subr.mxu0 0.0
        %4982 = vmatpush1.msra.mxu0 0.0
        %4983 = vmatprep.subr.mxu0 0.0
        %4984 = vmatpush1.msra.mxu0 0.0
        %4985 = vmatprep.subr.mxu0 0.0
        %4986 = vmatpush1.msra.mxu0 0.0
        %4987 = vmatprep.subr.mxu0 0.0
        %4988 = vmatpush1.msra.mxu0 0.0
        %4989 = vmatprep.subr.mxu0 0.0
        %4990 = vmatpush1.msra.mxu0 0.0
        %4991 = vmatprep.subr.mxu0 0.0
        %4992 = vmatpush1.msra.mxu0 0.0
        %4993 = vmatprep.subr.mxu0 0.0
        %4994 = vmatpush1.msra.mxu0 0.0
        %4995 = vmatprep.subr.mxu0 0.0
        %4996 = vmatpush1.msra.mxu0 0.0
        %4997 = vmatprep.subr.mxu0 0.0
        %4998 = vmatpush1.msra.mxu0 0.0
        %4999 = vmatprep.subr.mxu0 0.0
        %5000 = vmatpush1.msra.mxu0 0.0
        %5001 = vmatprep.subr.mxu0 0.0
        %5002 = vmatpush1.msra.mxu0 0.0
        %5003 = vmatprep.subr.mxu0 0.0
        %5004 = vmatpush1.msra.mxu0 0.0
        %5005 = vmatprep.subr.mxu0 0.0
        %5006 = vmatpush1.msra.mxu0 0.0
        %5007 = vmatprep.subr.mxu0 0.0
        %5008 = vmatpush1.msra.mxu0 0.0
        %5009 = vmatprep.subr.mxu0 %v3645
        %5010 = vmatpush1.msra.mxu0 %v3541
        %5011 = vmatprep.subr.mxu0 0.0
        %5012 = vmatpush2.msra.mxu0 0.0
        %5013 = vmatprep.subr.mxu0 0.0
        %5014 = vmatpush2.msra.mxu0 0.0
        %5015 = vmatprep.subr.mxu0 0.0
        %5016 = vmatpush2.msra.mxu0 0.0
        %5017 = vmatprep.subr.mxu0 0.0
        %5018 = vmatpush2.msra.mxu0 0.0
        %5019 = vmatprep.subr.mxu0 0.0
        %5020 = vmatpush2.msra.mxu0 0.0
        %5021 = vmatprep.subr.mxu0 0.0
        %5022 = vmatpush2.msra.mxu0 0.0
        %5023 = vmatprep.subr.mxu0 0.0
        %5024 = vmatpush2.msra.mxu0 0.0
        %5025 = vmatprep.subr.mxu0 0.0
        %5026 = vmatpush2.msra.mxu0 0.0
        %5027 = vmatprep.subr.mxu0 0.0
        %5028 = vmatpush2.msra.mxu0 0.0
        %5029 = vmatprep.subr.mxu0 0.0
        %5030 = vmatpush2.msra.mxu0 0.0
        %5031 = vmatprep.subr.mxu0 0.0
        %5032 = vmatpush2.msra.mxu0 0.0
        %5033 = vmatprep.subr.mxu0 0.0
        %5034 = vmatpush2.msra.mxu0 0.0
        %5035 = vmatprep.subr.mxu0 0.0
        %5036 = vmatpush2.msra.mxu0 0.0
        %5037 = vmatprep.subr.mxu0 0.0
        %5038 = vmatpush2.msra.mxu0 0.0
        %5039 = vmatprep.subr.mxu0 0.0
        %5040 = vmatpush2.msra.mxu0 0.0
        %5041 = vmatprep.subr.mxu0 0.0
        %5042 = vmatpush2.msra.mxu0 0.0
        %5043 = vmatprep.mubr.f32.mxu0 0.0
        %5044 = vmatmul.mubr.f32.gmra.mxu0 %v4906
        %v5045 = vpop.f32.mrf.mxu0
        %v5046 = vadd.f32 %v4904, %v5045
        %v5047 = vpop.f32.mrf.mxu0
        %v5048 = vadd.f32 %v4904, %v5047
        %5049 = vdwg.mxu0
        %5050 = vmatprep.subr.mxu0 0.0
        %5051 = vmatpush1.msra.mxu0 0.0
        %5052 = vmatprep.subr.mxu0 0.0
        %5053 = vmatpush1.msra.mxu0 0.0
        %5054 = vmatprep.subr.mxu0 0.0
        %5055 = vmatpush1.msra.mxu0 0.0
        %5056 = vmatprep.subr.mxu0 0.0
        %5057 = vmatpush1.msra.mxu0 0.0
        %5058 = vmatprep.subr.mxu0 0.0
        %5059 = vmatpush1.msra.mxu0 0.0
        %5060 = vmatprep.subr.mxu0 0.0
        %5061 = vmatpush1.msra.mxu0 0.0
        %5062 = vmatprep.subr.mxu0 0.0
        %5063 = vmatpush1.msra.mxu0 0.0
        %5064 = vmatprep.subr.mxu0 0.0
        %5065 = vmatpush1.msra.mxu0 0.0
        %5066 = vmatprep.subr.mxu0 0.0
        %5067 = vmatpush1.msra.mxu0 0.0
        %5068 = vmatprep.subr.mxu0 0.0
        %5069 = vmatpush1.msra.mxu0 0.0
        %5070 = vmatprep.subr.mxu0 0.0
        %5071 = vmatpush1.msra.mxu0 0.0
        %5072 = vmatprep.subr.mxu0 0.0
        %5073 = vmatpush1.msra.mxu0 0.0
        %5074 = vmatprep.subr.mxu0 0.0
        %5075 = vmatpush1.msra.mxu0 0.0
        %5076 = vmatprep.subr.mxu0 0.0
        %5077 = vmatpush1.msra.mxu0 0.0
        %5078 = vmatprep.subr.mxu0 0.0
        %5079 = vmatpush1.msra.mxu0 0.0
        %5080 = vmatprep.subr.mxu0 %v3853
        %5081 = vmatpush1.msra.mxu0 %v3749
        %5082 = vmatprep.subr.mxu0 0.0
        %5083 = vmatpush2.msra.mxu0 0.0
        %5084 = vmatprep.subr.mxu0 0.0
        %5085 = vmatpush2.msra.mxu0 0.0
        %5086 = vmatprep.subr.mxu0 0.0
        %5087 = vmatpush2.msra.mxu0 0.0
        %5088 = vmatprep.subr.mxu0 0.0
        %5089 = vmatpush2.msra.mxu0 0.0
        %5090 = vmatprep.subr.mxu0 0.0
        %5091 = vmatpush2.msra.mxu0 0.0
        %5092 = vmatprep.subr.mxu0 0.0
        %5093 = vmatpush2.msra.mxu0 0.0
        %5094 = vmatprep.subr.mxu0 0.0
        %5095 = vmatpush2.msra.mxu0 0.0
        %5096 = vmatprep.subr.mxu0 0.0
        %5097 = vmatpush2.msra.mxu0 0.0
        %5098 = vmatprep.subr.mxu0 0.0
        %5099 = vmatpush2.msra.mxu0 0.0
        %5100 = vmatprep.subr.mxu0 0.0
        %5101 = vmatpush2.msra.mxu0 0.0
        %5102 = vmatprep.subr.mxu0 0.0
        %5103 = vmatpush2.msra.mxu0 0.0
        %5104 = vmatprep.subr.mxu0 0.0
        %5105 = vmatpush2.msra.mxu0 0.0
        %5106 = vmatprep.subr.mxu0 0.0
        %5107 = vmatpush2.msra.mxu0 0.0
        %5108 = vmatprep.subr.mxu0 0.0
        %5109 = vmatpush2.msra.mxu0 0.0
        %5110 = vmatprep.subr.mxu0 0.0
        %5111 = vmatpush2.msra.mxu0 0.0
        %5112 = vmatprep.subr.mxu0 0.0
        %5113 = vmatpush2.msra.mxu0 0.0
        %5114 = vmatprep.mubr.f32.mxu0 0.0
        %5115 = vmatmul.mubr.f32.gmra.mxu0 %v4906
        %v5116 = vpop.f32.mrf.mxu0
        %v5117 = vadd.f32 %v4904, %v5116
        %v5118 = vpop.f32.mrf.mxu0
        %v5119 = vadd.f32 %v4904, %v5118
        %5120 = vdwg.mxu0
        %5121 = vmatprep.subr.mxu0 0.0
        %5122 = vmatpush1.msra.mxu0 0.0
        %5123 = vmatprep.subr.mxu0 0.0
        %5124 = vmatpush1.msra.mxu0 0.0
        %5125 = vmatprep.subr.mxu0 0.0
        %5126 = vmatpush1.msra.mxu0 0.0
        %5127 = vmatprep.subr.mxu0 0.0
        %5128 = vmatpush1.msra.mxu0 0.0
        %5129 = vmatprep.subr.mxu0 0.0
        %5130 = vmatpush1.msra.mxu0 0.0
        %5131 = vmatprep.subr.mxu0 0.0
        %5132 = vmatpush1.msra.mxu0 0.0
        %5133 = vmatprep.subr.mxu0 0.0
        %5134 = vmatpush1.msra.mxu0 0.0
        %5135 = vmatprep.subr.mxu0 0.0
        %5136 = vmatpush1.msra.mxu0 0.0
        %5137 = vmatprep.subr.mxu0 0.0
        %5138 = vmatpush1.msra.mxu0 0.0
        %5139 = vmatprep.subr.mxu0 0.0
        %5140 = vmatpush1.msra.mxu0 0.0
        %5141 = vmatprep.subr.mxu0 0.0
        %5142 = vmatpush1.msra.mxu0 0.0
        %5143 = vmatprep.subr.mxu0 0.0
        %5144 = vmatpush1.msra.mxu0 0.0
        %5145 = vmatprep.subr.mxu0 0.0
        %5146 = vmatpush1.msra.mxu0 0.0
        %5147 = vmatprep.subr.mxu0 0.0
        %5148 = vmatpush1.msra.mxu0 0.0
        %5149 = vmatprep.subr.mxu0 0.0
        %5150 = vmatpush1.msra.mxu0 0.0
        %5151 = vmatprep.subr.mxu0 %v4061
        %5152 = vmatpush1.msra.mxu0 %v3957
        %5153 = vmatprep.subr.mxu0 0.0
        %5154 = vmatpush2.msra.mxu0 0.0
        %5155 = vmatprep.subr.mxu0 0.0
        %5156 = vmatpush2.msra.mxu0 0.0
        %5157 = vmatprep.subr.mxu0 0.0
        %5158 = vmatpush2.msra.mxu0 0.0
        %5159 = vmatprep.subr.mxu0 0.0
        %5160 = vmatpush2.msra.mxu0 0.0
        %5161 = vmatprep.subr.mxu0 0.0
        %5162 = vmatpush2.msra.mxu0 0.0
        %5163 = vmatprep.subr.mxu0 0.0
        %5164 = vmatpush2.msra.mxu0 0.0
        %5165 = vmatprep.subr.mxu0 0.0
        %5166 = vmatpush2.msra.mxu0 0.0
        %5167 = vmatprep.subr.mxu0 0.0
        %5168 = vmatpush2.msra.mxu0 0.0
        %5169 = vmatprep.subr.mxu0 0.0
        %5170 = vmatpush2.msra.mxu0 0.0
        %5171 = vmatprep.subr.mxu0 0.0
        %5172 = vmatpush2.msra.mxu0 0.0
        %5173 = vmatprep.subr.mxu0 0.0
        %5174 = vmatpush2.msra.mxu0 0.0
        %5175 = vmatprep.subr.mxu0 0.0
        %5176 = vmatpush2.msra.mxu0 0.0
        %5177 = vmatprep.subr.mxu0 0.0
        %5178 = vmatpush2.msra.mxu0 0.0
        %5179 = vmatprep.subr.mxu0 0.0
        %5180 = vmatpush2.msra.mxu0 0.0
        %5181 = vmatprep.subr.mxu0 0.0
        %5182 = vmatpush2.msra.mxu0 0.0
        %5183 = vmatprep.subr.mxu0 0.0
        %5184 = vmatpush2.msra.mxu0 0.0
        %5185 = vmatprep.mubr.f32.mxu0 0.0
        %5186 = vmatmul.mubr.f32.gmra.mxu0 %v4906
        %v5187 = vpop.f32.mrf.mxu0
        %v5188 = vadd.f32 %v4904, %v5187
        %v5189 = vpop.f32.mrf.mxu0
        %v5190 = vadd.f32 %v4904, %v5189
        %5191 = vdwg.mxu0
        %5192 = vmatprep.subr.mxu0 0.0
        %5193 = vmatpush1.msra.mxu0 0.0
        %5194 = vmatprep.subr.mxu0 0.0
        %5195 = vmatpush1.msra.mxu0 0.0
        %5196 = vmatprep.subr.mxu0 0.0
        %5197 = vmatpush1.msra.mxu0 0.0
        %5198 = vmatprep.subr.mxu0 0.0
        %5199 = vmatpush1.msra.mxu0 0.0
        %5200 = vmatprep.subr.mxu0 0.0
        %5201 = vmatpush1.msra.mxu0 0.0
        %5202 = vmatprep.subr.mxu0 0.0
        %5203 = vmatpush1.msra.mxu0 0.0
        %5204 = vmatprep.subr.mxu0 0.0
        %5205 = vmatpush1.msra.mxu0 0.0
        %5206 = vmatprep.subr.mxu0 0.0
        %5207 = vmatpush1.msra.mxu0 0.0
        %5208 = vmatprep.subr.mxu0 0.0
        %5209 = vmatpush1.msra.mxu0 0.0
        %5210 = vmatprep.subr.mxu0 0.0
        %5211 = vmatpush1.msra.mxu0 0.0
        %5212 = vmatprep.subr.mxu0 0.0
        %5213 = vmatpush1.msra.mxu0 0.0
        %5214 = vmatprep.subr.mxu0 0.0
        %5215 = vmatpush1.msra.mxu0 0.0
        %5216 = vmatprep.subr.mxu0 0.0
        %5217 = vmatpush1.msra.mxu0 0.0
        %5218 = vmatprep.subr.mxu0 0.0
        %5219 = vmatpush1.msra.mxu0 0.0
        %5220 = vmatprep.subr.mxu0 0.0
        %5221 = vmatpush1.msra.mxu0 0.0
        %5222 = vmatprep.subr.mxu0 %v4269
        %5223 = vmatpush1.msra.mxu0 %v4165
        %5224 = vmatprep.subr.mxu0 0.0
        %5225 = vmatpush2.msra.mxu0 0.0
        %5226 = vmatprep.subr.mxu0 0.0
        %5227 = vmatpush2.msra.mxu0 0.0
        %5228 = vmatprep.subr.mxu0 0.0
        %5229 = vmatpush2.msra.mxu0 0.0
        %5230 = vmatprep.subr.mxu0 0.0
        %5231 = vmatpush2.msra.mxu0 0.0
        %5232 = vmatprep.subr.mxu0 0.0
        %5233 = vmatpush2.msra.mxu0 0.0
        %5234 = vmatprep.subr.mxu0 0.0
        %5235 = vmatpush2.msra.mxu0 0.0
        %5236 = vmatprep.subr.mxu0 0.0
        %5237 = vmatpush2.msra.mxu0 0.0
        %5238 = vmatprep.subr.mxu0 0.0
        %5239 = vmatpush2.msra.mxu0 0.0
        %5240 = vmatprep.subr.mxu0 0.0
        %5241 = vmatpush2.msra.mxu0 0.0
        %5242 = vmatprep.subr.mxu0 0.0
        %5243 = vmatpush2.msra.mxu0 0.0
        %5244 = vmatprep.subr.mxu0 0.0
        %5245 = vmatpush2.msra.mxu0 0.0
        %5246 = vmatprep.subr.mxu0 0.0
        %5247 = vmatpush2.msra.mxu0 0.0
        %5248 = vmatprep.subr.mxu0 0.0
        %5249 = vmatpush2.msra.mxu0 0.0
        %5250 = vmatprep.subr.mxu0 0.0
        %5251 = vmatpush2.msra.mxu0 0.0
        %5252 = vmatprep.subr.mxu0 0.0
        %5253 = vmatpush2.msra.mxu0 0.0
        %5254 = vmatprep.subr.mxu0 0.0
        %5255 = vmatpush2.msra.mxu0 0.0
        %5256 = vmatprep.mubr.f32.mxu0 0.0
        %5257 = vmatmul.mubr.f32.gmra.mxu0 %v4906
        %v5258 = vpop.f32.mrf.mxu0
        %v5259 = vadd.f32 %v4904, %v5258
        %v5260 = vpop.f32.mrf.mxu0
        %v5261 = vadd.f32 %v4904, %v5260
        %5262 = vdwg.mxu0
        %5263 = vmatprep.subr.mxu0 0.0
        %5264 = vmatpush1.msra.mxu0 0.0
        %5265 = vmatprep.subr.mxu0 0.0
        %5266 = vmatpush1.msra.mxu0 0.0
        %5267 = vmatprep.subr.mxu0 0.0
        %5268 = vmatpush1.msra.mxu0 0.0
        %5269 = vmatprep.subr.mxu0 0.0
        %5270 = vmatpush1.msra.mxu0 0.0
        %5271 = vmatprep.subr.mxu0 0.0
        %5272 = vmatpush1.msra.mxu0 0.0
        %5273 = vmatprep.subr.mxu0 0.0
        %5274 = vmatpush1.msra.mxu0 0.0
        %5275 = vmatprep.subr.mxu0 0.0
        %5276 = vmatpush1.msra.mxu0 0.0
        %5277 = vmatprep.subr.mxu0 0.0
        %5278 = vmatpush1.msra.mxu0 0.0
        %5279 = vmatprep.subr.mxu0 0.0
        %5280 = vmatpush1.msra.mxu0 0.0
        %5281 = vmatprep.subr.mxu0 0.0
        %5282 = vmatpush1.msra.mxu0 0.0
        %5283 = vmatprep.subr.mxu0 0.0
        %5284 = vmatpush1.msra.mxu0 0.0
        %5285 = vmatprep.subr.mxu0 0.0
        %5286 = vmatpush1.msra.mxu0 0.0
        %5287 = vmatprep.subr.mxu0 0.0
        %5288 = vmatpush1.msra.mxu0 0.0
        %5289 = vmatprep.subr.mxu0 0.0
        %5290 = vmatpush1.msra.mxu0 0.0
        %5291 = vmatprep.subr.mxu0 0.0
        %5292 = vmatpush1.msra.mxu0 0.0
        %5293 = vmatprep.subr.mxu0 %v4477
        %5294 = vmatpush1.msra.mxu0 %v4373
        %5295 = vmatprep.subr.mxu0 0.0
        %5296 = vmatpush2.msra.mxu0 0.0
        %5297 = vmatprep.subr.mxu0 0.0
        %5298 = vmatpush2.msra.mxu0 0.0
        %5299 = vmatprep.subr.mxu0 0.0
        %5300 = vmatpush2.msra.mxu0 0.0
        %5301 = vmatprep.subr.mxu0 0.0
        %5302 = vmatpush2.msra.mxu0 0.0
        %5303 = vmatprep.subr.mxu0 0.0
        %5304 = vmatpush2.msra.mxu0 0.0
        %5305 = vmatprep.subr.mxu0 0.0
        %5306 = vmatpush2.msra.mxu0 0.0
        %5307 = vmatprep.subr.mxu0 0.0
        %5308 = vmatpush2.msra.mxu0 0.0
        %5309 = vmatprep.subr.mxu0 0.0
        %5310 = vmatpush2.msra.mxu0 0.0
        %5311 = vmatprep.subr.mxu0 0.0
        %5312 = vmatpush2.msra.mxu0 0.0
        %5313 = vmatprep.subr.mxu0 0.0
        %5314 = vmatpush2.msra.mxu0 0.0
        %5315 = vmatprep.subr.mxu0 0.0
        %5316 = vmatpush2.msra.mxu0 0.0
        %5317 = vmatprep.subr.mxu0 0.0
        %5318 = vmatpush2.msra.mxu0 0.0
        %5319 = vmatprep.subr.mxu0 0.0
        %5320 = vmatpush2.msra.mxu0 0.0
        %5321 = vmatprep.subr.mxu0 0.0
        %5322 = vmatpush2.msra.mxu0 0.0
        %5323 = vmatprep.subr.mxu0 0.0
        %5324 = vmatpush2.msra.mxu0 0.0
        %5325 = vmatprep.subr.mxu0 0.0
        %5326 = vmatpush2.msra.mxu0 0.0
        %5327 = vmatprep.mubr.f32.mxu0 0.0
        %5328 = vmatmul.mubr.f32.gmra.mxu0 %v4906
        %v5329 = vpop.f32.mrf.mxu0
        %v5330 = vadd.f32 %v4904, %v5329
        %v5331 = vpop.f32.mrf.mxu0
        %v5332 = vadd.f32 %v4904, %v5331
        %5333 = vdwg.mxu0
        %5334 = vmatprep.subr.mxu0 0.0
        %5335 = vmatpush1.msra.mxu0 0.0
        %5336 = vmatprep.subr.mxu0 0.0
        %5337 = vmatpush1.msra.mxu0 0.0
        %5338 = vmatprep.subr.mxu0 0.0
        %5339 = vmatpush1.msra.mxu0 0.0
        %5340 = vmatprep.subr.mxu0 0.0
        %5341 = vmatpush1.msra.mxu0 0.0
        %5342 = vmatprep.subr.mxu0 0.0
        %5343 = vmatpush1.msra.mxu0 0.0
        %5344 = vmatprep.subr.mxu0 0.0
        %5345 = vmatpush1.msra.mxu0 0.0
        %5346 = vmatprep.subr.mxu0 0.0
        %5347 = vmatpush1.msra.mxu0 0.0
        %5348 = vmatprep.subr.mxu0 0.0
        %5349 = vmatpush1.msra.mxu0 0.0
        %5350 = vmatprep.subr.mxu0 0.0
        %5351 = vmatpush1.msra.mxu0 0.0
        %5352 = vmatprep.subr.mxu0 0.0
        %5353 = vmatpush1.msra.mxu0 0.0
        %5354 = vmatprep.subr.mxu0 0.0
        %5355 = vmatpush1.msra.mxu0 0.0
        %5356 = vmatprep.subr.mxu0 0.0
        %5357 = vmatpush1.msra.mxu0 0.0
        %5358 = vmatprep.subr.mxu0 0.0
        %5359 = vmatpush1.msra.mxu0 0.0
        %5360 = vmatprep.subr.mxu0 0.0
        %5361 = vmatpush1.msra.mxu0 0.0
        %5362 = vmatprep.subr.mxu0 0.0
        %5363 = vmatpush1.msra.mxu0 0.0
        %5364 = vmatprep.subr.mxu0 %v4685
        %5365 = vmatpush1.msra.mxu0 %v4581
        %5366 = vmatprep.subr.mxu0 0.0
        %5367 = vmatpush2.msra.mxu0 0.0
        %5368 = vmatprep.subr.mxu0 0.0
        %5369 = vmatpush2.msra.mxu0 0.0
        %5370 = vmatprep.subr.mxu0 0.0
        %5371 = vmatpush2.msra.mxu0 0.0
        %5372 = vmatprep.subr.mxu0 0.0
        %5373 = vmatpush2.msra.mxu0 0.0
        %5374 = vmatprep.subr.mxu0 0.0
        %5375 = vmatpush2.msra.mxu0 0.0
        %5376 = vmatprep.subr.mxu0 0.0
        %5377 = vmatpush2.msra.mxu0 0.0
        %5378 = vmatprep.subr.mxu0 0.0
        %5379 = vmatpush2.msra.mxu0 0.0
        %5380 = vmatprep.subr.mxu0 0.0
        %5381 = vmatpush2.msra.mxu0 0.0
        %5382 = vmatprep.subr.mxu0 0.0
        %5383 = vmatpush2.msra.mxu0 0.0
        %5384 = vmatprep.subr.mxu0 0.0
        %5385 = vmatpush2.msra.mxu0 0.0
        %5386 = vmatprep.subr.mxu0 0.0
        %5387 = vmatpush2.msra.mxu0 0.0
        %5388 = vmatprep.subr.mxu0 0.0
        %5389 = vmatpush2.msra.mxu0 0.0
        %5390 = vmatprep.subr.mxu0 0.0
        %5391 = vmatpush2.msra.mxu0 0.0
        %5392 = vmatprep.subr.mxu0 0.0
        %5393 = vmatpush2.msra.mxu0 0.0
        %5394 = vmatprep.subr.mxu0 0.0
        %5395 = vmatpush2.msra.mxu0 0.0
        %5396 = vmatprep.subr.mxu0 0.0
        %5397 = vmatpush2.msra.mxu0 0.0
        %5398 = vmatprep.mubr.f32.mxu0 0.0
        %5399 = vmatmul.mubr.f32.gmra.mxu0 %v4906
        %v5400 = vpop.f32.mrf.mxu0
        %v5401 = vadd.f32 %v4904, %v5400
        %v5402 = vpop.f32.mrf.mxu0
        %v5403 = vadd.f32 %v4904, %v5402
        %5404 = vdwg.mxu0
        %5405 = vmatprep.subr.mxu0 0.0
        %5406 = vmatpush1.msra.mxu0 0.0
        %5407 = vmatprep.subr.mxu0 0.0
        %5408 = vmatpush1.msra.mxu0 0.0
        %5409 = vmatprep.subr.mxu0 0.0
        %5410 = vmatpush1.msra.mxu0 0.0
        %5411 = vmatprep.subr.mxu0 0.0
        %5412 = vmatpush1.msra.mxu0 0.0
        %5413 = vmatprep.subr.mxu0 0.0
        %5414 = vmatpush1.msra.mxu0 0.0
        %5415 = vmatprep.subr.mxu0 0.0
        %5416 = vmatpush1.msra.mxu0 0.0
        %5417 = vmatprep.subr.mxu0 0.0
        %5418 = vmatpush1.msra.mxu0 0.0
        %5419 = vmatprep.subr.mxu0 0.0
        %5420 = vmatpush1.msra.mxu0 0.0
        %5421 = vmatprep.subr.mxu0 0.0
        %5422 = vmatpush1.msra.mxu0 0.0
        %5423 = vmatprep.subr.mxu0 0.0
        %5424 = vmatpush1.msra.mxu0 0.0
        %5425 = vmatprep.subr.mxu0 0.0
        %5426 = vmatpush1.msra.mxu0 0.0
        %5427 = vmatprep.subr.mxu0 0.0
        %5428 = vmatpush1.msra.mxu0 0.0
        %5429 = vmatprep.subr.mxu0 0.0
        %5430 = vmatpush1.msra.mxu0 0.0
        %5431 = vmatprep.subr.mxu0 0.0
        %5432 = vmatpush1.msra.mxu0 0.0
        %5433 = vmatprep.subr.mxu0 0.0
        %5434 = vmatpush1.msra.mxu0 0.0
        %5435 = vmatprep.subr.mxu0 %v4893
        %5436 = vmatpush1.msra.mxu0 %v4789
        %5437 = vmatprep.subr.mxu0 0.0
        %5438 = vmatpush2.msra.mxu0 0.0
        %5439 = vmatprep.subr.mxu0 0.0
        %5440 = vmatpush2.msra.mxu0 0.0
        %5441 = vmatprep.subr.mxu0 0.0
        %5442 = vmatpush2.msra.mxu0 0.0
        %5443 = vmatprep.subr.mxu0 0.0
        %5444 = vmatpush2.msra.mxu0 0.0
        %5445 = vmatprep.subr.mxu0 0.0
        %5446 = vmatpush2.msra.mxu0 0.0
        %5447 = vmatprep.subr.mxu0 0.0
        %5448 = vmatpush2.msra.mxu0 0.0
        %5449 = vmatprep.subr.mxu0 0.0
        %5450 = vmatpush2.msra.mxu0 0.0
        %5451 = vmatprep.subr.mxu0 0.0
        %5452 = vmatpush2.msra.mxu0 0.0
        %5453 = vmatprep.subr.mxu0 0.0
        %5454 = vmatpush2.msra.mxu0 0.0
        %5455 = vmatprep.subr.mxu0 0.0
        %5456 = vmatpush2.msra.mxu0 0.0
        %5457 = vmatprep.subr.mxu0 0.0
        %5458 = vmatpush2.msra.mxu0 0.0
        %5459 = vmatprep.subr.mxu0 0.0
        %5460 = vmatpush2.msra.mxu0 0.0
        %5461 = vmatprep.subr.mxu0 0.0
        %5462 = vmatpush2.msra.mxu0 0.0
        %5463 = vmatprep.subr.mxu0 0.0
        %5464 = vmatpush2.msra.mxu0 0.0
        %5465 = vmatprep.subr.mxu0 0.0
        %5466 = vmatpush2.msra.mxu0 0.0
        %5467 = vmatprep.subr.mxu0 0.0
        %5468 = vmatpush2.msra.mxu0 0.0
        %5469 = vmatprep.mubr.f32.mxu0 0.0
        %5470 = vmatmul.mubr.f32.gmra.mxu0 %v4906
        %v5471 = vpop.f32.mrf.mxu0
        %v5472 = vadd.f32 %v4904, %v5471
        %v5473 = vpop.f32.mrf.mxu0
        %v5474 = vadd.f32 %v4904, %v5473
        %5475 = vdwg.mxu0
        %v5492 = vcombine.low %v4975, %v4977
        %v5493 = vcombine.low %v5046, %v5048
        %v5494 = vcombine.low %v5117, %v5119
        %v5495 = vcombine.low %v5188, %v5190
        %v5497 = vunpack.c.l.s4 1966171168
        %v5498 = vunpack.c.0.s8 %v5497
        %v5499 = vlaneseq
        %v5500 = vshrl.u32 %v5499, 7
        %v5501 = vsub.s32 %v5498, %v5500
        %v5502 = vrot.slane %v5492, %v5501
        %v5504 = vunpack.c.l.s4 1966171168
        %v5505 = vunpack.c.0.s8 %v5504
        %v5506 = vlaneseq
        %v5507 = vshrl.u32 %v5506, 7
        %v5508 = vsub.s32 %v5505, %v5507
        %v5509 = vrot.slane %v5493, %v5508
        %v5511 = vunpack.c.l.s4 1966171168
        %v5512 = vunpack.c.0.s8 %v5511
        %v5513 = vlaneseq
        %v5514 = vshrl.u32 %v5513, 7
        %v5515 = vsub.s32 %v5512, %v5514
        %v5516 = vrot.slane %v5494, %v5515
        %v5518 = vunpack.c.l.s4 1966171168
        %v5519 = vunpack.c.0.s8 %v5518
        %v5520 = vlaneseq
        %v5521 = vshrl.u32 %v5520, 7
        %v5522 = vsub.s32 %v5519, %v5521
        %v5523 = vrot.slane %v5495, %v5522
        %v5524 = vcombine.low %v5502, %v5509
        %v5525 = vcombine.low %v5516, %v5523
        %v5527 = vunpack.c.l.s4 1966171168
        %v5528 = vunpack.c.0.s8 %v5527
        %v5529 = vlaneseq
        %v5530 = vshrl.u32 %v5529, 7
        %v5531 = vsub.s32 %v5528, %v5530
        %v5532 = vrot.slane %v5524, %v5531
        %v5534 = vunpack.c.l.s4 1966171168
        %v5535 = vunpack.c.0.s8 %v5534
        %v5536 = vlaneseq
        %v5537 = vshrl.u32 %v5536, 7
        %v5538 = vsub.s32 %v5535, %v5537
        %v5539 = vrot.slane %v5525, %v5538
        %v5540 = vcombine.low %v5532, %v5539
        %v5541 = vcombine.low %v5259, %v5261
        %v5542 = vcombine.low %v5330, %v5332
        %v5543 = vcombine.low %v5401, %v5403
        %v5544 = vcombine.low %v5472, %v5474
        %v5546 = vunpack.c.l.s4 1966171168
        %v5547 = vunpack.c.0.s8 %v5546
        %v5548 = vlaneseq
        %v5549 = vshrl.u32 %v5548, 7
        %v5550 = vsub.s32 %v5547, %v5549
        %v5551 = vrot.slane %v5541, %v5550
        %v5553 = vunpack.c.l.s4 1966171168
        %v5554 = vunpack.c.0.s8 %v5553
        %v5555 = vlaneseq
        %v5556 = vshrl.u32 %v5555, 7
        %v5557 = vsub.s32 %v5554, %v5556
        %v5558 = vrot.slane %v5542, %v5557
        %v5560 = vunpack.c.l.s4 1966171168
        %v5561 = vunpack.c.0.s8 %v5560
        %v5562 = vlaneseq
        %v5563 = vshrl.u32 %v5562, 7
        %v5564 = vsub.s32 %v5561, %v5563
        %v5565 = vrot.slane %v5543, %v5564
        %v5567 = vunpack.c.l.s4 1966171168
        %v5568 = vunpack.c.0.s8 %v5567
        %v5569 = vlaneseq
        %v5570 = vshrl.u32 %v5569, 7
        %v5571 = vsub.s32 %v5568, %v5570
        %v5572 = vrot.slane %v5544, %v5571
        %v5573 = vcombine.low %v5551, %v5558
        %v5574 = vcombine.low %v5565, %v5572
        %v5576 = vunpack.c.l.s4 1966171168
        %v5577 = vunpack.c.0.s8 %v5576
        %v5578 = vlaneseq
        %v5579 = vshrl.u32 %v5578, 7
        %v5580 = vsub.s32 %v5577, %v5579
        %v5581 = vrot.slane %v5573, %v5580
        %v5583 = vunpack.c.l.s4 1966171168
        %v5584 = vunpack.c.0.s8 %v5583
        %v5585 = vlaneseq
        %v5586 = vshrl.u32 %v5585, 7
        %v5587 = vsub.s32 %v5584, %v5586
        %v5588 = vrot.slane %v5574, %v5587
        %v5589 = vcombine.low %v5581, %v5588
        %5592 = vst [vmem:[%s296] sm:$0xff] %v5540
        %5593 = vst [vmem:[%s296 + $0x8] sm:$0xff] %v5589
        %s5594 = sand.u32 %s186, 1
        %s5595 = scalar_lea.sflag [#allocation5], %s5594
        %s5596 = sand.u32 %s186, 1
        %s5597 = smul.addr %s5596, 16
        %s5598 = scalar_lea.vmem [#allocation6], %s5597
        // Predicated region
        $region53: #{tpu_custom_call.1} parent=47 // pred_check
          %p5599 = pneg %p196
        $region54: #{tpu_custom_call.1} parent=47 // pred_check_branch
          %5601 = sbr.rel (%p5599) target = $region56
        $region55: #{tpu_custom_call.1} parent=47 // pred_region
          %s5602 = smul.u32 16, %s26
          %s5604 = ssub.s32 256, 256
          %5605 = vsyncadd %s5595, %s5604
          %s5606 = smul.addr %s5602, 16
          %s5607 = scalar_lea.hbm %s7, %s5606
          %s5609 = sshll.u32 %s5598, 4
          %s5610 = int_to_ptr.vmem [resolvable:$true] %s5609
          %5612 = dma.vmem_to_hbm [thread:$0]  %s5610, 256, %s5607, %s5595
        $region56: #{tpu_custom_call.1} parent=47 // pred_fallthru
          _
      $region48: #{tpu_custom_call.1} parent=5 // pred_fallthru
        _
      %p5613 = scmp.le.s32.totalorder 2, %s21
      // Predicated region
      $region57: #{tpu_custom_call.1} parent=5 // pred_check
        %p5614 = pneg %p5613
      $region58: #{tpu_custom_call.1} parent=5 // pred_check_branch
        %5616 = sbr.rel (%p5614) target = $region60
      $region59: #{tpu_custom_call.1} parent=5 // pred_region
        %s5617 = ssub.s32 %s21, 2
        // Predicated region
        $region61: #{tpu_custom_call.1} parent=59 // pred_check
          %p5618 = pneg %p202
        $region62: #{tpu_custom_call.1} parent=59 // pred_check_branch
          %5620 = sbr.rel (%p5618) target = $region64
        $region63: #{tpu_custom_call.1} parent=59 // pred_region
          %s5621 = sand.u32 %s187, 1
          %s5622 = scalar_lea.sflag [#allocation5], %s5621
          %s5623 = sand.u32 %s187, 1
          %s5624 = smul.addr %s5623, 16
          %s5625 = scalar_lea.vmem [#allocation6], %s5624
          %5626 = dma.done %s5622, 256
        $region64: #{tpu_custom_call.1} parent=59 // pred_fallthru
          _
      $region60: #{tpu_custom_call.1} parent=5 // pred_fallthru
        _
    $region6: #{tpu_custom_call.1} parent=1 // loop_footer
      %s25 = sadd.s32 1, %s21
    $region7: #{tpu_custom_call.1} parent=1 // loop_footer_branch
      %20 = sbr.rel target = $region3
    $region8: #{tpu_custom_call.1} parent=1 // loop_exit
      _
    %5627 = vsyncpa [#allocation4], 1
    %s5628 = scalar_lea.sflag [#allocation4], 1
    %5629 = vsyncpa %s5628, 1
    %5630 = vsyncpa [#allocation5], 1
    %s5631 = scalar_lea.sflag [#allocation5], 1
    %5632 = vsyncpa %s5631, 1

</llo_original>
